<compile_context>
chip_gen: v5e
topology: v5e:2x2
jax: 0.10.0
libtpu: 0.0.40
codegen_flags: <defaults>
</compile_context>

<pallas_src>
import math
import numpy as np
import jax
import jax.numpy as jnp
from jax.experimental import pallas as pl
from jax.experimental.pallas import tpu as pltpu

CUTS = 8          # conv MLP hidden "cuts"
GN_GROUPS = 4     # GroupNorm groups (as in the PyTorch module)
N_GRP = CUTS + 2  # CUTS first-layer groups + dist2 group + normal-dot group


# ----------------------------------------------------------------------------
# Pallas kernel: quasi-geodesic interaction step
# ----------------------------------------------------------------------------
def _make_interaction_kernel(cj):
    """cj = inner j-chunk size (sublanes processed per inner step)."""

    def kernel(a2_ref, b2_ref,       # scalar-prefetch (SMEM): (H, CUTS), (H,)
               aw_ref,               # (8, N_GRP*TI) fused i-side coefficients
               jb_ref,               # (TJ, 8+H) merged j-side block [gj | f_j]
               out_ref):             # (H, TI) accumulator block (lane dense)
        nh, ti = out_ref.shape
        tj = jb_ref.shape[0]
        n_chunks = tj // cj

        # grid = (i_blocks, j_blocks); j is the reduction axis -> accumulate.
        @pl.when(pl.program_id(1) == 0)
        def _init():
            out_ref[...] = jnp.zeros_like(out_ref)

        aw = aw_ref[...]                                   # (8, N_GRP*ti)

        @pl.loop(0, n_chunks)
        def _chunk(k):
            c0 = pl.multiple_of(k * cj, cj)
            jc = jb_ref[pl.ds(c0, cj), :]                  # (cj, 8+nh)
            gj = jc[:, 0:8]                                # [x_j, 1, |x_j|^2, n_j]
            fj = jc[:, 8:]                                 # (cj, nh) source features

            # one wide MXU matmul: all CUTS+2 groups at once, 128-aligned lanes
            prod = jnp.dot(gj, aw, preferred_element_type=jnp.float32)  # (cj, N_GRP*ti)

            # first conv layer (folded with nuv_i): g_c = relu(M_ic.x_j + beta_ic)
            gs = [jnp.maximum(prod[:, c * ti:(c + 1) * ti], 0.0)
                  for c in range(CUTS)]
            dist2 = jnp.maximum(prod[:, CUTS * ti:(CUTS + 1) * ti], 0.0)
            ndot = prod[:, (CUTS + 1) * ti:(CUTS + 2) * ti]
            w = jnp.exp(-dist2 * (2.0 - ndot) ** 2)        # window w_ij (cj, ti)

            # second conv layer (CUTS -> H) + window + feature product
            for hh in range(nh):                           # unrolled over channels
                cv = gs[0] * a2_ref[hh, 0]
                for c in range(1, CUTS):
                    cv = cv + gs[c] * a2_ref[hh, c]
                cv = jnp.maximum(cv + b2_ref[hh], 0.0)     # (cj, ti)
                t = w * cv * fj[:, hh:hh + 1]              # f_j col broadcast over lanes
                # direct lane-dense row accumulation (no concatenates)
                out_ref[hh:hh + 1, :] += jnp.sum(t, axis=0, keepdims=True)

    return kernel


def pallas_interaction(points, nuv9, normals, feats, A1, B1, A2, B2,
                       *, ti=128, tj=256, cj=32):
    """out[i] = sum_j w_ij * conv(P_ij) * f_j   via a tiled Pallas kernel."""
    n, h = feats.shape
    f32 = jnp.float32
    assert tj % ti == 0 and ti % 128 == 0
    assert tj % cj == 0 and cj % 8 == 0

    pts = points.astype(f32)
    nuv = nuv9.astype(f32).reshape(n, 3, 3)
    nrm = normals.astype(f32)
    f = feats.astype(f32)
    A1 = A1.astype(f32)                       # (CUTS, 3)
    B1 = B1.astype(f32)                       # (CUTS,)
    A2 = A2.astype(f32)                       # (H, CUTS)
    B2 = B2.astype(f32).reshape(-1)           # (H,)

    # pad H to a multiple of 8 and N to a multiple of tj (zero features for
    # padded rows/channels -> they contribute exactly 0 to every real sum)
    hp = ((h + 7) // 8) * 8
    npad = ((n + tj - 1) // tj) * tj
    dn, dh = npad - n, hp - h
    pts = jnp.pad(pts, ((0, dn), (0, 0)))
    nrm = jnp.pad(nrm, ((0, dn), (0, 0)))
    nuv = jnp.pad(nuv, ((0, dn), (0, 0), (0, 0)))
    f = jnp.pad(f, ((0, dn), (0, dh)))
    A2p = jnp.pad(A2, ((0, dh), (0, 0)))
    B2p = jnp.pad(B2, ((0, dh),))

    sq = jnp.sum(pts * pts, axis=1, keepdims=True)                     # (Np, 1)
    ones = jnp.ones((npad, 1), f32)
    zeros3 = jnp.zeros((npad, 3), f32)

    # merged j-side block: [x_j, 1, |x_j|^2, n_j | f_j]   (Np, 8+Hp)
    gj = jnp.concatenate([pts, ones, sq, nrm], axis=1)                 # (Np, 8)
    jblk = jnp.concatenate([gj, f], axis=1)                            # (Np, 8+Hp)

    # i-side coefficient groups (each an 8-vector dotted against gj_j):
    #   0..CUTS-1 : first conv layer folded with nuv_i
    #   CUTS      : squared-distance coefficients
    #   CUTS+1    : normal-dot coefficients
    M = jnp.einsum('cr,irk->ick', A1, nuv)                             # (Np, CUTS, 3)
    beta = B1[None, :] - jnp.einsum('ick,ik->ic', M, pts)              # (Np, CUTS)
    cut = jnp.concatenate(
        [M, beta[:, :, None], jnp.zeros((npad, CUTS, 4), f32)], axis=2)   # (Np,CUTS,8)
    drow = jnp.concatenate([-2.0 * pts, sq, ones, zeros3], axis=1)[:, None, :]
    nrow = jnp.concatenate([jnp.zeros((npad, 5), f32), nrm], axis=1)[:, None, :]
    allc = jnp.concatenate([cut, drow, nrow], axis=1)                  # (Np, N_GRP, 8)

    # fuse all groups into one wide i-side operand so the kernel does a single
    # (cj,8)x(8,N_GRP*TI) matmul; groups are contiguous 128-lane slices.
    nbi = npad // ti
    aw = jnp.transpose(allc.reshape(nbi, ti, N_GRP, 8),
                       (3, 0, 2, 1)).reshape(8, nbi * N_GRP * ti)

    out_t = pl.pallas_call(
        _make_interaction_kernel(cj),
        out_shape=jax.ShapeDtypeStruct((hp, npad), f32),
        grid_spec=pltpu.PrefetchScalarGridSpec(
            num_scalar_prefetch=2,                  # A2, B2 -> SMEM
            grid=(npad // ti, npad // tj),
            in_specs=[
                pl.BlockSpec((8, N_GRP * ti), lambda i, j, *_: (0, i)),   # i-side coeffs
                pl.BlockSpec((tj, 8 + hp), lambda i, j, *_: (j, 0)),      # merged j block
            ],
            out_specs=pl.BlockSpec((hp, ti), lambda i, j, *_: (0, i)),    # lane-dense out
        ),
        compiler_params=pltpu.CompilerParams(
            dimension_semantics=("parallel", "arbitrary")),
    )(A2p, B2p, aw, jblk)

    return out_t[:h, :n].T                          # (N, H)


# Dense pure-JAX reference of the same interaction (for correctness check).
def reference_interaction(points, nuv9, normals, feats, A1, B1, A2, B2):
    d = points[None, :, :] - points[:, None, :]            # x_j - x_i : (N,N,3)
    dist2 = (d ** 2).sum(-1)
    ndot = normals @ normals.T
    w = jnp.exp(-dist2 * (2.0 - ndot) ** 2)
    nuv = nuv9.reshape(-1, 3, 3)
    P = jnp.einsum('irc,ijc->ijr', nuv, d)
    g = jnp.maximum(jnp.einsum('ijc,kc->ijk', P, A1) + B1, 0.0)
    cv = jnp.maximum(jnp.einsum('ijk,hk->ijh', g, A2) + B2, 0.0)
    return (w[:, :, None] * cv * feats[None, :, :]).sum(axis=1)


# ----------------------------------------------------------------------------
# Plain-JAX glue: per-point MLPs, GroupNorm, residual structure
# ----------------------------------------------------------------------------
def leaky_relu(x, slope=0.2):
    return jnp.maximum(x, slope * x)


def linear(x, p):
    return x @ p['w'].T + p['b']


def group_norm(x, gamma, beta, groups=GN_GROUPS, eps=1e-5):
    # Equivalent to nn.GroupNorm(groups, C) applied to x.T[None] (1, C, N).
    n, c = x.shape
    xt = x.T.reshape(groups, c // groups, n)
    mean = xt.mean(axis=(1, 2), keepdims=True)
    var = xt.var(axis=(1, 2), keepdims=True)
    xt = (xt - mean) / jnp.sqrt(var + eps)
    xn = xt.reshape(c, n).T
    return xn * gamma[None, :] + beta[None, :]


def dmasif_conv_forward(p, points, nuv, features, radius, interaction_fn):
    # net_in + norm_in
    f = leaky_relu(linear(features, p['net_in'][0]))
    f = leaky_relu(linear(f, p['net_in'][1]))
    f = group_norm(f, p['norm_in']['g'], p['norm_in']['b'])

    # interaction step (hot path -> Pallas)
    n = points.shape[0]
    pts = points / (math.sqrt(2.0) * radius)
    nuv9 = nuv.reshape(n, 9)
    normals = nuv[:, 0, :]
    c = p['conv']
    agg = interaction_fn(pts, nuv9, normals, f, c['A1'], c['B1'], c['A2'], c['B2'])

    # net_out + norm_out
    o = leaky_relu(linear(agg, p['net_out'][0]))
    o = leaky_relu(linear(o, p['net_out'][1]))
    o = group_norm(o, p['norm_out']['g'], p['norm_out']['b'])
    return o


def dmasif_conv_seg_forward(params, points, nuv, features, radius, interaction_fn):
    # TODO(synk): KeOps `ranges` batched block-sparse reductions not supported;
    #             single-batch (ranges=None) semantics only.
    x = features
    for lp, llp, ltp in zip(params['layers'], params['linear_layers'],
                            params['linear_transform']):
        x_i = dmasif_conv_forward(lp, points, nuv, x, radius, interaction_fn)
        x_i = linear(jnp.maximum(linear(x_i, llp[0]), 0.0), llp[1])  # Linear-ReLU-Linear
        x = linear(x, ltp)
        x = x + x_i
    return x


# ----------------------------------------------------------------------------
# Deterministic parameter init (synthetic; mirrors the PyTorch shapes)
# ----------------------------------------------------------------------------
def init_linear(key, fin, fout):
    s = 1.0 / math.sqrt(fin)
    kw, kb = jax.random.split(key)
    return {'w': jax.random.uniform(kw, (fout, fin), jnp.float32, -s, s),
            'b': jax.random.uniform(kb, (fout,), jnp.float32, -s, s)}


def init_dmasif_conv(key, in_ch, out_ch, hidden):
    ks = jax.random.split(key, 8)
    A1 = jax.random.normal(ks[4], (CUTS, 3), jnp.float32)
    B1 = jax.random.uniform(ks[5], (CUTS,), jnp.float32) * 0.8 * jnp.sqrt((A1 ** 2).sum(-1))
    A2 = jax.random.uniform(ks[6], (hidden, CUTS), jnp.float32,
                            -1.0 / math.sqrt(CUTS), 1.0 / math.sqrt(CUTS))
    B2 = jax.random.normal(ks[7], (hidden,), jnp.float32) * 0.5 * jnp.sqrt((A2 ** 2).sum(-1))
    return {
        'net_in': [init_linear(ks[0], in_ch, hidden), init_linear(ks[1], hidden, hidden)],
        'norm_in': {'g': jnp.ones((hidden,), jnp.float32), 'b': jnp.zeros((hidden,), jnp.float32)},
        'conv': {'A1': A1, 'B1': B1, 'A2': A2, 'B2': B2},
        'net_out': [init_linear(ks[2], hidden, out_ch), init_linear(ks[3], out_ch, out_ch)],
        'norm_out': {'g': jnp.ones((out_ch,), jnp.float32), 'b': jnp.zeros((out_ch,), jnp.float32)},
    }


def init_dmasif_conv_seg(key, in_ch, out_ch, n_layers):
    kl, kll, klt = jax.random.split(key, 3)
    lkeys = jax.random.split(kl, n_layers)
    llkeys = jax.random.split(kll, n_layers)
    ltkeys = jax.random.split(klt, n_layers)
    layers, lin_layers, lin_tf = [], [], []
    for i in range(n_layers):
        ci = in_ch if i == 0 else out_ch
        layers.append(init_dmasif_conv(lkeys[i], ci, out_ch, out_ch))
        k1, k2 = jax.random.split(llkeys[i])
        lin_layers.append([init_linear(k1, out_ch, out_ch), init_linear(k2, out_ch, out_ch)])
        lin_tf.append(init_linear(ltkeys[i], ci, out_ch))
    return {'layers': layers, 'linear_layers': lin_layers, 'linear_transform': lin_tf}


# ----------------------------------------------------------------------------
if __name__ == "__main__":
    # N not a multiple of 128 on purpose: exercises the zero-padding path.
    N, I, O, n_layers, radius = 200, 8, 16, 2, 9.0   # O % 8 == 0, O % 4 == 0

    key = jax.random.PRNGKey(0)
    kp, kn, kf, kparam = jax.random.split(key, 4)

    points = jax.random.normal(kp, (N, 3), jnp.float32) * 3.0
    normals = jax.random.normal(kn, (N, 3), jnp.float32)
    normals = normals / jnp.linalg.norm(normals, axis=1, keepdims=True)
    # build an orthonormal local basis [n, u, v] per point (stands in for
    # load_locally_oriented_bases; the forward pass only consumes `nuv`)
    a = jnp.where(jnp.abs(normals[:, :1]) < 0.9,
                  jnp.tile(jnp.array([[1.0, 0.0, 0.0]], jnp.float32), (N, 1)),
                  jnp.tile(jnp.array([[0.0, 1.0, 0.0]], jnp.float32), (N, 1)))
    u = jnp.cross(normals, a)
    u = u / jnp.linalg.norm(u, axis=1, keepdims=True)
    v = jnp.cross(normals, u)
    nuv = jnp.stack([normals, u, v], axis=1)          # (N, 3, 3)

    features = jax.random.normal(kf, (N, I), jnp.float32)
    params = init_dmasif_conv_seg(kparam, I, O, n_layers)

    fwd_pallas = jax.jit(lambda p, pts, b, f: dmasif_conv_seg_forward(
        p, pts, b, f, radius, pallas_interaction))
    out = jax.block_until_ready(fwd_pallas(params, points, nuv, features))

    # correctness check against a dense pure-JAX reference of the same math
    ref = jax.block_until_ready(dmasif_conv_seg_forward(
        params, points, nuv, features, radius, reference_interaction))

    assert out.shape == (N, O) and out.dtype == jnp.float32
    np.testing.assert_allclose(np.asarray(out), np.asarray(ref), rtol=2e-3, atol=2e-3)
    print("KERNEL_OK")
</pallas_src>

<mosaic_0001>
module attributes {stable_mosaic.version = 11 : i64} {
  func.func @kernel(%arg0: i32, %arg1: i32, %arg2: memref<16x8xf32, #tpu.memory_space<smem>>, %arg3: memref<16xf32, #tpu.memory_space<smem>>, %arg4: memref<8x1280xf32, #tpu.memory_space<vmem>>, %arg5: memref<256x24xf32, #tpu.memory_space<vmem>>, %arg6: memref<16x128xf32, #tpu.memory_space<vmem>>) attributes {dimension_semantics = [#tpu.dimension_semantics<parallel>, #tpu.dimension_semantics<arbitrary>], iteration_bounds = array<i64: 2, 1>, scalar_prefetch = 2 : i64, scratch_operands = 0 : i64, tpu.core_type = #tpu.core_type<tc>, window_params = [{transform_indices = @transform_0, window_bounds = array<i64: 8, 1280>}, {transform_indices = @transform_1, window_bounds = array<i64: 256, 24>}, {transform_indices = @transform_2, window_bounds = array<i64: 16, 128>}]} {
    %c0_i32 = arith.constant 0 : i32
    %0 = arith.cmpi eq, %arg1, %c0_i32 : i32
    %1 = arith.extui %0 : i1 to i32
    %c0_i32_0 = arith.constant 0 : i32
    %2 = arith.cmpi ne, %1, %c0_i32_0 : i32
    scf.if %2 {
      %cst = arith.constant 0.000000e+00 : f32
      %5 = vector.broadcast %cst : f32 to vector<16x128xf32>
      %c0_4 = arith.constant 0 : index
      %c0_5 = arith.constant 0 : index
      %6 = vector.load %arg6[%c0_4, %c0_5] : memref<16x128xf32, #tpu.memory_space<vmem>>, vector<16x128xf32>
      tpu.vector_store %arg6[%c0_4, %c0_5], %5 {strides = array<i32>} : memref<16x128xf32, #tpu.memory_space<vmem>>, vector<16x128xf32>,
    } else {
    }
    %c0 = arith.constant 0 : index
    %c0_1 = arith.constant 0 : index
    %3 = vector.load %arg4[%c0, %c0_1] : memref<8x1280xf32, #tpu.memory_space<vmem>>, vector<8x1280xf32>
    %c0_i32_2 = arith.constant 0 : i32
    %c8_i32 = arith.constant 8 : i32
    %4 = arith.addi %c0_i32_2, %c8_i32 : i32
    %c1_i32 = arith.constant 1 : i32
    scf.for %arg7 = %c0_i32_2 to %4 step %c1_i32  : i32 {
      %c1_i32_4 = arith.constant 1 : i32
      %5 = arith.muli %arg7, %c1_i32_4 : i32
      %c0_i32_5 = arith.constant 0 : i32
      %6 = arith.addi %c0_i32_5, %5 : i32
      %c32_i32 = arith.constant 32 : i32
      %7 = arith.muli %6, %c32_i32 : i32
      %8 = tpu.assume_multiple %7, 32 : i32
      %9 = arith.index_cast %8 : i32 to index
      %c0_6 = arith.constant 0 : index
      %10 = vector.load %arg5[%9, %c0_6] : memref<256x24xf32, #tpu.memory_space<vmem>>, vector<32x24xf32>
      %11 = vector.extract_strided_slice %10 {offsets = [0, 0], sizes = [32, 8], strides = [1, 1]} : vector<32x24xf32> to vector<32x8xf32>
      %12 = vector.extract_strided_slice %10 {offsets = [0, 8], sizes = [32, 16], strides = [1, 1]} : vector<32x24xf32> to vector<32x16xf32>
      %cst = arith.constant dense<0.000000e+00> : vector<32x1280xf32>
      %13 = tpu.matmul %11, %3, %cst {dimension_numbers = #tpu.dot_dimension_numbers<[1], [0], [0], [1], [0, 0, 1, 1], [], []>} : vector<32x8xf32>, vector<8x1280xf32>, vector<32x1280xf32> -> vector<32x1280xf32>
      %14 = vector.extract_strided_slice %13 {offsets = [0, 0], sizes = [32, 128], strides = [1, 1]} : vector<32x1280xf32> to vector<32x128xf32>
      %cst_7 = arith.constant 0.000000e+00 : f32
      %15 = vector.broadcast %cst_7 : f32 to vector<32x128xf32>
      %16 = arith.maximumf %14, %15 : vector<32x128xf32>
      %17 = vector.extract_strided_slice %13 {offsets = [0, 128], sizes = [32, 128], strides = [1, 1]} : vector<32x1280xf32> to vector<32x128xf32>
      %cst_8 = arith.constant 0.000000e+00 : f32
      %18 = vector.broadcast %cst_8 : f32 to vector<32x128xf32>
      %19 = arith.maximumf %17, %18 : vector<32x128xf32>
      %20 = vector.extract_strided_slice %13 {offsets = [0, 256], sizes = [32, 128], strides = [1, 1]} : vector<32x1280xf32> to vector<32x128xf32>
      %cst_9 = arith.constant 0.000000e+00 : f32
      %21 = vector.broadcast %cst_9 : f32 to vector<32x128xf32>
      %22 = arith.maximumf %20, %21 : vector<32x128xf32>
      %23 = vector.extract_strided_slice %13 {offsets = [0, 384], sizes = [32, 128], strides = [1, 1]} : vector<32x1280xf32> to vector<32x128xf32>
      %cst_10 = arith.constant 0.000000e+00 : f32
      %24 = vector.broadcast %cst_10 : f32 to vector<32x128xf32>
      %25 = arith.maximumf %23, %24 : vector<32x128xf32>
      %26 = vector.extract_strided_slice %13 {offsets = [0, 512], sizes = [32, 128], strides = [1, 1]} : vector<32x1280xf32> to vector<32x128xf32>
      %cst_11 = arith.constant 0.000000e+00 : f32
      %27 = vector.broadcast %cst_11 : f32 to vector<32x128xf32>
      %28 = arith.maximumf %26, %27 : vector<32x128xf32>
      %29 = vector.extract_strided_slice %13 {offsets = [0, 640], sizes = [32, 128], strides = [1, 1]} : vector<32x1280xf32> to vector<32x128xf32>
      %cst_12 = arith.constant 0.000000e+00 : f32
      %30 = vector.broadcast %cst_12 : f32 to vector<32x128xf32>
      %31 = arith.maximumf %29, %30 : vector<32x128xf32>
      %32 = vector.extract_strided_slice %13 {offsets = [0, 768], sizes = [32, 128], strides = [1, 1]} : vector<32x1280xf32> to vector<32x128xf32>
      %cst_13 = arith.constant 0.000000e+00 : f32
      %33 = vector.broadcast %cst_13 : f32 to vector<32x128xf32>
      %34 = arith.maximumf %32, %33 : vector<32x128xf32>
      %35 = vector.extract_strided_slice %13 {offsets = [0, 896], sizes = [32, 128], strides = [1, 1]} : vector<32x1280xf32> to vector<32x128xf32>
      %cst_14 = arith.constant 0.000000e+00 : f32
      %36 = vector.broadcast %cst_14 : f32 to vector<32x128xf32>
      %37 = arith.maximumf %35, %36 : vector<32x128xf32>
      %38 = vector.extract_strided_slice %13 {offsets = [0, 1024], sizes = [32, 128], strides = [1, 1]} : vector<32x1280xf32> to vector<32x128xf32>
      %cst_15 = arith.constant 0.000000e+00 : f32
      %39 = vector.broadcast %cst_15 : f32 to vector<32x128xf32>
      %40 = arith.maximumf %38, %39 : vector<32x128xf32>
      %41 = vector.extract_strided_slice %13 {offsets = [0, 1152], sizes = [32, 128], strides = [1, 1]} : vector<32x1280xf32> to vector<32x128xf32>
      %cst_16 = arith.constant 0.000000e+00 : f32
      %42 = vector.broadcast %cst_16 : f32 to vector<32x128xf32>
      %43 = arith.subf %42, %40 : vector<32x128xf32>
      %cst_17 = arith.constant 2.000000e+00 : f32
      %44 = vector.broadcast %cst_17 : f32 to vector<32x128xf32>
      %45 = arith.subf %44, %41 : vector<32x128xf32>
      %46 = arith.mulf %45, %45 : vector<32x128xf32>
      %47 = arith.mulf %43, %46 : vector<32x128xf32>
      %48 = math.exp %47 : vector<32x128xf32>
      %c0_18 = arith.constant 0 : index
      %c0_19 = arith.constant 0 : index
      %49 = memref.load %arg2[%c0_18, %c0_19] : memref<16x8xf32, #tpu.memory_space<smem>>
      %50 = vector.broadcast %49 : f32 to vector<32x128xf32>
      %51 = arith.mulf %16, %50 : vector<32x128xf32>
      %c0_20 = arith.constant 0 : index
      %c1 = arith.constant 1 : index
      %52 = memref.load %arg2[%c0_20, %c1] : memref<16x8xf32, #tpu.memory_space<smem>>
      %53 = vector.broadcast %52 : f32 to vector<32x128xf32>
      %54 = arith.mulf %19, %53 : vector<32x128xf32>
      %55 = arith.addf %51, %54 : vector<32x128xf32>
      %c0_21 = arith.constant 0 : index
      %c2 = arith.constant 2 : index
      %56 = memref.load %arg2[%c0_21, %c2] : memref<16x8xf32, #tpu.memory_space<smem>>
      %57 = vector.broadcast %56 : f32 to vector<32x128xf32>
      %58 = arith.mulf %22, %57 : vector<32x128xf32>
      %59 = arith.addf %55, %58 : vector<32x128xf32>
      %c0_22 = arith.constant 0 : index
      %c3 = arith.constant 3 : index
      %60 = memref.load %arg2[%c0_22, %c3] : memref<16x8xf32, #tpu.memory_space<smem>>
      %61 = vector.broadcast %60 : f32 to vector<32x128xf32>
      %62 = arith.mulf %25, %61 : vector<32x128xf32>
      %63 = arith.addf %59, %62 : vector<32x128xf32>
      %c0_23 = arith.constant 0 : index
      %c4 = arith.constant 4 : index
      %64 = memref.load %arg2[%c0_23, %c4] : memref<16x8xf32, #tpu.memory_space<smem>>
      %65 = vector.broadcast %64 : f32 to vector<32x128xf32>
      %66 = arith.mulf %28, %65 : vector<32x128xf32>
      %67 = arith.addf %63, %66 : vector<32x128xf32>
      %c0_24 = arith.constant 0 : index
      %c5 = arith.constant 5 : index
      %68 = memref.load %arg2[%c0_24, %c5] : memref<16x8xf32, #tpu.memory_space<smem>>
      %69 = vector.broadcast %68 : f32 to vector<32x128xf32>
      %70 = arith.mulf %31, %69 : vector<32x128xf32>
      %71 = arith.addf %67, %70 : vector<32x128xf32>
      %c0_25 = arith.constant 0 : index
      %c6 = arith.constant 6 : index
      %72 = memref.load %arg2[%c0_25, %c6] : memref<16x8xf32, #tpu.memory_space<smem>>
      %73 = vector.broadcast %72 : f32 to vector<32x128xf32>
      %74 = arith.mulf %34, %73 : vector<32x128xf32>
      %75 = arith.addf %71, %74 : vector<32x128xf32>
      %c0_26 = arith.constant 0 : index
      %c7 = arith.constant 7 : index
      %76 = memref.load %arg2[%c0_26, %c7] : memref<16x8xf32, #tpu.memory_space<smem>>
      %77 = vector.broadcast %76 : f32 to vector<32x128xf32>
      %78 = arith.mulf %37, %77 : vector<32x128xf32>
      %79 = arith.addf %75, %78 : vector<32x128xf32>
      %c0_27 = arith.constant 0 : index
      %80 = memref.load %arg3[%c0_27] : memref<16xf32, #tpu.memory_space<smem>>
      %81 = vector.broadcast %80 : f32 to vector<32x128xf32>
      %82 = arith.addf %79, %81 : vector<32x128xf32>
      %cst_28 = arith.constant 0.000000e+00 : f32
      %83 = vector.broadcast %cst_28 : f32 to vector<32x128xf32>
      %84 = arith.maximumf %82, %83 : vector<32x128xf32>
      %85 = arith.mulf %48, %84 : vector<32x128xf32>
      %86 = vector.extract_strided_slice %12 {offsets = [0, 0], sizes = [32, 1], strides = [1, 1]} : vector<32x16xf32> to vector<32x1xf32>
      %87 = vector.broadcast %86 : vector<32x1xf32> to vector<32x128xf32>
      %88 = arith.mulf %85, %87 : vector<32x128xf32>
      %c0_29 = arith.constant 0 : index
      %c0_30 = arith.constant 0 : index
      %89 = vector.load %arg6[%c0_29, %c0_30] : memref<16x128xf32, #tpu.memory_space<vmem>>, vector<1x128xf32>
      %cst_31 = arith.constant dense<0.000000e+00> : vector<128xf32>
      %90 = vector.multi_reduction <add>, %88, %cst_31 [0] : vector<32x128xf32> to vector<128xf32>
      %91 = vector.shape_cast %90 : vector<128xf32> to vector<1x128xf32>
      %92 = arith.addf %89, %91 : vector<1x128xf32>
      %c0_32 = arith.constant 0 : index
      %c0_33 = arith.constant 0 : index
      %93 = vector.load %arg6[%c0_32, %c0_33] : memref<16x128xf32, #tpu.memory_space<vmem>>, vector<1x128xf32>
      tpu.vector_store %arg6[%c0_32, %c0_33], %92 {strides = array<i32>} : memref<16x128xf32, #tpu.memory_space<vmem>>, vector<1x128xf32>,
      %c1_34 = arith.constant 1 : index
      %c0_35 = arith.constant 0 : index
      %94 = memref.load %arg2[%c1_34, %c0_35] : memref<16x8xf32, #tpu.memory_space<smem>>
      %95 = vector.broadcast %94 : f32 to vector<32x128xf32>
      %96 = arith.mulf %16, %95 : vector<32x128xf32>
      %c1_36 = arith.constant 1 : index
      %c1_37 = arith.constant 1 : index
      %97 = memref.load %arg2[%c1_36, %c1_37] : memref<16x8xf32, #tpu.memory_space<smem>>
      %98 = vector.broadcast %97 : f32 to vector<32x128xf32>
      %99 = arith.mulf %19, %98 : vector<32x128xf32>
      %100 = arith.addf %96, %99 : vector<32x128xf32>
      %c1_38 = arith.constant 1 : index
      %c2_39 = arith.constant 2 : index
      %101 = memref.load %arg2[%c1_38, %c2_39] : memref<16x8xf32, #tpu.memory_space<smem>>
      %102 = vector.broadcast %101 : f32 to vector<32x128xf32>
      %103 = arith.mulf %22, %102 : vector<32x128xf32>
      %104 = arith.addf %100, %103 : vector<32x128xf32>
      %c1_40 = arith.constant 1 : index
      %c3_41 = arith.constant 3 : index
      %105 = memref.load %arg2[%c1_40, %c3_41] : memref<16x8xf32, #tpu.memory_space<smem>>
      %106 = vector.broadcast %105 : f32 to vector<32x128xf32>
      %107 = arith.mulf %25, %106 : vector<32x128xf32>
      %108 = arith.addf %104, %107 : vector<32x128xf32>
      %c1_42 = arith.constant 1 : index
      %c4_43 = arith.constant 4 : index
      %109 = memref.load %arg2[%c1_42, %c4_43] : memref<16x8xf32, #tpu.memory_space<smem>>
      %110 = vector.broadcast %109 : f32 to vector<32x128xf32>
      %111 = arith.mulf %28, %110 : vector<32x128xf32>
      %112 = arith.addf %108, %111 : vector<32x128xf32>
      %c1_44 = arith.constant 1 : index
      %c5_45 = arith.constant 5 : index
      %113 = memref.load %arg2[%c1_44, %c5_45] : memref<16x8xf32, #tpu.memory_space<smem>>
      %114 = vector.broadcast %113 : f32 to vector<32x128xf32>
      %115 = arith.mulf %31, %114 : vector<32x128xf32>
      %116 = arith.addf %112, %115 : vector<32x128xf32>
      %c1_46 = arith.constant 1 : index
      %c6_47 = arith.constant 6 : index
      %117 = memref.load %arg2[%c1_46, %c6_47] : memref<16x8xf32, #tpu.memory_space<smem>>
      %118 = vector.broadcast %117 : f32 to vector<32x128xf32>
      %119 = arith.mulf %34, %118 : vector<32x128xf32>
      %120 = arith.addf %116, %119 : vector<32x128xf32>
      %c1_48 = arith.constant 1 : index
      %c7_49 = arith.constant 7 : index
      %121 = memref.load %arg2[%c1_48, %c7_49] : memref<16x8xf32, #tpu.memory_space<smem>>
      %122 = vector.broadcast %121 : f32 to vector<32x128xf32>
      %123 = arith.mulf %37, %122 : vector<32x128xf32>
      %124 = arith.addf %120, %123 : vector<32x128xf32>
      %c1_50 = arith.constant 1 : index
      %125 = memref.load %arg3[%c1_50] : memref<16xf32, #tpu.memory_space<smem>>
      %126 = vector.broadcast %125 : f32 to vector<32x128xf32>
      %127 = arith.addf %124, %126 : vector<32x128xf32>
      %cst_51 = arith.constant 0.000000e+00 : f32
      %128 = vector.broadcast %cst_51 : f32 to vector<32x128xf32>
      %129 = arith.maximumf %127, %128 : vector<32x128xf32>
      %130 = arith.mulf %48, %129 : vector<32x128xf32>
      %131 = vector.extract_strided_slice %12 {offsets = [0, 1], sizes = [32, 1], strides = [1, 1]} : vector<32x16xf32> to vector<32x1xf32>
      %132 = vector.broadcast %131 : vector<32x1xf32> to vector<32x128xf32>
      %133 = arith.mulf %130, %132 : vector<32x128xf32>
      %c1_52 = arith.constant 1 : index
      %c0_53 = arith.constant 0 : index
      %134 = vector.load %arg6[%c1_52, %c0_53] : memref<16x128xf32, #tpu.memory_space<vmem>>, vector<1x128xf32>
      %cst_54 = arith.constant dense<0.000000e+00> : vector<128xf32>
      %135 = vector.multi_reduction <add>, %133, %cst_54 [0] : vector<32x128xf32> to vector<128xf32>
      %136 = vector.shape_cast %135 : vector<128xf32> to vector<1x128xf32>
      %137 = arith.addf %134, %136 : vector<1x128xf32>
      %c1_55 = arith.constant 1 : index
      %c0_56 = arith.constant 0 : index
      %138 = vector.load %arg6[%c1_55, %c0_56] : memref<16x128xf32, #tpu.memory_space<vmem>>, vector<1x128xf32>
      tpu.vector_store %arg6[%c1_55, %c0_56], %137 {strides = array<i32>} : memref<16x128xf32, #tpu.memory_space<vmem>>, vector<1x128xf32>,
      %c2_57 = arith.constant 2 : index
      %c0_58 = arith.constant 0 : index
      %139 = memref.load %arg2[%c2_57, %c0_58] : memref<16x8xf32, #tpu.memory_space<smem>>
      %140 = vector.broadcast %139 : f32 to vector<32x128xf32>
      %141 = arith.mulf %16, %140 : vector<32x128xf32>
      %c2_59 = arith.constant 2 : index
      %c1_60 = arith.constant 1 : index
      %142 = memref.load %arg2[%c2_59, %c1_60] : memref<16x8xf32, #tpu.memory_space<smem>>
      %143 = vector.broadcast %142 : f32 to vector<32x128xf32>
      %144 = arith.mulf %19, %143 : vector<32x128xf32>
      %145 = arith.addf %141, %144 : vector<32x128xf32>
      %c2_61 = arith.constant 2 : index
      %c2_62 = arith.constant 2 : index
      %146 = memref.load %arg2[%c2_61, %c2_62] : memref<16x8xf32, #tpu.memory_space<smem>>
      %147 = vector.broadcast %146 : f32 to vector<32x128xf32>
      %148 = arith.mulf %22, %147 : vector<32x128xf32>
      %149 = arith.addf %145, %148 : vector<32x128xf32>
      %c2_63 = arith.constant 2 : index
      %c3_64 = arith.constant 3 : index
      %150 = memref.load %arg2[%c2_63, %c3_64] : memref<16x8xf32, #tpu.memory_space<smem>>
      %151 = vector.broadcast %150 : f32 to vector<32x128xf32>
      %152 = arith.mulf %25, %151 : vector<32x128xf32>
      %153 = arith.addf %149, %152 : vector<32x128xf32>
      %c2_65 = arith.constant 2 : index
      %c4_66 = arith.constant 4 : index
      %154 = memref.load %arg2[%c2_65, %c4_66] : memref<16x8xf32, #tpu.memory_space<smem>>
      %155 = vector.broadcast %154 : f32 to vector<32x128xf32>
      %156 = arith.mulf %28, %155 : vector<32x128xf32>
      %157 = arith.addf %153, %156 : vector<32x128xf32>
      %c2_67 = arith.constant 2 : index
      %c5_68 = arith.constant 5 : index
      %158 = memref.load %arg2[%c2_67, %c5_68] : memref<16x8xf32, #tpu.memory_space<smem>>
      %159 = vector.broadcast %158 : f32 to vector<32x128xf32>
      %160 = arith.mulf %31, %159 : vector<32x128xf32>
      %161 = arith.addf %157, %160 : vector<32x128xf32>
      %c2_69 = arith.constant 2 : index
      %c6_70 = arith.constant 6 : index
      %162 = memref.load %arg2[%c2_69, %c6_70] : memref<16x8xf32, #tpu.memory_space<smem>>
      %163 = vector.broadcast %162 : f32 to vector<32x128xf32>
      %164 = arith.mulf %34, %163 : vector<32x128xf32>
      %165 = arith.addf %161, %164 : vector<32x128xf32>
      %c2_71 = arith.constant 2 : index
      %c7_72 = arith.constant 7 : index
      %166 = memref.load %arg2[%c2_71, %c7_72] : memref<16x8xf32, #tpu.memory_space<smem>>
      %167 = vector.broadcast %166 : f32 to vector<32x128xf32>
      %168 = arith.mulf %37, %167 : vector<32x128xf32>
      %169 = arith.addf %165, %168 : vector<32x128xf32>
      %c2_73 = arith.constant 2 : index
      %170 = memref.load %arg3[%c2_73] : memref<16xf32, #tpu.memory_space<smem>>
      %171 = vector.broadcast %170 : f32 to vector<32x128xf32>
      %172 = arith.addf %169, %171 : vector<32x128xf32>
      %cst_74 = arith.constant 0.000000e+00 : f32
      %173 = vector.broadcast %cst_74 : f32 to vector<32x128xf32>
      %174 = arith.maximumf %172, %173 : vector<32x128xf32>
      %175 = arith.mulf %48, %174 : vector<32x128xf32>
      %176 = vector.extract_strided_slice %12 {offsets = [0, 2], sizes = [32, 1], strides = [1, 1]} : vector<32x16xf32> to vector<32x1xf32>
      %177 = vector.broadcast %176 : vector<32x1xf32> to vector<32x128xf32>
      %178 = arith.mulf %175, %177 : vector<32x128xf32>
      %c2_75 = arith.constant 2 : index
      %c0_76 = arith.constant 0 : index
      %179 = vector.load %arg6[%c2_75, %c0_76] : memref<16x128xf32, #tpu.memory_space<vmem>>, vector<1x128xf32>
      %cst_77 = arith.constant dense<0.000000e+00> : vector<128xf32>
      %180 = vector.multi_reduction <add>, %178, %cst_77 [0] : vector<32x128xf32> to vector<128xf32>
      %181 = vector.shape_cast %180 : vector<128xf32> to vector<1x128xf32>
      %182 = arith.addf %179, %181 : vector<1x128xf32>
      %c2_78 = arith.constant 2 : index
      %c0_79 = arith.constant 0 : index
      %183 = vector.load %arg6[%c2_78, %c0_79] : memref<16x128xf32, #tpu.memory_space<vmem>>, vector<1x128xf32>
      tpu.vector_store %arg6[%c2_78, %c0_79], %182 {strides = array<i32>} : memref<16x128xf32, #tpu.memory_space<vmem>>, vector<1x128xf32>,
      %c3_80 = arith.constant 3 : index
      %c0_81 = arith.constant 0 : index
      %184 = memref.load %arg2[%c3_80, %c0_81] : memref<16x8xf32, #tpu.memory_space<smem>>
      %185 = vector.broadcast %184 : f32 to vector<32x128xf32>
      %186 = arith.mulf %16, %185 : vector<32x128xf32>
      %c3_82 = arith.constant 3 : index
      %c1_83 = arith.constant 1 : index
      %187 = memref.load %arg2[%c3_82, %c1_83] : memref<16x8xf32, #tpu.memory_space<smem>>
      %188 = vector.broadcast %187 : f32 to vector<32x128xf32>
      %189 = arith.mulf %19, %188 : vector<32x128xf32>
      %190 = arith.addf %186, %189 : vector<32x128xf32>
      %c3_84 = arith.constant 3 : index
      %c2_85 = arith.constant 2 : index
      %191 = memref.load %arg2[%c3_84, %c2_85] : memref<16x8xf32, #tpu.memory_space<smem>>
      %192 = vector.broadcast %191 : f32 to vector<32x128xf32>
      %193 = arith.mulf %22, %192 : vector<32x128xf32>
      %194 = arith.addf %190, %193 : vector<32x128xf32>
      %c3_86 = arith.constant 3 : index
      %c3_87 = arith.constant 3 : index
      %195 = memref.load %arg2[%c3_86, %c3_87] : memref<16x8xf32, #tpu.memory_space<smem>>
      %196 = vector.broadcast %195 : f32 to vector<32x128xf32>
      %197 = arith.mulf %25, %196 : vector<32x128xf32>
      %198 = arith.addf %194, %197 : vector<32x128xf32>
      %c3_88 = arith.constant 3 : index
      %c4_89 = arith.constant 4 : index
      %199 = memref.load %arg2[%c3_88, %c4_89] : memref<16x8xf32, #tpu.memory_space<smem>>
      %200 = vector.broadcast %199 : f32 to vector<32x128xf32>
      %201 = arith.mulf %28, %200 : vector<32x128xf32>
      %202 = arith.addf %198, %201 : vector<32x128xf32>
      %c3_90 = arith.constant 3 : index
      %c5_91 = arith.constant 5 : index
      %203 = memref.load %arg2[%c3_90, %c5_91] : memref<16x8xf32, #tpu.memory_space<smem>>
      %204 = vector.broadcast %203 : f32 to vector<32x128xf32>
      %205 = arith.mulf %31, %204 : vector<32x128xf32>
      %206 = arith.addf %202, %205 : vector<32x128xf32>
      %c3_92 = arith.constant 3 : index
      %c6_93 = arith.constant 6 : index
      %207 = memref.load %arg2[%c3_92, %c6_93] : memref<16x8xf32, #tpu.memory_space<smem>>
      %208 = vector.broadcast %207 : f32 to vector<32x128xf32>
      %209 = arith.mulf %34, %208 : vector<32x128xf32>
      %210 = arith.addf %206, %209 : vector<32x128xf32>
      %c3_94 = arith.constant 3 : index
      %c7_95 = arith.constant 7 : index
      %211 = memref.load %arg2[%c3_94, %c7_95] : memref<16x8xf32, #tpu.memory_space<smem>>
      %212 = vector.broadcast %211 : f32 to vector<32x128xf32>
      %213 = arith.mulf %37, %212 : vector<32x128xf32>
      %214 = arith.addf %210, %213 : vector<32x128xf32>
      %c3_96 = arith.constant 3 : index
      %215 = memref.load %arg3[%c3_96] : memref<16xf32, #tpu.memory_space<smem>>
      %216 = vector.broadcast %215 : f32 to vector<32x128xf32>
      %217 = arith.addf %214, %216 : vector<32x128xf32>
      %cst_97 = arith.constant 0.000000e+00 : f32
      %218 = vector.broadcast %cst_97 : f32 to vector<32x128xf32>
      %219 = arith.maximumf %217, %218 : vector<32x128xf32>
      %220 = arith.mulf %48, %219 : vector<32x128xf32>
      %221 = vector.extract_strided_slice %12 {offsets = [0, 3], sizes = [32, 1], strides = [1, 1]} : vector<32x16xf32> to vector<32x1xf32>
      %222 = vector.broadcast %221 : vector<32x1xf32> to vector<32x128xf32>
      %223 = arith.mulf %220, %222 : vector<32x128xf32>
      %c3_98 = arith.constant 3 : index
      %c0_99 = arith.constant 0 : index
      %224 = vector.load %arg6[%c3_98, %c0_99] : memref<16x128xf32, #tpu.memory_space<vmem>>, vector<1x128xf32>
      %cst_100 = arith.constant dense<0.000000e+00> : vector<128xf32>
      %225 = vector.multi_reduction <add>, %223, %cst_100 [0] : vector<32x128xf32> to vector<128xf32>
      %226 = vector.shape_cast %225 : vector<128xf32> to vector<1x128xf32>
      %227 = arith.addf %224, %226 : vector<1x128xf32>
      %c3_101 = arith.constant 3 : index
      %c0_102 = arith.constant 0 : index
      %228 = vector.load %arg6[%c3_101, %c0_102] : memref<16x128xf32, #tpu.memory_space<vmem>>, vector<1x128xf32>
      tpu.vector_store %arg6[%c3_101, %c0_102], %227 {strides = array<i32>} : memref<16x128xf32, #tpu.memory_space<vmem>>, vector<1x128xf32>,
      %c4_103 = arith.constant 4 : index
      %c0_104 = arith.constant 0 : index
      %229 = memref.load %arg2[%c4_103, %c0_104] : memref<16x8xf32, #tpu.memory_space<smem>>
      %230 = vector.broadcast %229 : f32 to vector<32x128xf32>
      %231 = arith.mulf %16, %230 : vector<32x128xf32>
      %c4_105 = arith.constant 4 : index
      %c1_106 = arith.constant 1 : index
      %232 = memref.load %arg2[%c4_105, %c1_106] : memref<16x8xf32, #tpu.memory_space<smem>>
      %233 = vector.broadcast %232 : f32 to vector<32x128xf32>
      %234 = arith.mulf %19, %233 : vector<32x128xf32>
      %235 = arith.addf %231, %234 : vector<32x128xf32>
      %c4_107 = arith.constant 4 : index
      %c2_108 = arith.constant 2 : index
      %236 = memref.load %arg2[%c4_107, %c2_108] : memref<16x8xf32, #tpu.memory_space<smem>>
      %237 = vector.broadcast %236 : f32 to vector<32x128xf32>
      %238 = arith.mulf %22, %237 : vector<32x128xf32>
      %239 = arith.addf %235, %238 : vector<32x128xf32>
      %c4_109 = arith.constant 4 : index
      %c3_110 = arith.constant 3 : index
      %240 = memref.load %arg2[%c4_109, %c3_110] : memref<16x8xf32, #tpu.memory_space<smem>>
      %241 = vector.broadcast %240 : f32 to vector<32x128xf32>
      %242 = arith.mulf %25, %241 : vector<32x128xf32>
      %243 = arith.addf %239, %242 : vector<32x128xf32>
      %c4_111 = arith.constant 4 : index
      %c4_112 = arith.constant 4 : index
      %244 = memref.load %arg2[%c4_111, %c4_112] : memref<16x8xf32, #tpu.memory_space<smem>>
      %245 = vector.broadcast %244 : f32 to vector<32x128xf32>
      %246 = arith.mulf %28, %245 : vector<32x128xf32>
      %247 = arith.addf %243, %246 : vector<32x128xf32>
      %c4_113 = arith.constant 4 : index
      %c5_114 = arith.constant 5 : index
      %248 = memref.load %arg2[%c4_113, %c5_114] : memref<16x8xf32, #tpu.memory_space<smem>>
      %249 = vector.broadcast %248 : f32 to vector<32x128xf32>
      %250 = arith.mulf %31, %249 : vector<32x128xf32>
      %251 = arith.addf %247, %250 : vector<32x128xf32>
      %c4_115 = arith.constant 4 : index
      %c6_116 = arith.constant 6 : index
      %252 = memref.load %arg2[%c4_115, %c6_116] : memref<16x8xf32, #tpu.memory_space<smem>>
      %253 = vector.broadcast %252 : f32 to vector<32x128xf32>
      %254 = arith.mulf %34, %253 : vector<32x128xf32>
      %255 = arith.addf %251, %254 : vector<32x128xf32>
      %c4_117 = arith.constant 4 : index
      %c7_118 = arith.constant 7 : index
      %256 = memref.load %arg2[%c4_117, %c7_118] : memref<16x8xf32, #tpu.memory_space<smem>>
      %257 = vector.broadcast %256 : f32 to vector<32x128xf32>
      %258 = arith.mulf %37, %257 : vector<32x128xf32>
      %259 = arith.addf %255, %258 : vector<32x128xf32>
      %c4_119 = arith.constant 4 : index
      %260 = memref.load %arg3[%c4_119] : memref<16xf32, #tpu.memory_space<smem>>
      %261 = vector.broadcast %260 : f32 to vector<32x128xf32>
      %262 = arith.addf %259, %261 : vector<32x128xf32>
      %cst_120 = arith.constant 0.000000e+00 : f32
      %263 = vector.broadcast %cst_120 : f32 to vector<32x128xf32>
      %264 = arith.maximumf %262, %263 : vector<32x128xf32>
      %265 = arith.mulf %48, %264 : vector<32x128xf32>
      %266 = vector.extract_strided_slice %12 {offsets = [0, 4], sizes = [32, 1], strides = [1, 1]} : vector<32x16xf32> to vector<32x1xf32>
      %267 = vector.broadcast %266 : vector<32x1xf32> to vector<32x128xf32>
      %268 = arith.mulf %265, %267 : vector<32x128xf32>
      %c4_121 = arith.constant 4 : index
      %c0_122 = arith.constant 0 : index
      %269 = vector.load %arg6[%c4_121, %c0_122] : memref<16x128xf32, #tpu.memory_space<vmem>>, vector<1x128xf32>
      %cst_123 = arith.constant dense<0.000000e+00> : vector<128xf32>
      %270 = vector.multi_reduction <add>, %268, %cst_123 [0] : vector<32x128xf32> to vector<128xf32>
      %271 = vector.shape_cast %270 : vector<128xf32> to vector<1x128xf32>
      %272 = arith.addf %269, %271 : vector<1x128xf32>
      %c4_124 = arith.constant 4 : index
      %c0_125 = arith.constant 0 : index
      %273 = vector.load %arg6[%c4_124, %c0_125] : memref<16x128xf32, #tpu.memory_space<vmem>>, vector<1x128xf32>
      tpu.vector_store %arg6[%c4_124, %c0_125], %272 {strides = array<i32>} : memref<16x128xf32, #tpu.memory_space<vmem>>, vector<1x128xf32>,
      %c5_126 = arith.constant 5 : index
      %c0_127 = arith.constant 0 : index
      %274 = memref.load %arg2[%c5_126, %c0_127] : memref<16x8xf32, #tpu.memory_space<smem>>
      %275 = vector.broadcast %274 : f32 to vector<32x128xf32>
      %276 = arith.mulf %16, %275 : vector<32x128xf32>
      %c5_128 = arith.constant 5 : index
      %c1_129 = arith.constant 1 : index
      %277 = memref.load %arg2[%c5_128, %c1_129] : memref<16x8xf32, #tpu.memory_space<smem>>
      %278 = vector.broadcast %277 : f32 to vector<32x128xf32>
      %279 = arith.mulf %19, %278 : vector<32x128xf32>
      %280 = arith.addf %276, %279 : vector<32x128xf32>
      %c5_130 = arith.constant 5 : index
      %c2_131 = arith.constant 2 : index
      %281 = memref.load %arg2[%c5_130, %c2_131] : memref<16x8xf32, #tpu.memory_space<smem>>
      %282 = vector.broadcast %281 : f32 to vector<32x128xf32>
      %283 = arith.mulf %22, %282 : vector<32x128xf32>
      %284 = arith.addf %280, %283 : vector<32x128xf32>
      %c5_132 = arith.constant 5 : index
      %c3_133 = arith.constant 3 : index
      %285 = memref.load %arg2[%c5_132, %c3_133] : memref<16x8xf32, #tpu.memory_space<smem>>
      %286 = vector.broadcast %285 : f32 to vector<32x128xf32>
      %287 = arith.mulf %25, %286 : vector<32x128xf32>
      %288 = arith.addf %284, %287 : vector<32x128xf32>
      %c5_134 = arith.constant 5 : index
      %c4_135 = arith.constant 4 : index
      %289 = memref.load %arg2[%c5_134, %c4_135] : memref<16x8xf32, #tpu.memory_space<smem>>
      %290 = vector.broadcast %289 : f32 to vector<32x128xf32>
      %291 = arith.mulf %28, %290 : vector<32x128xf32>
      %292 = arith.addf %288, %291 : vector<32x128xf32>
      %c5_136 = arith.constant 5 : index
      %c5_137 = arith.constant 5 : index
      %293 = memref.load %arg2[%c5_136, %c5_137] : memref<16x8xf32, #tpu.memory_space<smem>>
      %294 = vector.broadcast %293 : f32 to vector<32x128xf32>
      %295 = arith.mulf %31, %294 : vector<32x128xf32>
      %296 = arith.addf %292, %295 : vector<32x128xf32>
      %c5_138 = arith.constant 5 : index
      %c6_139 = arith.constant 6 : index
      %297 = memref.load %arg2[%c5_138, %c6_139] : memref<16x8xf32, #tpu.memory_space<smem>>
      %298 = vector.broadcast %297 : f32 to vector<32x128xf32>
      %299 = arith.mulf %34, %298 : vector<32x128xf32>
      %300 = arith.addf %296, %299 : vector<32x128xf32>
      %c5_140 = arith.constant 5 : index
      %c7_141 = arith.constant 7 : index
      %301 = memref.load %arg2[%c5_140, %c7_141] : memref<16x8xf32, #tpu.memory_space<smem>>
      %302 = vector.broadcast %301 : f32 to vector<32x128xf32>
      %303 = arith.mulf %37, %302 : vector<32x128xf32>
      %304 = arith.addf %300, %303 : vector<32x128xf32>
      %c5_142 = arith.constant 5 : index
      %305 = memref.load %arg3[%c5_142] : memref<16xf32, #tpu.memory_space<smem>>
      %306 = vector.broadcast %305 : f32 to vector<32x128xf32>
      %307 = arith.addf %304, %306 : vector<32x128xf32>
      %cst_143 = arith.constant 0.000000e+00 : f32
      %308 = vector.broadcast %cst_143 : f32 to vector<32x128xf32>
      %309 = arith.maximumf %307, %308 : vector<32x128xf32>
      %310 = arith.mulf %48, %309 : vector<32x128xf32>
      %311 = vector.extract_strided_slice %12 {offsets = [0, 5], sizes = [32, 1], strides = [1, 1]} : vector<32x16xf32> to vector<32x1xf32>
      %312 = vector.broadcast %311 : vector<32x1xf32> to vector<32x128xf32>
      %313 = arith.mulf %310, %312 : vector<32x128xf32>
      %c5_144 = arith.constant 5 : index
      %c0_145 = arith.constant 0 : index
      %314 = vector.load %arg6[%c5_144, %c0_145] : memref<16x128xf32, #tpu.memory_space<vmem>>, vector<1x128xf32>
      %cst_146 = arith.constant dense<0.000000e+00> : vector<128xf32>
      %315 = vector.multi_reduction <add>, %313, %cst_146 [0] : vector<32x128xf32> to vector<128xf32>
      %316 = vector.shape_cast %315 : vector<128xf32> to vector<1x128xf32>
      %317 = arith.addf %314, %316 : vector<1x128xf32>
      %c5_147 = arith.constant 5 : index
      %c0_148 = arith.constant 0 : index
      %318 = vector.load %arg6[%c5_147, %c0_148] : memref<16x128xf32, #tpu.memory_space<vmem>>, vector<1x128xf32>
      tpu.vector_store %arg6[%c5_147, %c0_148], %317 {strides = array<i32>} : memref<16x128xf32, #tpu.memory_space<vmem>>, vector<1x128xf32>,
      %c6_149 = arith.constant 6 : index
      %c0_150 = arith.constant 0 : index
      %319 = memref.load %arg2[%c6_149, %c0_150] : memref<16x8xf32, #tpu.memory_space<smem>>
      %320 = vector.broadcast %319 : f32 to vector<32x128xf32>
      %321 = arith.mulf %16, %320 : vector<32x128xf32>
      %c6_151 = arith.constant 6 : index
      %c1_152 = arith.constant 1 : index
      %322 = memref.load %arg2[%c6_151, %c1_152] : memref<16x8xf32, #tpu.memory_space<smem>>
      %323 = vector.broadcast %322 : f32 to vector<32x128xf32>
      %324 = arith.mulf %19, %323 : vector<32x128xf32>
      %325 = arith.addf %321, %324 : vector<32x128xf32>
      %c6_153 = arith.constant 6 : index
      %c2_154 = arith.constant 2 : index
      %326 = memref.load %arg2[%c6_153, %c2_154] : memref<16x8xf32, #tpu.memory_space<smem>>
      %327 = vector.broadcast %326 : f32 to vector<32x128xf32>
      %328 = arith.mulf %22, %327 : vector<32x128xf32>
      %329 = arith.addf %325, %328 : vector<32x128xf32>
      %c6_155 = arith.constant 6 : index
      %c3_156 = arith.constant 3 : index
      %330 = memref.load %arg2[%c6_155, %c3_156] : memref<16x8xf32, #tpu.memory_space<smem>>
      %331 = vector.broadcast %330 : f32 to vector<32x128xf32>
      %332 = arith.mulf %25, %331 : vector<32x128xf32>
      %333 = arith.addf %329, %332 : vector<32x128xf32>
      %c6_157 = arith.constant 6 : index
      %c4_158 = arith.constant 4 : index
      %334 = memref.load %arg2[%c6_157, %c4_158] : memref<16x8xf32, #tpu.memory_space<smem>>
      %335 = vector.broadcast %334 : f32 to vector<32x128xf32>
      %336 = arith.mulf %28, %335 : vector<32x128xf32>
      %337 = arith.addf %333, %336 : vector<32x128xf32>
      %c6_159 = arith.constant 6 : index
      %c5_160 = arith.constant 5 : index
      %338 = memref.load %arg2[%c6_159, %c5_160] : memref<16x8xf32, #tpu.memory_space<smem>>
      %339 = vector.broadcast %338 : f32 to vector<32x128xf32>
      %340 = arith.mulf %31, %339 : vector<32x128xf32>
      %341 = arith.addf %337, %340 : vector<32x128xf32>
      %c6_161 = arith.constant 6 : index
      %c6_162 = arith.constant 6 : index
      %342 = memref.load %arg2[%c6_161, %c6_162] : memref<16x8xf32, #tpu.memory_space<smem>>
      %343 = vector.broadcast %342 : f32 to vector<32x128xf32>
      %344 = arith.mulf %34, %343 : vector<32x128xf32>
      %345 = arith.addf %341, %344 : vector<32x128xf32>
      %c6_163 = arith.constant 6 : index
      %c7_164 = arith.constant 7 : index
      %346 = memref.load %arg2[%c6_163, %c7_164] : memref<16x8xf32, #tpu.memory_space<smem>>
      %347 = vector.broadcast %346 : f32 to vector<32x128xf32>
      %348 = arith.mulf %37, %347 : vector<32x128xf32>
      %349 = arith.addf %345, %348 : vector<32x128xf32>
      %c6_165 = arith.constant 6 : index
      %350 = memref.load %arg3[%c6_165] : memref<16xf32, #tpu.memory_space<smem>>
      %351 = vector.broadcast %350 : f32 to vector<32x128xf32>
      %352 = arith.addf %349, %351 : vector<32x128xf32>
      %cst_166 = arith.constant 0.000000e+00 : f32
      %353 = vector.broadcast %cst_166 : f32 to vector<32x128xf32>
      %354 = arith.maximumf %352, %353 : vector<32x128xf32>
      %355 = arith.mulf %48, %354 : vector<32x128xf32>
      %356 = vector.extract_strided_slice %12 {offsets = [0, 6], sizes = [32, 1], strides = [1, 1]} : vector<32x16xf32> to vector<32x1xf32>
      %357 = vector.broadcast %356 : vector<32x1xf32> to vector<32x128xf32>
      %358 = arith.mulf %355, %357 : vector<32x128xf32>
      %c6_167 = arith.constant 6 : index
      %c0_168 = arith.constant 0 : index
      %359 = vector.load %arg6[%c6_167, %c0_168] : memref<16x128xf32, #tpu.memory_space<vmem>>, vector<1x128xf32>
      %cst_169 = arith.constant dense<0.000000e+00> : vector<128xf32>
      %360 = vector.multi_reduction <add>, %358, %cst_169 [0] : vector<32x128xf32> to vector<128xf32>
      %361 = vector.shape_cast %360 : vector<128xf32> to vector<1x128xf32>
      %362 = arith.addf %359, %361 : vector<1x128xf32>
      %c6_170 = arith.constant 6 : index
      %c0_171 = arith.constant 0 : index
      %363 = vector.load %arg6[%c6_170, %c0_171] : memref<16x128xf32, #tpu.memory_space<vmem>>, vector<1x128xf32>
      tpu.vector_store %arg6[%c6_170, %c0_171], %362 {strides = array<i32>} : memref<16x128xf32, #tpu.memory_space<vmem>>, vector<1x128xf32>,
      %c7_172 = arith.constant 7 : index
      %c0_173 = arith.constant 0 : index
      %364 = memref.load %arg2[%c7_172, %c0_173] : memref<16x8xf32, #tpu.memory_space<smem>>
      %365 = vector.broadcast %364 : f32 to vector<32x128xf32>
      %366 = arith.mulf %16, %365 : vector<32x128xf32>
      %c7_174 = arith.constant 7 : index
      %c1_175 = arith.constant 1 : index
      %367 = memref.load %arg2[%c7_174, %c1_175] : memref<16x8xf32, #tpu.memory_space<smem>>
      %368 = vector.broadcast %367 : f32 to vector<32x128xf32>
      %369 = arith.mulf %19, %368 : vector<32x128xf32>
      %370 = arith.addf %366, %369 : vector<32x128xf32>
      %c7_176 = arith.constant 7 : index
      %c2_177 = arith.constant 2 : index
      %371 = memref.load %arg2[%c7_176, %c2_177] : memref<16x8xf32, #tpu.memory_space<smem>>
      %372 = vector.broadcast %371 : f32 to vector<32x128xf32>
      %373 = arith.mulf %22, %372 : vector<32x128xf32>
      %374 = arith.addf %370, %373 : vector<32x128xf32>
      %c7_178 = arith.constant 7 : index
      %c3_179 = arith.constant 3 : index
      %375 = memref.load %arg2[%c7_178, %c3_179] : memref<16x8xf32, #tpu.memory_space<smem>>
      %376 = vector.broadcast %375 : f32 to vector<32x128xf32>
      %377 = arith.mulf %25, %376 : vector<32x128xf32>
      %378 = arith.addf %374, %377 : vector<32x128xf32>
      %c7_180 = arith.constant 7 : index
      %c4_181 = arith.constant 4 : index
      %379 = memref.load %arg2[%c7_180, %c4_181] : memref<16x8xf32, #tpu.memory_space<smem>>
      %380 = vector.broadcast %379 : f32 to vector<32x128xf32>
      %381 = arith.mulf %28, %380 : vector<32x128xf32>
      %382 = arith.addf %378, %381 : vector<32x128xf32>
      %c7_182 = arith.constant 7 : index
      %c5_183 = arith.constant 5 : index
      %383 = memref.load %arg2[%c7_182, %c5_183] : memref<16x8xf32, #tpu.memory_space<smem>>
      %384 = vector.broadcast %383 : f32 to vector<32x128xf32>
      %385 = arith.mulf %31, %384 : vector<32x128xf32>
      %386 = arith.addf %382, %385 : vector<32x128xf32>
      %c7_184 = arith.constant 7 : index
      %c6_185 = arith.constant 6 : index
      %387 = memref.load %arg2[%c7_184, %c6_185] : memref<16x8xf32, #tpu.memory_space<smem>>
      %388 = vector.broadcast %387 : f32 to vector<32x128xf32>
      %389 = arith.mulf %34, %388 : vector<32x128xf32>
      %390 = arith.addf %386, %389 : vector<32x128xf32>
      %c7_186 = arith.constant 7 : index
      %c7_187 = arith.constant 7 : index
      %391 = memref.load %arg2[%c7_186, %c7_187] : memref<16x8xf32, #tpu.memory_space<smem>>
      %392 = vector.broadcast %391 : f32 to vector<32x128xf32>
      %393 = arith.mulf %37, %392 : vector<32x128xf32>
      %394 = arith.addf %390, %393 : vector<32x128xf32>
      %c7_188 = arith.constant 7 : index
      %395 = memref.load %arg3[%c7_188] : memref<16xf32, #tpu.memory_space<smem>>
      %396 = vector.broadcast %395 : f32 to vector<32x128xf32>
      %397 = arith.addf %394, %396 : vector<32x128xf32>
      %cst_189 = arith.constant 0.000000e+00 : f32
      %398 = vector.broadcast %cst_189 : f32 to vector<32x128xf32>
      %399 = arith.maximumf %397, %398 : vector<32x128xf32>
      %400 = arith.mulf %48, %399 : vector<32x128xf32>
      %401 = vector.extract_strided_slice %12 {offsets = [0, 7], sizes = [32, 1], strides = [1, 1]} : vector<32x16xf32> to vector<32x1xf32>
      %402 = vector.broadcast %401 : vector<32x1xf32> to vector<32x128xf32>
      %403 = arith.mulf %400, %402 : vector<32x128xf32>
      %c7_190 = arith.constant 7 : index
      %c0_191 = arith.constant 0 : index
      %404 = vector.load %arg6[%c7_190, %c0_191] : memref<16x128xf32, #tpu.memory_space<vmem>>, vector<1x128xf32>
      %cst_192 = arith.constant dense<0.000000e+00> : vector<128xf32>
      %405 = vector.multi_reduction <add>, %403, %cst_192 [0] : vector<32x128xf32> to vector<128xf32>
      %406 = vector.shape_cast %405 : vector<128xf32> to vector<1x128xf32>
      %407 = arith.addf %404, %406 : vector<1x128xf32>
      %c7_193 = arith.constant 7 : index
      %c0_194 = arith.constant 0 : index
      %408 = vector.load %arg6[%c7_193, %c0_194] : memref<16x128xf32, #tpu.memory_space<vmem>>, vector<1x128xf32>
      tpu.vector_store %arg6[%c7_193, %c0_194], %407 {strides = array<i32>} : memref<16x128xf32, #tpu.memory_space<vmem>>, vector<1x128xf32>,
      %c8 = arith.constant 8 : index
      %c0_195 = arith.constant 0 : index
      %409 = memref.load %arg2[%c8, %c0_195] : memref<16x8xf32, #tpu.memory_space<smem>>
      %410 = vector.broadcast %409 : f32 to vector<32x128xf32>
      %411 = arith.mulf %16, %410 : vector<32x128xf32>
      %c8_196 = arith.constant 8 : index
      %c1_197 = arith.constant 1 : index
      %412 = memref.load %arg2[%c8_196, %c1_197] : memref<16x8xf32, #tpu.memory_space<smem>>
      %413 = vector.broadcast %412 : f32 to vector<32x128xf32>
      %414 = arith.mulf %19, %413 : vector<32x128xf32>
      %415 = arith.addf %411, %414 : vector<32x128xf32>
      %c8_198 = arith.constant 8 : index
      %c2_199 = arith.constant 2 : index
      %416 = memref.load %arg2[%c8_198, %c2_199] : memref<16x8xf32, #tpu.memory_space<smem>>
      %417 = vector.broadcast %416 : f32 to vector<32x128xf32>
      %418 = arith.mulf %22, %417 : vector<32x128xf32>
      %419 = arith.addf %415, %418 : vector<32x128xf32>
      %c8_200 = arith.constant 8 : index
      %c3_201 = arith.constant 3 : index
      %420 = memref.load %arg2[%c8_200, %c3_201] : memref<16x8xf32, #tpu.memory_space<smem>>
      %421 = vector.broadcast %420 : f32 to vector<32x128xf32>
      %422 = arith.mulf %25, %421 : vector<32x128xf32>
      %423 = arith.addf %419, %422 : vector<32x128xf32>
      %c8_202 = arith.constant 8 : index
      %c4_203 = arith.constant 4 : index
      %424 = memref.load %arg2[%c8_202, %c4_203] : memref<16x8xf32, #tpu.memory_space<smem>>
      %425 = vector.broadcast %424 : f32 to vector<32x128xf32>
      %426 = arith.mulf %28, %425 : vector<32x128xf32>
      %427 = arith.addf %423, %426 : vector<32x128xf32>
      %c8_204 = arith.constant 8 : index
      %c5_205 = arith.constant 5 : index
      %428 = memref.load %arg2[%c8_204, %c5_205] : memref<16x8xf32, #tpu.memory_space<smem>>
      %429 = vector.broadcast %428 : f32 to vector<32x128xf32>
      %430 = arith.mulf %31, %429 : vector<32x128xf32>
      %431 = arith.addf %427, %430 : vector<32x128xf32>
      %c8_206 = arith.constant 8 : index
      %c6_207 = arith.constant 6 : index
      %432 = memref.load %arg2[%c8_206, %c6_207] : memref<16x8xf32, #tpu.memory_space<smem>>
      %433 = vector.broadcast %432 : f32 to vector<32x128xf32>
      %434 = arith.mulf %34, %433 : vector<32x128xf32>
      %435 = arith.addf %431, %434 : vector<32x128xf32>
      %c8_208 = arith.constant 8 : index
      %c7_209 = arith.constant 7 : index
      %436 = memref.load %arg2[%c8_208, %c7_209] : memref<16x8xf32, #tpu.memory_space<smem>>
      %437 = vector.broadcast %436 : f32 to vector<32x128xf32>
      %438 = arith.mulf %37, %437 : vector<32x128xf32>
      %439 = arith.addf %435, %438 : vector<32x128xf32>
      %c8_210 = arith.constant 8 : index
      %440 = memref.load %arg3[%c8_210] : memref<16xf32, #tpu.memory_space<smem>>
      %441 = vector.broadcast %440 : f32 to vector<32x128xf32>
      %442 = arith.addf %439, %441 : vector<32x128xf32>
      %cst_211 = arith.constant 0.000000e+00 : f32
      %443 = vector.broadcast %cst_211 : f32 to vector<32x128xf32>
      %444 = arith.maximumf %442, %443 : vector<32x128xf32>
      %445 = arith.mulf %48, %444 : vector<32x128xf32>
      %446 = vector.extract_strided_slice %12 {offsets = [0, 8], sizes = [32, 1], strides = [1, 1]} : vector<32x16xf32> to vector<32x1xf32>
      %447 = vector.broadcast %446 : vector<32x1xf32> to vector<32x128xf32>
      %448 = arith.mulf %445, %447 : vector<32x128xf32>
      %c8_212 = arith.constant 8 : index
      %c0_213 = arith.constant 0 : index
      %449 = vector.load %arg6[%c8_212, %c0_213] : memref<16x128xf32, #tpu.memory_space<vmem>>, vector<1x128xf32>
      %cst_214 = arith.constant dense<0.000000e+00> : vector<128xf32>
      %450 = vector.multi_reduction <add>, %448, %cst_214 [0] : vector<32x128xf32> to vector<128xf32>
      %451 = vector.shape_cast %450 : vector<128xf32> to vector<1x128xf32>
      %452 = arith.addf %449, %451 : vector<1x128xf32>
      %c8_215 = arith.constant 8 : index
      %c0_216 = arith.constant 0 : index
      %453 = vector.load %arg6[%c8_215, %c0_216] : memref<16x128xf32, #tpu.memory_space<vmem>>, vector<1x128xf32>
      tpu.vector_store %arg6[%c8_215, %c0_216], %452 {strides = array<i32>} : memref<16x128xf32, #tpu.memory_space<vmem>>, vector<1x128xf32>,
      %c9 = arith.constant 9 : index
      %c0_217 = arith.constant 0 : index
      %454 = memref.load %arg2[%c9, %c0_217] : memref<16x8xf32, #tpu.memory_space<smem>>
      %455 = vector.broadcast %454 : f32 to vector<32x128xf32>
      %456 = arith.mulf %16, %455 : vector<32x128xf32>
      %c9_218 = arith.constant 9 : index
      %c1_219 = arith.constant 1 : index
      %457 = memref.load %arg2[%c9_218, %c1_219] : memref<16x8xf32, #tpu.memory_space<smem>>
      %458 = vector.broadcast %457 : f32 to vector<32x128xf32>
      %459 = arith.mulf %19, %458 : vector<32x128xf32>
      %460 = arith.addf %456, %459 : vector<32x128xf32>
      %c9_220 = arith.constant 9 : index
      %c2_221 = arith.constant 2 : index
      %461 = memref.load %arg2[%c9_220, %c2_221] : memref<16x8xf32, #tpu.memory_space<smem>>
      %462 = vector.broadcast %461 : f32 to vector<32x128xf32>
      %463 = arith.mulf %22, %462 : vector<32x128xf32>
      %464 = arith.addf %460, %463 : vector<32x128xf32>
      %c9_222 = arith.constant 9 : index
      %c3_223 = arith.constant 3 : index
      %465 = memref.load %arg2[%c9_222, %c3_223] : memref<16x8xf32, #tpu.memory_space<smem>>
      %466 = vector.broadcast %465 : f32 to vector<32x128xf32>
      %467 = arith.mulf %25, %466 : vector<32x128xf32>
      %468 = arith.addf %464, %467 : vector<32x128xf32>
      %c9_224 = arith.constant 9 : index
      %c4_225 = arith.constant 4 : index
      %469 = memref.load %arg2[%c9_224, %c4_225] : memref<16x8xf32, #tpu.memory_space<smem>>
      %470 = vector.broadcast %469 : f32 to vector<32x128xf32>
      %471 = arith.mulf %28, %470 : vector<32x128xf32>
      %472 = arith.addf %468, %471 : vector<32x128xf32>
      %c9_226 = arith.constant 9 : index
      %c5_227 = arith.constant 5 : index
      %473 = memref.load %arg2[%c9_226, %c5_227] : memref<16x8xf32, #tpu.memory_space<smem>>
      %474 = vector.broadcast %473 : f32 to vector<32x128xf32>
      %475 = arith.mulf %31, %474 : vector<32x128xf32>
      %476 = arith.addf %472, %475 : vector<32x128xf32>
      %c9_228 = arith.constant 9 : index
      %c6_229 = arith.constant 6 : index
      %477 = memref.load %arg2[%c9_228, %c6_229] : memref<16x8xf32, #tpu.memory_space<smem>>
      %478 = vector.broadcast %477 : f32 to vector<32x128xf32>
      %479 = arith.mulf %34, %478 : vector<32x128xf32>
      %480 = arith.addf %476, %479 : vector<32x128xf32>
      %c9_230 = arith.constant 9 : index
      %c7_231 = arith.constant 7 : index
      %481 = memref.load %arg2[%c9_230, %c7_231] : memref<16x8xf32, #tpu.memory_space<smem>>
      %482 = vector.broadcast %481 : f32 to vector<32x128xf32>
      %483 = arith.mulf %37, %482 : vector<32x128xf32>
      %484 = arith.addf %480, %483 : vector<32x128xf32>
      %c9_232 = arith.constant 9 : index
      %485 = memref.load %arg3[%c9_232] : memref<16xf32, #tpu.memory_space<smem>>
      %486 = vector.broadcast %485 : f32 to vector<32x128xf32>
      %487 = arith.addf %484, %486 : vector<32x128xf32>
      %cst_233 = arith.constant 0.000000e+00 : f32
      %488 = vector.broadcast %cst_233 : f32 to vector<32x128xf32>
      %489 = arith.maximumf %487, %488 : vector<32x128xf32>
      %490 = arith.mulf %48, %489 : vector<32x128xf32>
      %491 = vector.extract_strided_slice %12 {offsets = [0, 9], sizes = [32, 1], strides = [1, 1]} : vector<32x16xf32> to vector<32x1xf32>
      %492 = vector.broadcast %491 : vector<32x1xf32> to vector<32x128xf32>
      %493 = arith.mulf %490, %492 : vector<32x128xf32>
      %c9_234 = arith.constant 9 : index
      %c0_235 = arith.constant 0 : index
      %494 = vector.load %arg6[%c9_234, %c0_235] : memref<16x128xf32, #tpu.memory_space<vmem>>, vector<1x128xf32>
      %cst_236 = arith.constant dense<0.000000e+00> : vector<128xf32>
      %495 = vector.multi_reduction <add>, %493, %cst_236 [0] : vector<32x128xf32> to vector<128xf32>
      %496 = vector.shape_cast %495 : vector<128xf32> to vector<1x128xf32>
      %497 = arith.addf %494, %496 : vector<1x128xf32>
      %c9_237 = arith.constant 9 : index
      %c0_238 = arith.constant 0 : index
      %498 = vector.load %arg6[%c9_237, %c0_238] : memref<16x128xf32, #tpu.memory_space<vmem>>, vector<1x128xf32>
      tpu.vector_store %arg6[%c9_237, %c0_238], %497 {strides = array<i32>} : memref<16x128xf32, #tpu.memory_space<vmem>>, vector<1x128xf32>,
      %c10 = arith.constant 10 : index
      %c0_239 = arith.constant 0 : index
      %499 = memref.load %arg2[%c10, %c0_239] : memref<16x8xf32, #tpu.memory_space<smem>>
      %500 = vector.broadcast %499 : f32 to vector<32x128xf32>
      %501 = arith.mulf %16, %500 : vector<32x128xf32>
      %c10_240 = arith.constant 10 : index
      %c1_241 = arith.constant 1 : index
      %502 = memref.load %arg2[%c10_240, %c1_241] : memref<16x8xf32, #tpu.memory_space<smem>>
      %503 = vector.broadcast %502 : f32 to vector<32x128xf32>
      %504 = arith.mulf %19, %503 : vector<32x128xf32>
      %505 = arith.addf %501, %504 : vector<32x128xf32>
      %c10_242 = arith.constant 10 : index
      %c2_243 = arith.constant 2 : index
      %506 = memref.load %arg2[%c10_242, %c2_243] : memref<16x8xf32, #tpu.memory_space<smem>>
      %507 = vector.broadcast %506 : f32 to vector<32x128xf32>
      %508 = arith.mulf %22, %507 : vector<32x128xf32>
      %509 = arith.addf %505, %508 : vector<32x128xf32>
      %c10_244 = arith.constant 10 : index
      %c3_245 = arith.constant 3 : index
      %510 = memref.load %arg2[%c10_244, %c3_245] : memref<16x8xf32, #tpu.memory_space<smem>>
      %511 = vector.broadcast %510 : f32 to vector<32x128xf32>
      %512 = arith.mulf %25, %511 : vector<32x128xf32>
      %513 = arith.addf %509, %512 : vector<32x128xf32>
      %c10_246 = arith.constant 10 : index
      %c4_247 = arith.constant 4 : index
      %514 = memref.load %arg2[%c10_246, %c4_247] : memref<16x8xf32, #tpu.memory_space<smem>>
      %515 = vector.broadcast %514 : f32 to vector<32x128xf32>
      %516 = arith.mulf %28, %515 : vector<32x128xf32>
      %517 = arith.addf %513, %516 : vector<32x128xf32>
      %c10_248 = arith.constant 10 : index
      %c5_249 = arith.constant 5 : index
      %518 = memref.load %arg2[%c10_248, %c5_249] : memref<16x8xf32, #tpu.memory_space<smem>>
      %519 = vector.broadcast %518 : f32 to vector<32x128xf32>
      %520 = arith.mulf %31, %519 : vector<32x128xf32>
      %521 = arith.addf %517, %520 : vector<32x128xf32>
      %c10_250 = arith.constant 10 : index
      %c6_251 = arith.constant 6 : index
      %522 = memref.load %arg2[%c10_250, %c6_251] : memref<16x8xf32, #tpu.memory_space<smem>>
      %523 = vector.broadcast %522 : f32 to vector<32x128xf32>
      %524 = arith.mulf %34, %523 : vector<32x128xf32>
      %525 = arith.addf %521, %524 : vector<32x128xf32>
      %c10_252 = arith.constant 10 : index
      %c7_253 = arith.constant 7 : index
      %526 = memref.load %arg2[%c10_252, %c7_253] : memref<16x8xf32, #tpu.memory_space<smem>>
      %527 = vector.broadcast %526 : f32 to vector<32x128xf32>
      %528 = arith.mulf %37, %527 : vector<32x128xf32>
      %529 = arith.addf %525, %528 : vector<32x128xf32>
      %c10_254 = arith.constant 10 : index
      %530 = memref.load %arg3[%c10_254] : memref<16xf32, #tpu.memory_space<smem>>
      %531 = vector.broadcast %530 : f32 to vector<32x128xf32>
      %532 = arith.addf %529, %531 : vector<32x128xf32>
      %cst_255 = arith.constant 0.000000e+00 : f32
      %533 = vector.broadcast %cst_255 : f32 to vector<32x128xf32>
      %534 = arith.maximumf %532, %533 : vector<32x128xf32>
      %535 = arith.mulf %48, %534 : vector<32x128xf32>
      %536 = vector.extract_strided_slice %12 {offsets = [0, 10], sizes = [32, 1], strides = [1, 1]} : vector<32x16xf32> to vector<32x1xf32>
      %537 = vector.broadcast %536 : vector<32x1xf32> to vector<32x128xf32>
      %538 = arith.mulf %535, %537 : vector<32x128xf32>
      %c10_256 = arith.constant 10 : index
      %c0_257 = arith.constant 0 : index
      %539 = vector.load %arg6[%c10_256, %c0_257] : memref<16x128xf32, #tpu.memory_space<vmem>>, vector<1x128xf32>
      %cst_258 = arith.constant dense<0.000000e+00> : vector<128xf32>
      %540 = vector.multi_reduction <add>, %538, %cst_258 [0] : vector<32x128xf32> to vector<128xf32>
      %541 = vector.shape_cast %540 : vector<128xf32> to vector<1x128xf32>
      %542 = arith.addf %539, %541 : vector<1x128xf32>
      %c10_259 = arith.constant 10 : index
      %c0_260 = arith.constant 0 : index
      %543 = vector.load %arg6[%c10_259, %c0_260] : memref<16x128xf32, #tpu.memory_space<vmem>>, vector<1x128xf32>
      tpu.vector_store %arg6[%c10_259, %c0_260], %542 {strides = array<i32>} : memref<16x128xf32, #tpu.memory_space<vmem>>, vector<1x128xf32>,
      %c11 = arith.constant 11 : index
      %c0_261 = arith.constant 0 : index
      %544 = memref.load %arg2[%c11, %c0_261] : memref<16x8xf32, #tpu.memory_space<smem>>
      %545 = vector.broadcast %544 : f32 to vector<32x128xf32>
      %546 = arith.mulf %16, %545 : vector<32x128xf32>
      %c11_262 = arith.constant 11 : index
      %c1_263 = arith.constant 1 : index
      %547 = memref.load %arg2[%c11_262, %c1_263] : memref<16x8xf32, #tpu.memory_space<smem>>
      %548 = vector.broadcast %547 : f32 to vector<32x128xf32>
      %549 = arith.mulf %19, %548 : vector<32x128xf32>
      %550 = arith.addf %546, %549 : vector<32x128xf32>
      %c11_264 = arith.constant 11 : index
      %c2_265 = arith.constant 2 : index
      %551 = memref.load %arg2[%c11_264, %c2_265] : memref<16x8xf32, #tpu.memory_space<smem>>
      %552 = vector.broadcast %551 : f32 to vector<32x128xf32>
      %553 = arith.mulf %22, %552 : vector<32x128xf32>
      %554 = arith.addf %550, %553 : vector<32x128xf32>
      %c11_266 = arith.constant 11 : index
      %c3_267 = arith.constant 3 : index
      %555 = memref.load %arg2[%c11_266, %c3_267] : memref<16x8xf32, #tpu.memory_space<smem>>
      %556 = vector.broadcast %555 : f32 to vector<32x128xf32>
      %557 = arith.mulf %25, %556 : vector<32x128xf32>
      %558 = arith.addf %554, %557 : vector<32x128xf32>
      %c11_268 = arith.constant 11 : index
      %c4_269 = arith.constant 4 : index
      %559 = memref.load %arg2[%c11_268, %c4_269] : memref<16x8xf32, #tpu.memory_space<smem>>
      %560 = vector.broadcast %559 : f32 to vector<32x128xf32>
      %561 = arith.mulf %28, %560 : vector<32x128xf32>
      %562 = arith.addf %558, %561 : vector<32x128xf32>
      %c11_270 = arith.constant 11 : index
      %c5_271 = arith.constant 5 : index
      %563 = memref.load %arg2[%c11_270, %c5_271] : memref<16x8xf32, #tpu.memory_space<smem>>
      %564 = vector.broadcast %563 : f32 to vector<32x128xf32>
      %565 = arith.mulf %31, %564 : vector<32x128xf32>
      %566 = arith.addf %562, %565 : vector<32x128xf32>
      %c11_272 = arith.constant 11 : index
      %c6_273 = arith.constant 6 : index
      %567 = memref.load %arg2[%c11_272, %c6_273] : memref<16x8xf32, #tpu.memory_space<smem>>
      %568 = vector.broadcast %567 : f32 to vector<32x128xf32>
      %569 = arith.mulf %34, %568 : vector<32x128xf32>
      %570 = arith.addf %566, %569 : vector<32x128xf32>
      %c11_274 = arith.constant 11 : index
      %c7_275 = arith.constant 7 : index
      %571 = memref.load %arg2[%c11_274, %c7_275] : memref<16x8xf32, #tpu.memory_space<smem>>
      %572 = vector.broadcast %571 : f32 to vector<32x128xf32>
      %573 = arith.mulf %37, %572 : vector<32x128xf32>
      %574 = arith.addf %570, %573 : vector<32x128xf32>
      %c11_276 = arith.constant 11 : index
      %575 = memref.load %arg3[%c11_276] : memref<16xf32, #tpu.memory_space<smem>>
      %576 = vector.broadcast %575 : f32 to vector<32x128xf32>
      %577 = arith.addf %574, %576 : vector<32x128xf32>
      %cst_277 = arith.constant 0.000000e+00 : f32
      %578 = vector.broadcast %cst_277 : f32 to vector<32x128xf32>
      %579 = arith.maximumf %577, %578 : vector<32x128xf32>
      %580 = arith.mulf %48, %579 : vector<32x128xf32>
      %581 = vector.extract_strided_slice %12 {offsets = [0, 11], sizes = [32, 1], strides = [1, 1]} : vector<32x16xf32> to vector<32x1xf32>
      %582 = vector.broadcast %581 : vector<32x1xf32> to vector<32x128xf32>
      %583 = arith.mulf %580, %582 : vector<32x128xf32>
      %c11_278 = arith.constant 11 : index
      %c0_279 = arith.constant 0 : index
      %584 = vector.load %arg6[%c11_278, %c0_279] : memref<16x128xf32, #tpu.memory_space<vmem>>, vector<1x128xf32>
      %cst_280 = arith.constant dense<0.000000e+00> : vector<128xf32>
      %585 = vector.multi_reduction <add>, %583, %cst_280 [0] : vector<32x128xf32> to vector<128xf32>
      %586 = vector.shape_cast %585 : vector<128xf32> to vector<1x128xf32>
      %587 = arith.addf %584, %586 : vector<1x128xf32>
      %c11_281 = arith.constant 11 : index
      %c0_282 = arith.constant 0 : index
      %588 = vector.load %arg6[%c11_281, %c0_282] : memref<16x128xf32, #tpu.memory_space<vmem>>, vector<1x128xf32>
      tpu.vector_store %arg6[%c11_281, %c0_282], %587 {strides = array<i32>} : memref<16x128xf32, #tpu.memory_space<vmem>>, vector<1x128xf32>,
      %c12 = arith.constant 12 : index
      %c0_283 = arith.constant 0 : index
      %589 = memref.load %arg2[%c12, %c0_283] : memref<16x8xf32, #tpu.memory_space<smem>>
      %590 = vector.broadcast %589 : f32 to vector<32x128xf32>
      %591 = arith.mulf %16, %590 : vector<32x128xf32>
      %c12_284 = arith.constant 12 : index
      %c1_285 = arith.constant 1 : index
      %592 = memref.load %arg2[%c12_284, %c1_285] : memref<16x8xf32, #tpu.memory_space<smem>>
      %593 = vector.broadcast %592 : f32 to vector<32x128xf32>
      %594 = arith.mulf %19, %593 : vector<32x128xf32>
      %595 = arith.addf %591, %594 : vector<32x128xf32>
      %c12_286 = arith.constant 12 : index
      %c2_287 = arith.constant 2 : index
      %596 = memref.load %arg2[%c12_286, %c2_287] : memref<16x8xf32, #tpu.memory_space<smem>>
      %597 = vector.broadcast %596 : f32 to vector<32x128xf32>
      %598 = arith.mulf %22, %597 : vector<32x128xf32>
      %599 = arith.addf %595, %598 : vector<32x128xf32>
      %c12_288 = arith.constant 12 : index
      %c3_289 = arith.constant 3 : index
      %600 = memref.load %arg2[%c12_288, %c3_289] : memref<16x8xf32, #tpu.memory_space<smem>>
      %601 = vector.broadcast %600 : f32 to vector<32x128xf32>
      %602 = arith.mulf %25, %601 : vector<32x128xf32>
      %603 = arith.addf %599, %602 : vector<32x128xf32>
      %c12_290 = arith.constant 12 : index
      %c4_291 = arith.constant 4 : index
      %604 = memref.load %arg2[%c12_290, %c4_291] : memref<16x8xf32, #tpu.memory_space<smem>>
      %605 = vector.broadcast %604 : f32 to vector<32x128xf32>
      %606 = arith.mulf %28, %605 : vector<32x128xf32>
      %607 = arith.addf %603, %606 : vector<32x128xf32>
      %c12_292 = arith.constant 12 : index
      %c5_293 = arith.constant 5 : index
      %608 = memref.load %arg2[%c12_292, %c5_293] : memref<16x8xf32, #tpu.memory_space<smem>>
      %609 = vector.broadcast %608 : f32 to vector<32x128xf32>
      %610 = arith.mulf %31, %609 : vector<32x128xf32>
      %611 = arith.addf %607, %610 : vector<32x128xf32>
      %c12_294 = arith.constant 12 : index
      %c6_295 = arith.constant 6 : index
      %612 = memref.load %arg2[%c12_294, %c6_295] : memref<16x8xf32, #tpu.memory_space<smem>>
      %613 = vector.broadcast %612 : f32 to vector<32x128xf32>
      %614 = arith.mulf %34, %613 : vector<32x128xf32>
      %615 = arith.addf %611, %614 : vector<32x128xf32>
      %c12_296 = arith.constant 12 : index
      %c7_297 = arith.constant 7 : index
      %616 = memref.load %arg2[%c12_296, %c7_297] : memref<16x8xf32, #tpu.memory_space<smem>>
      %617 = vector.broadcast %616 : f32 to vector<32x128xf32>
      %618 = arith.mulf %37, %617 : vector<32x128xf32>
      %619 = arith.addf %615, %618 : vector<32x128xf32>
      %c12_298 = arith.constant 12 : index
      %620 = memref.load %arg3[%c12_298] : memref<16xf32, #tpu.memory_space<smem>>
      %621 = vector.broadcast %620 : f32 to vector<32x128xf32>
      %622 = arith.addf %619, %621 : vector<32x128xf32>
      %cst_299 = arith.constant 0.000000e+00 : f32
      %623 = vector.broadcast %cst_299 : f32 to vector<32x128xf32>
      %624 = arith.maximumf %622, %623 : vector<32x128xf32>
      %625 = arith.mulf %48, %624 : vector<32x128xf32>
      %626 = vector.extract_strided_slice %12 {offsets = [0, 12], sizes = [32, 1], strides = [1, 1]} : vector<32x16xf32> to vector<32x1xf32>
      %627 = vector.broadcast %626 : vector<32x1xf32> to vector<32x128xf32>
      %628 = arith.mulf %625, %627 : vector<32x128xf32>
      %c12_300 = arith.constant 12 : index
      %c0_301 = arith.constant 0 : index
      %629 = vector.load %arg6[%c12_300, %c0_301] : memref<16x128xf32, #tpu.memory_space<vmem>>, vector<1x128xf32>
      %cst_302 = arith.constant dense<0.000000e+00> : vector<128xf32>
      %630 = vector.multi_reduction <add>, %628, %cst_302 [0] : vector<32x128xf32> to vector<128xf32>
      %631 = vector.shape_cast %630 : vector<128xf32> to vector<1x128xf32>
      %632 = arith.addf %629, %631 : vector<1x128xf32>
      %c12_303 = arith.constant 12 : index
      %c0_304 = arith.constant 0 : index
      %633 = vector.load %arg6[%c12_303, %c0_304] : memref<16x128xf32, #tpu.memory_space<vmem>>, vector<1x128xf32>
      tpu.vector_store %arg6[%c12_303, %c0_304], %632 {strides = array<i32>} : memref<16x128xf32, #tpu.memory_space<vmem>>, vector<1x128xf32>,
      %c13 = arith.constant 13 : index
      %c0_305 = arith.constant 0 : index
      %634 = memref.load %arg2[%c13, %c0_305] : memref<16x8xf32, #tpu.memory_space<smem>>
      %635 = vector.broadcast %634 : f32 to vector<32x128xf32>
      %636 = arith.mulf %16, %635 : vector<32x128xf32>
      %c13_306 = arith.constant 13 : index
      %c1_307 = arith.constant 1 : index
      %637 = memref.load %arg2[%c13_306, %c1_307] : memref<16x8xf32, #tpu.memory_space<smem>>
      %638 = vector.broadcast %637 : f32 to vector<32x128xf32>
      %639 = arith.mulf %19, %638 : vector<32x128xf32>
      %640 = arith.addf %636, %639 : vector<32x128xf32>
      %c13_308 = arith.constant 13 : index
      %c2_309 = arith.constant 2 : index
      %641 = memref.load %arg2[%c13_308, %c2_309] : memref<16x8xf32, #tpu.memory_space<smem>>
      %642 = vector.broadcast %641 : f32 to vector<32x128xf32>
      %643 = arith.mulf %22, %642 : vector<32x128xf32>
      %644 = arith.addf %640, %643 : vector<32x128xf32>
      %c13_310 = arith.constant 13 : index
      %c3_311 = arith.constant 3 : index
      %645 = memref.load %arg2[%c13_310, %c3_311] : memref<16x8xf32, #tpu.memory_space<smem>>
      %646 = vector.broadcast %645 : f32 to vector<32x128xf32>
      %647 = arith.mulf %25, %646 : vector<32x128xf32>
      %648 = arith.addf %644, %647 : vector<32x128xf32>
      %c13_312 = arith.constant 13 : index
      %c4_313 = arith.constant 4 : index
      %649 = memref.load %arg2[%c13_312, %c4_313] : memref<16x8xf32, #tpu.memory_space<smem>>
      %650 = vector.broadcast %649 : f32 to vector<32x128xf32>
      %651 = arith.mulf %28, %650 : vector<32x128xf32>
      %652 = arith.addf %648, %651 : vector<32x128xf32>
      %c13_314 = arith.constant 13 : index
      %c5_315 = arith.constant 5 : index
      %653 = memref.load %arg2[%c13_314, %c5_315] : memref<16x8xf32, #tpu.memory_space<smem>>
      %654 = vector.broadcast %653 : f32 to vector<32x128xf32>
      %655 = arith.mulf %31, %654 : vector<32x128xf32>
      %656 = arith.addf %652, %655 : vector<32x128xf32>
      %c13_316 = arith.constant 13 : index
      %c6_317 = arith.constant 6 : index
      %657 = memref.load %arg2[%c13_316, %c6_317] : memref<16x8xf32, #tpu.memory_space<smem>>
      %658 = vector.broadcast %657 : f32 to vector<32x128xf32>
      %659 = arith.mulf %34, %658 : vector<32x128xf32>
      %660 = arith.addf %656, %659 : vector<32x128xf32>
      %c13_318 = arith.constant 13 : index
      %c7_319 = arith.constant 7 : index
      %661 = memref.load %arg2[%c13_318, %c7_319] : memref<16x8xf32, #tpu.memory_space<smem>>
      %662 = vector.broadcast %661 : f32 to vector<32x128xf32>
      %663 = arith.mulf %37, %662 : vector<32x128xf32>
      %664 = arith.addf %660, %663 : vector<32x128xf32>
      %c13_320 = arith.constant 13 : index
      %665 = memref.load %arg3[%c13_320] : memref<16xf32, #tpu.memory_space<smem>>
      %666 = vector.broadcast %665 : f32 to vector<32x128xf32>
      %667 = arith.addf %664, %666 : vector<32x128xf32>
      %cst_321 = arith.constant 0.000000e+00 : f32
      %668 = vector.broadcast %cst_321 : f32 to vector<32x128xf32>
      %669 = arith.maximumf %667, %668 : vector<32x128xf32>
      %670 = arith.mulf %48, %669 : vector<32x128xf32>
      %671 = vector.extract_strided_slice %12 {offsets = [0, 13], sizes = [32, 1], strides = [1, 1]} : vector<32x16xf32> to vector<32x1xf32>
      %672 = vector.broadcast %671 : vector<32x1xf32> to vector<32x128xf32>
      %673 = arith.mulf %670, %672 : vector<32x128xf32>
      %c13_322 = arith.constant 13 : index
      %c0_323 = arith.constant 0 : index
      %674 = vector.load %arg6[%c13_322, %c0_323] : memref<16x128xf32, #tpu.memory_space<vmem>>, vector<1x128xf32>
      %cst_324 = arith.constant dense<0.000000e+00> : vector<128xf32>
      %675 = vector.multi_reduction <add>, %673, %cst_324 [0] : vector<32x128xf32> to vector<128xf32>
      %676 = vector.shape_cast %675 : vector<128xf32> to vector<1x128xf32>
      %677 = arith.addf %674, %676 : vector<1x128xf32>
      %c13_325 = arith.constant 13 : index
      %c0_326 = arith.constant 0 : index
      %678 = vector.load %arg6[%c13_325, %c0_326] : memref<16x128xf32, #tpu.memory_space<vmem>>, vector<1x128xf32>
      tpu.vector_store %arg6[%c13_325, %c0_326], %677 {strides = array<i32>} : memref<16x128xf32, #tpu.memory_space<vmem>>, vector<1x128xf32>,
      %c14 = arith.constant 14 : index
      %c0_327 = arith.constant 0 : index
      %679 = memref.load %arg2[%c14, %c0_327] : memref<16x8xf32, #tpu.memory_space<smem>>
      %680 = vector.broadcast %679 : f32 to vector<32x128xf32>
      %681 = arith.mulf %16, %680 : vector<32x128xf32>
      %c14_328 = arith.constant 14 : index
      %c1_329 = arith.constant 1 : index
      %682 = memref.load %arg2[%c14_328, %c1_329] : memref<16x8xf32, #tpu.memory_space<smem>>
      %683 = vector.broadcast %682 : f32 to vector<32x128xf32>
      %684 = arith.mulf %19, %683 : vector<32x128xf32>
      %685 = arith.addf %681, %684 : vector<32x128xf32>
      %c14_330 = arith.constant 14 : index
      %c2_331 = arith.constant 2 : index
      %686 = memref.load %arg2[%c14_330, %c2_331] : memref<16x8xf32, #tpu.memory_space<smem>>
      %687 = vector.broadcast %686 : f32 to vector<32x128xf32>
      %688 = arith.mulf %22, %687 : vector<32x128xf32>
      %689 = arith.addf %685, %688 : vector<32x128xf32>
      %c14_332 = arith.constant 14 : index
      %c3_333 = arith.constant 3 : index
      %690 = memref.load %arg2[%c14_332, %c3_333] : memref<16x8xf32, #tpu.memory_space<smem>>
      %691 = vector.broadcast %690 : f32 to vector<32x128xf32>
      %692 = arith.mulf %25, %691 : vector<32x128xf32>
      %693 = arith.addf %689, %692 : vector<32x128xf32>
      %c14_334 = arith.constant 14 : index
      %c4_335 = arith.constant 4 : index
      %694 = memref.load %arg2[%c14_334, %c4_335] : memref<16x8xf32, #tpu.memory_space<smem>>
      %695 = vector.broadcast %694 : f32 to vector<32x128xf32>
      %696 = arith.mulf %28, %695 : vector<32x128xf32>
      %697 = arith.addf %693, %696 : vector<32x128xf32>
      %c14_336 = arith.constant 14 : index
      %c5_337 = arith.constant 5 : index
      %698 = memref.load %arg2[%c14_336, %c5_337] : memref<16x8xf32, #tpu.memory_space<smem>>
      %699 = vector.broadcast %698 : f32 to vector<32x128xf32>
      %700 = arith.mulf %31, %699 : vector<32x128xf32>
      %701 = arith.addf %697, %700 : vector<32x128xf32>
      %c14_338 = arith.constant 14 : index
      %c6_339 = arith.constant 6 : index
      %702 = memref.load %arg2[%c14_338, %c6_339] : memref<16x8xf32, #tpu.memory_space<smem>>
      %703 = vector.broadcast %702 : f32 to vector<32x128xf32>
      %704 = arith.mulf %34, %703 : vector<32x128xf32>
      %705 = arith.addf %701, %704 : vector<32x128xf32>
      %c14_340 = arith.constant 14 : index
      %c7_341 = arith.constant 7 : index
      %706 = memref.load %arg2[%c14_340, %c7_341] : memref<16x8xf32, #tpu.memory_space<smem>>
      %707 = vector.broadcast %706 : f32 to vector<32x128xf32>
      %708 = arith.mulf %37, %707 : vector<32x128xf32>
      %709 = arith.addf %705, %708 : vector<32x128xf32>
      %c14_342 = arith.constant 14 : index
      %710 = memref.load %arg3[%c14_342] : memref<16xf32, #tpu.memory_space<smem>>
      %711 = vector.broadcast %710 : f32 to vector<32x128xf32>
      %712 = arith.addf %709, %711 : vector<32x128xf32>
      %cst_343 = arith.constant 0.000000e+00 : f32
      %713 = vector.broadcast %cst_343 : f32 to vector<32x128xf32>
      %714 = arith.maximumf %712, %713 : vector<32x128xf32>
      %715 = arith.mulf %48, %714 : vector<32x128xf32>
      %716 = vector.extract_strided_slice %12 {offsets = [0, 14], sizes = [32, 1], strides = [1, 1]} : vector<32x16xf32> to vector<32x1xf32>
      %717 = vector.broadcast %716 : vector<32x1xf32> to vector<32x128xf32>
      %718 = arith.mulf %715, %717 : vector<32x128xf32>
      %c14_344 = arith.constant 14 : index
      %c0_345 = arith.constant 0 : index
      %719 = vector.load %arg6[%c14_344, %c0_345] : memref<16x128xf32, #tpu.memory_space<vmem>>, vector<1x128xf32>
      %cst_346 = arith.constant dense<0.000000e+00> : vector<128xf32>
      %720 = vector.multi_reduction <add>, %718, %cst_346 [0] : vector<32x128xf32> to vector<128xf32>
      %721 = vector.shape_cast %720 : vector<128xf32> to vector<1x128xf32>
      %722 = arith.addf %719, %721 : vector<1x128xf32>
      %c14_347 = arith.constant 14 : index
      %c0_348 = arith.constant 0 : index
      %723 = vector.load %arg6[%c14_347, %c0_348] : memref<16x128xf32, #tpu.memory_space<vmem>>, vector<1x128xf32>
      tpu.vector_store %arg6[%c14_347, %c0_348], %722 {strides = array<i32>} : memref<16x128xf32, #tpu.memory_space<vmem>>, vector<1x128xf32>,
      %c15 = arith.constant 15 : index
      %c0_349 = arith.constant 0 : index
      %724 = memref.load %arg2[%c15, %c0_349] : memref<16x8xf32, #tpu.memory_space<smem>>
      %725 = vector.broadcast %724 : f32 to vector<32x128xf32>
      %726 = arith.mulf %16, %725 : vector<32x128xf32>
      %c15_350 = arith.constant 15 : index
      %c1_351 = arith.constant 1 : index
      %727 = memref.load %arg2[%c15_350, %c1_351] : memref<16x8xf32, #tpu.memory_space<smem>>
      %728 = vector.broadcast %727 : f32 to vector<32x128xf32>
      %729 = arith.mulf %19, %728 : vector<32x128xf32>
      %730 = arith.addf %726, %729 : vector<32x128xf32>
      %c15_352 = arith.constant 15 : index
      %c2_353 = arith.constant 2 : index
      %731 = memref.load %arg2[%c15_352, %c2_353] : memref<16x8xf32, #tpu.memory_space<smem>>
      %732 = vector.broadcast %731 : f32 to vector<32x128xf32>
      %733 = arith.mulf %22, %732 : vector<32x128xf32>
      %734 = arith.addf %730, %733 : vector<32x128xf32>
      %c15_354 = arith.constant 15 : index
      %c3_355 = arith.constant 3 : index
      %735 = memref.load %arg2[%c15_354, %c3_355] : memref<16x8xf32, #tpu.memory_space<smem>>
      %736 = vector.broadcast %735 : f32 to vector<32x128xf32>
      %737 = arith.mulf %25, %736 : vector<32x128xf32>
      %738 = arith.addf %734, %737 : vector<32x128xf32>
      %c15_356 = arith.constant 15 : index
      %c4_357 = arith.constant 4 : index
      %739 = memref.load %arg2[%c15_356, %c4_357] : memref<16x8xf32, #tpu.memory_space<smem>>
      %740 = vector.broadcast %739 : f32 to vector<32x128xf32>
      %741 = arith.mulf %28, %740 : vector<32x128xf32>
      %742 = arith.addf %738, %741 : vector<32x128xf32>
      %c15_358 = arith.constant 15 : index
      %c5_359 = arith.constant 5 : index
      %743 = memref.load %arg2[%c15_358, %c5_359] : memref<16x8xf32, #tpu.memory_space<smem>>
      %744 = vector.broadcast %743 : f32 to vector<32x128xf32>
      %745 = arith.mulf %31, %744 : vector<32x128xf32>
      %746 = arith.addf %742, %745 : vector<32x128xf32>
      %c15_360 = arith.constant 15 : index
      %c6_361 = arith.constant 6 : index
      %747 = memref.load %arg2[%c15_360, %c6_361] : memref<16x8xf32, #tpu.memory_space<smem>>
      %748 = vector.broadcast %747 : f32 to vector<32x128xf32>
      %749 = arith.mulf %34, %748 : vector<32x128xf32>
      %750 = arith.addf %746, %749 : vector<32x128xf32>
      %c15_362 = arith.constant 15 : index
      %c7_363 = arith.constant 7 : index
      %751 = memref.load %arg2[%c15_362, %c7_363] : memref<16x8xf32, #tpu.memory_space<smem>>
      %752 = vector.broadcast %751 : f32 to vector<32x128xf32>
      %753 = arith.mulf %37, %752 : vector<32x128xf32>
      %754 = arith.addf %750, %753 : vector<32x128xf32>
      %c15_364 = arith.constant 15 : index
      %755 = memref.load %arg3[%c15_364] : memref<16xf32, #tpu.memory_space<smem>>
      %756 = vector.broadcast %755 : f32 to vector<32x128xf32>
      %757 = arith.addf %754, %756 : vector<32x128xf32>
      %cst_365 = arith.constant 0.000000e+00 : f32
      %758 = vector.broadcast %cst_365 : f32 to vector<32x128xf32>
      %759 = arith.maximumf %757, %758 : vector<32x128xf32>
      %760 = arith.mulf %48, %759 : vector<32x128xf32>
      %761 = vector.extract_strided_slice %12 {offsets = [0, 15], sizes = [32, 1], strides = [1, 1]} : vector<32x16xf32> to vector<32x1xf32>
      %762 = vector.broadcast %761 : vector<32x1xf32> to vector<32x128xf32>
      %763 = arith.mulf %760, %762 : vector<32x128xf32>
      %c15_366 = arith.constant 15 : index
      %c0_367 = arith.constant 0 : index
      %764 = vector.load %arg6[%c15_366, %c0_367] : memref<16x128xf32, #tpu.memory_space<vmem>>, vector<1x128xf32>
      %cst_368 = arith.constant dense<0.000000e+00> : vector<128xf32>
      %765 = vector.multi_reduction <add>, %763, %cst_368 [0] : vector<32x128xf32> to vector<128xf32>
      %766 = vector.shape_cast %765 : vector<128xf32> to vector<1x128xf32>
      %767 = arith.addf %764, %766 : vector<1x128xf32>
      %c15_369 = arith.constant 15 : index
      %c0_370 = arith.constant 0 : index
      %768 = vector.load %arg6[%c15_369, %c0_370] : memref<16x128xf32, #tpu.memory_space<vmem>>, vector<1x128xf32>
      tpu.vector_store %arg6[%c15_369, %c0_370], %767 {strides = array<i32>} : memref<16x128xf32, #tpu.memory_space<vmem>>, vector<1x128xf32>,
    }
    %c8_i32_3 = arith.constant 8 : i32
    return
  }
  func.func @transform_0(%arg0: i32, %arg1: i32, %arg2: memref<16x8xf32, #tpu.memory_space<smem>>, %arg3: memref<16xf32, #tpu.memory_space<smem>>) -> (i32, i32) {
    %c0_i32 = arith.constant 0 : i32
    %c0_i32_0 = arith.constant 0 : i32
    return %c0_i32, %arg0 : i32, i32
  }
  func.func @transform_1(%arg0: i32, %arg1: i32, %arg2: memref<16x8xf32, #tpu.memory_space<smem>>, %arg3: memref<16xf32, #tpu.memory_space<smem>>) -> (i32, i32) {
    %c0_i32 = arith.constant 0 : i32
    %c0_i32_0 = arith.constant 0 : i32
    return %arg1, %c0_i32 : i32, i32
  }
  func.func @transform_2(%arg0: i32, %arg1: i32, %arg2: memref<16x8xf32, #tpu.memory_space<smem>>, %arg3: memref<16xf32, #tpu.memory_space<smem>>) -> (i32, i32) {
    %c0_i32 = arith.constant 0 : i32
    %c0_i32_0 = arith.constant 0 : i32
    return %c0_i32, %arg0 : i32, i32
  }
}

</mosaic_0001>

<llo_original>
// kernel: _lambda_.2
$region0: #{_lambda_.2}
  #allocation0 [shape = 'u32[]', space=smem, size = 0x4, offset = 0x4, fixed_abs, tag = 'smem constant byte address 0x4 - core index']
  #allocation1 [shape = 'u32[72,128]{1,0:T(1,128)}', space=vmem, size = 0x9000, scoped, tag = 'internal scratch']
  #allocation2 [shape = 's32[1]{0}', space=sflag, size = 0x4, scoped, tag = 'scoped memory for _lambda_.2']
  #allocation3 [shape = 'u8[8192]{0}', space=smem, size = 0x2000, scoped, tag = 'prefetched SMEM operand 0']
  #allocation4 [shape = 'u8[512]{0}', space=smem, size = 0x200, scoped, tag = 'prefetched SMEM operand 1']
  %s0 = inlined_call_operand.vmem [shape: f32[16,8], index: 0, kind: input, shape index: {}]
  %s1 = inlined_call_operand.vmem [shape: f32[16], index: 1, kind: input, shape index: {}]
  %s2 = inlined_call_operand.vmem [shape: f32[8,2560], index: 2, kind: input, shape index: {}]
  %s3 = inlined_call_operand.vmem [shape: f32[256,24], index: 3, kind: input, shape index: {}]
  %s4 = inlined_call_operand.vmem [shape: f32[16,256], index: 4, kind: output, shape index: {}]
  %s5 = sld [smem:[#allocation0]]
  $region86: #{_lambda_.2} parent=0
    _
  %s7 = ssub.s32 1, %s5
  %s8 = scalar_select 0, %s7, %s5
  %s10 = sshll.u32 %s0, 4
  %s11 = int_to_ptr.vmem [resolvable:$true] %s10
  %13 = dma.vmem_to_smem %s11, 256, [#allocation3], [#allocation2]
  %s15 = sshll.u32 %s1, 4
  %s16 = int_to_ptr.vmem [resolvable:$true] %s15
  %18 = dma.vmem_to_smem %s16, 16, [#allocation4], [#allocation2]
  %20 = dma.done [#allocation2], 272
  %21 = sfence
  $region1: #{_lambda_.2} parent=0
    #allocation5 [shape = 'u8[16384]{0}', space=vmem, size = 0x4000, scoped, tag = 'output window, operand 0']
    loop: start=0, step=1, limit=4
    $region2: #{_lambda_.2} parent=1 // loop_pre_header
      _
    $region3: #{_lambda_.2} parent=1 // loop_header
      %s23 = sphi 0, %s27
      %p24 = scmp.ge.s32.totalorder %s23, 4
      %s30 = sphi 0, %s42
      %s31 = sphi 0, %s38
      %s32 = sphi 0, %s30
      %s33 = sphi 0, %s31
      %s34 = sphi 0, %s32
      %s35 = sphi 0, %s33
      %s45 = sphi 0, %s47
      %s48 = sphi 0, %s45
      %s49 = sphi 0, %s48
      %s65 = sphi 0, %s49
      %s71 = sphi 0, %s73
      %s74 = sphi 0, %s71
      %s75 = sphi 0, %s74
      %s91 = sphi 0, %s75
      %s97 = sphi 0, %s99
      %s100 = sphi 0, %s97
      %s101 = sphi 0, %s100
      %s117 = sphi 0, %s101
    $region4: #{_lambda_.2} parent=1 // loop_header_branch
      %26 = sbr.rel (%p24) target = $region8
    $region5: #{_lambda_.2} parent=1 // loop_body
      %s28 = ssub.s32 %s23, 1
      %s29 = ssub.s32 %s23, 2
      %s36 = sadd.s32 1, %s31
      %p37 = scmp.ge.s32.totalorder %s36, 1
      %s38 = scalar_select %p37, 0, %s36
      %s39 = sadd.s32 1, %s30
      %s40 = scalar_select %p37, %s39, %s30
      %p41 = scmp.ge.s32.totalorder %s40, 2
      %s42 = scalar_select %p41, 0, %s40
      %s43 = ssub.s32 %s30, %s42
      %p44 = scmp.eq.s32.totalorder %s43, 0
      %s46 = sadd.s32 %s45, 1
      %s47 = scalar_select %p44, %s45, %s46
      %p50 = pneg %p44
      %p51 = scmp.eq.s32.totalorder %s23, 1
      %p52 = por %p50, %p51
      %p53 = scmp.ne.s32.totalorder %s45, %s48
      %p54 = scmp.eq.s32.totalorder %s23, 0
      %p55 = por %p53, %p54
      %p56 = scmp.ne.s32.totalorder %s45, %s48
      %p57 = scmp.eq.s32.totalorder %s28, 1
      %p58 = por %p56, %p57
      %p59 = scmp.ne.s32.totalorder %s48, %s49
      %p60 = scmp.eq.s32.totalorder %s28, 0
      %p61 = por %p59, %p60
      %p62 = scmp.ne.s32.totalorder %s48, %s49
      %p63 = scmp.eq.s32.totalorder %s29, 1
      %p64 = por %p62, %p63
      %p66 = scmp.ne.s32.totalorder %s49, %s65
      %p67 = scmp.eq.s32.totalorder %s29, 0
      %p68 = por %p66, %p67
      %s69 = ssub.s32 %s31, %s38
      %p70 = scmp.eq.s32.totalorder %s69, 0
      %s72 = sadd.s32 %s71, 1
      %s73 = scalar_select %p70, %s71, %s72
      %p76 = pneg %p70
      %p77 = scmp.eq.s32.totalorder %s23, 1
      %p78 = por %p76, %p77
      %p79 = scmp.ne.s32.totalorder %s71, %s74
      %p80 = scmp.eq.s32.totalorder %s23, 0
      %p81 = por %p79, %p80
      %p82 = scmp.ne.s32.totalorder %s71, %s74
      %p83 = scmp.eq.s32.totalorder %s28, 1
      %p84 = por %p82, %p83
      %p85 = scmp.ne.s32.totalorder %s74, %s75
      %p86 = scmp.eq.s32.totalorder %s28, 0
      %p87 = por %p85, %p86
      %p88 = scmp.ne.s32.totalorder %s74, %s75
      %p89 = scmp.eq.s32.totalorder %s29, 1
      %p90 = por %p88, %p89
      %p92 = scmp.ne.s32.totalorder %s75, %s91
      %p93 = scmp.eq.s32.totalorder %s29, 0
      %p94 = por %p92, %p93
      %s95 = ssub.s32 %s30, %s42
      %p96 = scmp.eq.s32.totalorder %s95, 0
      %s98 = sadd.s32 %s97, 1
      %s99 = scalar_select %p96, %s97, %s98
      %p102 = pneg %p96
      %p103 = scmp.eq.s32.totalorder %s23, 1
      %p104 = por %p102, %p103
      %p105 = scmp.ne.s32.totalorder %s97, %s100
      %p106 = scmp.eq.s32.totalorder %s23, 0
      %p107 = por %p105, %p106
      %p108 = scmp.ne.s32.totalorder %s97, %s100
      %p109 = scmp.eq.s32.totalorder %s28, 1
      %p110 = por %p108, %p109
      %p111 = scmp.ne.s32.totalorder %s100, %s101
      %p112 = scmp.eq.s32.totalorder %s28, 0
      %p113 = por %p111, %p112
      %p114 = scmp.ne.s32.totalorder %s100, %s101
      %p115 = scmp.eq.s32.totalorder %s29, 1
      %p116 = por %p114, %p115
      %p118 = scmp.ne.s32.totalorder %s101, %s117
      %p119 = scmp.eq.s32.totalorder %s29, 0
      %p120 = por %p118, %p119
      %p121 = scmp.le.s32.totalorder 1, %s23
      %p122 = scmp.lt.s32.totalorder %s23, 3
      %p123 = pnand %p121, %p122
      %p124 = pneg %p123
      // Predicated region
      $region9: #{_lambda_.2} parent=5 // pred_check
        _
      $region10: #{_lambda_.2} parent=5 // pred_check_branch
        %126 = sbr.rel (%p123) target = $region12
      $region11: #{_lambda_.2} parent=5 // pred_region
        %s127 = ssub.s32 %s23, 1
        // Predicated region
        $region13: #{_lambda_.2} parent=11 // pred_check
          %p128 = pneg %p87
        $region14: #{_lambda_.2} parent=11 // pred_check_branch
          %130 = sbr.rel (%p128) target = $region16
        $region15: #{_lambda_.2} parent=11 // pred_region
          %s131 = smul.u32 32, %s33
          %p132 = scmp.lt.s32.totalorder %s131, 31
          %s133 = scalar_select %p132, %s131, 31
          %s134 = smul.addr %s133, 8
          %s135 = scalar_lea.vmem %s3, %s134
          %s136 = smul.u32 32, %s33
        $region16: #{_lambda_.2} parent=11 // pred_fallthru
          _
      $region12: #{_lambda_.2} parent=5 // pred_fallthru
        _
      %p137 = scmp.lt.s32.totalorder %s23, 2
      // Predicated region
      $region17: #{_lambda_.2} parent=5 // pred_check
        %p138 = pneg %p137
      $region18: #{_lambda_.2} parent=5 // pred_check_branch
        %140 = sbr.rel (%p138) target = $region20
      $region19: #{_lambda_.2} parent=5 // pred_region
        // Predicated region
        $region21: #{_lambda_.2} parent=19 // pred_check
          %p141 = pneg %p55
        $region22: #{_lambda_.2} parent=19 // pred_check_branch
          %143 = sbr.rel (%p141) target = $region24
        $region23: #{_lambda_.2} parent=19 // pred_region
          %s144 = smul.u32 10, %s30
          %p145 = scmp.lt.s32.totalorder %s144, 19
          %s146 = scalar_select %p145, %s144, 19
          %s147 = smul.addr %s146, 8
          %s148 = scalar_lea.vmem %s2, %s147
          %s149 = smul.u32 10, %s30
        $region24: #{_lambda_.2} parent=19 // pred_fallthru
          _
      $region20: #{_lambda_.2} parent=5 // pred_fallthru
        _
      %p150 = scmp.le.s32.totalorder 1, %s23
      %p151 = scmp.lt.s32.totalorder %s23, 3
      %p152 = pnand %p150, %p151
      %p153 = pneg %p152
      // Predicated region
      $region25: #{_lambda_.2} parent=5 // pred_check
        _
      $region26: #{_lambda_.2} parent=5 // pred_check_branch
        %155 = sbr.rel (%p152) target = $region28
      $region27: #{_lambda_.2} parent=5 // pred_region
        %s156 = ssub.s32 %s23, 1
        %s157 = smul.u32 10, %s32
        %p158 = scmp.lt.s32.totalorder %s157, 19
        %s159 = scalar_select %p158, %s157, 19
        %s160 = smul.addr %s159, 8
        %s161 = scalar_lea.vmem %s2, %s160
        %p162 = pneg %p61
        %p163 = pneg %p58
        %s164 = smul.u32 32, %s33
        %p165 = scmp.lt.s32.totalorder %s164, 31
        %s166 = scalar_select %p165, %s164, 31
        %s167 = smul.addr %s166, 8
        %s168 = scalar_lea.vmem %s3, %s167
        %p169 = pneg %p87
        %p170 = pneg %p84
        %p171 = pneg %p113
        %p172 = pneg %p110
        %s173 = sand.u32 %s100, 1
        %s174 = sand.u32 %s100, 1
        %s175 = smul.addr %s174, 16
        %s176 = scalar_lea.vmem [#allocation5], %s175
        %s177 = smul.u32 10, %s32
        %p178 = scmp.lt.s32.totalorder %s177, 19
        %s179 = scalar_select %p178, %s177, 19
        %s180 = smul.addr %s179, 8
        %s181 = scalar_lea.vmem %s2, %s180
        %s182 = smul.u32 10, %s32
        %s183 = smul.u32 32, %s33
        %p184 = scmp.lt.s32.totalorder %s183, 31
        %s185 = scalar_select %p184, %s183, 31
        %s186 = smul.addr %s185, 8
        %s187 = scalar_lea.vmem %s3, %s186
        %s188 = smul.u32 32, %s33
        %p189 = scmp.eq.s32.totalorder %s33, 0
        // Predicated region
        $region29: #{_lambda_.2} parent=27 // pred_check
          %p190 = pneg %p189
        $region30: #{_lambda_.2} parent=27 // pred_check_branch
          %192 = sbr.rel (%p190) target = $region32
        $region31: #{_lambda_.2} parent=27 // pred_region
          %193 = vst [vmem:[%s176] sm:$0xff] 0.0
          %194 = vst [vmem:[%s176 + $0x8] sm:$0xff] 0.0
        $region32: #{_lambda_.2} parent=27 // pred_fallthru
          _
        %v195 = vld [vmem:[%s181] sm:$0xff]
        %v196 = vld [vmem:[%s181 + $0x8] sm:$0xff]
        %v197 = vld [vmem:[%s181 + $0x10] sm:$0xff]
        %v198 = vld [vmem:[%s181 + $0x18] sm:$0xff]
        %v199 = vld [vmem:[%s181 + $0x20] sm:$0xff]
        %v200 = vld [vmem:[%s181 + $0x28] sm:$0xff]
        %v201 = vld [vmem:[%s181 + $0x30] sm:$0xff]
        %v202 = vld [vmem:[%s181 + $0x38] sm:$0xff]
        %v203 = vld [vmem:[%s181 + $0x40] sm:$0xff]
        %v204 = vld [vmem:[%s181 + $0x48] sm:$0xff]
        loop: start=0, step=1, limit=8
        $region33: #{_lambda_.2} parent=27 // loop_pre_header
          _
        $region34: #{_lambda_.2} parent=27 // loop_header
          %s206 = sphi 0, %s210
          %p207 = scmp.ge.s32.totalorder %s206, 8
        $region35: #{_lambda_.2} parent=27 // loop_header_branch
          %209 = sbr.rel (%p207) target = $region39
        $region36: #{_lambda_.2} parent=27 // loop_body
          %s211 = smul.u32 %s206, 32
          %s212 = scalar_lea.vmem %s187, %s211
          %v213 = vld [vmem:[%s212] sm:$0xff]
          %v214 = vld [vmem:[%s212 + $0x8] sm:$0xff]
          %v215 = vld [vmem:[%s212 + $0x10] sm:$0xff]
          %v216 = vld [vmem:[%s212 + $0x18] sm:$0xff]
          %vm217 = vcmask 64512
          %v219 = vsel %vm217, %v213, 0
          %v222 = vsel %vm217, %v214, 0
          %v225 = vsel %vm217, %v215, 0
          %v228 = vsel %vm217, %v216, 0
          %230 = vmatpush.msra.mxu0 0.0
          %231 = vmatpush.msra.mxu0 0.0
          %232 = vmatpush.msra.mxu0 0.0
          %233 = vmatpush.msra.mxu0 0.0
          %234 = vmatpush.msra.mxu0 0.0
          %235 = vmatpush.msra.mxu0 0.0
          %236 = vmatpush.msra.mxu0 0.0
          %237 = vmatpush.msra.mxu0 0.0
          %238 = vmatpush.msra.mxu0 0.0
          %239 = vmatpush.msra.mxu0 0.0
          %240 = vmatpush.msra.mxu0 0.0
          %241 = vmatpush.msra.mxu0 0.0
          %242 = vmatpush.msra.mxu0 0.0
          %243 = vmatpush.msra.mxu0 0.0
          %244 = vmatpush.msra.mxu0 0.0
          %245 = vmatpush.msra.mxu0 %v195
          %246 = vmatmul.f32.gmra.mxu0 %v219
          %v247 = vpop.f32.mrf.mxu0
          %v248 = vadd.f32 0.0, %v247
          %249 = vmatmul.f32.gmra.mxu0 %v222
          %v250 = vpop.f32.mrf.mxu0
          %v251 = vadd.f32 0.0, %v250
          %252 = vmatmul.f32.gmra.mxu0 %v225
          %v253 = vpop.f32.mrf.mxu0
          %v254 = vadd.f32 0.0, %v253
          %255 = vmatmul.f32.gmra.mxu0 %v228
          %v256 = vpop.f32.mrf.mxu0
          %v257 = vadd.f32 0.0, %v256
          %258 = vdwg.mxu0
          %259 = vmatpush.msra.mxu0 0.0
          %260 = vmatpush.msra.mxu0 0.0
          %261 = vmatpush.msra.mxu0 0.0
          %262 = vmatpush.msra.mxu0 0.0
          %263 = vmatpush.msra.mxu0 0.0
          %264 = vmatpush.msra.mxu0 0.0
          %265 = vmatpush.msra.mxu0 0.0
          %266 = vmatpush.msra.mxu0 0.0
          %267 = vmatpush.msra.mxu0 0.0
          %268 = vmatpush.msra.mxu0 0.0
          %269 = vmatpush.msra.mxu0 0.0
          %270 = vmatpush.msra.mxu0 0.0
          %271 = vmatpush.msra.mxu0 0.0
          %272 = vmatpush.msra.mxu0 0.0
          %273 = vmatpush.msra.mxu0 0.0
          %274 = vmatpush.msra.mxu0 %v196
          %275 = vmatmul.f32.gmra.mxu0 %v219
          %v276 = vpop.f32.mrf.mxu0
          %v277 = vadd.f32 0.0, %v276
          %278 = vmatmul.f32.gmra.mxu0 %v222
          %v279 = vpop.f32.mrf.mxu0
          %v280 = vadd.f32 0.0, %v279
          %281 = vmatmul.f32.gmra.mxu0 %v225
          %v282 = vpop.f32.mrf.mxu0
          %v283 = vadd.f32 0.0, %v282
          %284 = vmatmul.f32.gmra.mxu0 %v228
          %v285 = vpop.f32.mrf.mxu0
          %v286 = vadd.f32 0.0, %v285
          %287 = vdwg.mxu0
          %288 = vmatpush.msra.mxu0 0.0
          %289 = vmatpush.msra.mxu0 0.0
          %290 = vmatpush.msra.mxu0 0.0
          %291 = vmatpush.msra.mxu0 0.0
          %292 = vmatpush.msra.mxu0 0.0
          %293 = vmatpush.msra.mxu0 0.0
          %294 = vmatpush.msra.mxu0 0.0
          %295 = vmatpush.msra.mxu0 0.0
          %296 = vmatpush.msra.mxu0 0.0
          %297 = vmatpush.msra.mxu0 0.0
          %298 = vmatpush.msra.mxu0 0.0
          %299 = vmatpush.msra.mxu0 0.0
          %300 = vmatpush.msra.mxu0 0.0
          %301 = vmatpush.msra.mxu0 0.0
          %302 = vmatpush.msra.mxu0 0.0
          %303 = vmatpush.msra.mxu0 %v197
          %304 = vmatmul.f32.gmra.mxu0 %v219
          %v305 = vpop.f32.mrf.mxu0
          %v306 = vadd.f32 0.0, %v305
          %307 = vmatmul.f32.gmra.mxu0 %v222
          %v308 = vpop.f32.mrf.mxu0
          %v309 = vadd.f32 0.0, %v308
          %310 = vmatmul.f32.gmra.mxu0 %v225
          %v311 = vpop.f32.mrf.mxu0
          %v312 = vadd.f32 0.0, %v311
          %313 = vmatmul.f32.gmra.mxu0 %v228
          %v314 = vpop.f32.mrf.mxu0
          %v315 = vadd.f32 0.0, %v314
          %316 = vdwg.mxu0
          %317 = vmatpush.msra.mxu0 0.0
          %318 = vmatpush.msra.mxu0 0.0
          %319 = vmatpush.msra.mxu0 0.0
          %320 = vmatpush.msra.mxu0 0.0
          %321 = vmatpush.msra.mxu0 0.0
          %322 = vmatpush.msra.mxu0 0.0
          %323 = vmatpush.msra.mxu0 0.0
          %324 = vmatpush.msra.mxu0 0.0
          %325 = vmatpush.msra.mxu0 0.0
          %326 = vmatpush.msra.mxu0 0.0
          %327 = vmatpush.msra.mxu0 0.0
          %328 = vmatpush.msra.mxu0 0.0
          %329 = vmatpush.msra.mxu0 0.0
          %330 = vmatpush.msra.mxu0 0.0
          %331 = vmatpush.msra.mxu0 0.0
          %332 = vmatpush.msra.mxu0 %v198
          %333 = vmatmul.f32.gmra.mxu0 %v219
          %v334 = vpop.f32.mrf.mxu0
          %v335 = vadd.f32 0.0, %v334
          %336 = vmatmul.f32.gmra.mxu0 %v222
          %v337 = vpop.f32.mrf.mxu0
          %v338 = vadd.f32 0.0, %v337
          %339 = vmatmul.f32.gmra.mxu0 %v225
          %v340 = vpop.f32.mrf.mxu0
          %v341 = vadd.f32 0.0, %v340
          %342 = vmatmul.f32.gmra.mxu0 %v228
          %v343 = vpop.f32.mrf.mxu0
          %v344 = vadd.f32 0.0, %v343
          %345 = vdwg.mxu0
          %346 = vmatpush.msra.mxu0 0.0
          %347 = vmatpush.msra.mxu0 0.0
          %348 = vmatpush.msra.mxu0 0.0
          %349 = vmatpush.msra.mxu0 0.0
          %350 = vmatpush.msra.mxu0 0.0
          %351 = vmatpush.msra.mxu0 0.0
          %352 = vmatpush.msra.mxu0 0.0
          %353 = vmatpush.msra.mxu0 0.0
          %354 = vmatpush.msra.mxu0 0.0
          %355 = vmatpush.msra.mxu0 0.0
          %356 = vmatpush.msra.mxu0 0.0
          %357 = vmatpush.msra.mxu0 0.0
          %358 = vmatpush.msra.mxu0 0.0
          %359 = vmatpush.msra.mxu0 0.0
          %360 = vmatpush.msra.mxu0 0.0
          %361 = vmatpush.msra.mxu0 %v199
          %362 = vmatmul.f32.gmra.mxu0 %v219
          %v363 = vpop.f32.mrf.mxu0
          %v364 = vadd.f32 0.0, %v363
          %365 = vmatmul.f32.gmra.mxu0 %v222
          %v366 = vpop.f32.mrf.mxu0
          %v367 = vadd.f32 0.0, %v366
          %368 = vmatmul.f32.gmra.mxu0 %v225
          %v369 = vpop.f32.mrf.mxu0
          %v370 = vadd.f32 0.0, %v369
          %371 = vmatmul.f32.gmra.mxu0 %v228
          %v372 = vpop.f32.mrf.mxu0
          %v373 = vadd.f32 0.0, %v372
          %374 = vdwg.mxu0
          %375 = vmatpush.msra.mxu0 0.0
          %376 = vmatpush.msra.mxu0 0.0
          %377 = vmatpush.msra.mxu0 0.0
          %378 = vmatpush.msra.mxu0 0.0
          %379 = vmatpush.msra.mxu0 0.0
          %380 = vmatpush.msra.mxu0 0.0
          %381 = vmatpush.msra.mxu0 0.0
          %382 = vmatpush.msra.mxu0 0.0
          %383 = vmatpush.msra.mxu0 0.0
          %384 = vmatpush.msra.mxu0 0.0
          %385 = vmatpush.msra.mxu0 0.0
          %386 = vmatpush.msra.mxu0 0.0
          %387 = vmatpush.msra.mxu0 0.0
          %388 = vmatpush.msra.mxu0 0.0
          %389 = vmatpush.msra.mxu0 0.0
          %390 = vmatpush.msra.mxu0 %v200
          %391 = vmatmul.f32.gmra.mxu0 %v219
          %v392 = vpop.f32.mrf.mxu0
          %v393 = vadd.f32 0.0, %v392
          %394 = vmatmul.f32.gmra.mxu0 %v222
          %v395 = vpop.f32.mrf.mxu0
          %v396 = vadd.f32 0.0, %v395
          %397 = vmatmul.f32.gmra.mxu0 %v225
          %v398 = vpop.f32.mrf.mxu0
          %v399 = vadd.f32 0.0, %v398
          %400 = vmatmul.f32.gmra.mxu0 %v228
          %v401 = vpop.f32.mrf.mxu0
          %v402 = vadd.f32 0.0, %v401
          %403 = vdwg.mxu0
          %404 = vmatpush.msra.mxu0 0.0
          %405 = vmatpush.msra.mxu0 0.0
          %406 = vmatpush.msra.mxu0 0.0
          %407 = vmatpush.msra.mxu0 0.0
          %408 = vmatpush.msra.mxu0 0.0
          %409 = vmatpush.msra.mxu0 0.0
          %410 = vmatpush.msra.mxu0 0.0
          %411 = vmatpush.msra.mxu0 0.0
          %412 = vmatpush.msra.mxu0 0.0
          %413 = vmatpush.msra.mxu0 0.0
          %414 = vmatpush.msra.mxu0 0.0
          %415 = vmatpush.msra.mxu0 0.0
          %416 = vmatpush.msra.mxu0 0.0
          %417 = vmatpush.msra.mxu0 0.0
          %418 = vmatpush.msra.mxu0 0.0
          %419 = vmatpush.msra.mxu0 %v201
          %420 = vmatmul.f32.gmra.mxu0 %v219
          %v421 = vpop.f32.mrf.mxu0
          %v422 = vadd.f32 0.0, %v421
          %423 = vmatmul.f32.gmra.mxu0 %v222
          %v424 = vpop.f32.mrf.mxu0
          %v425 = vadd.f32 0.0, %v424
          %426 = vmatmul.f32.gmra.mxu0 %v225
          %v427 = vpop.f32.mrf.mxu0
          %v428 = vadd.f32 0.0, %v427
          %429 = vmatmul.f32.gmra.mxu0 %v228
          %v430 = vpop.f32.mrf.mxu0
          %v431 = vadd.f32 0.0, %v430
          %432 = vdwg.mxu0
          %433 = vmatpush.msra.mxu0 0.0
          %434 = vmatpush.msra.mxu0 0.0
          %435 = vmatpush.msra.mxu0 0.0
          %436 = vmatpush.msra.mxu0 0.0
          %437 = vmatpush.msra.mxu0 0.0
          %438 = vmatpush.msra.mxu0 0.0
          %439 = vmatpush.msra.mxu0 0.0
          %440 = vmatpush.msra.mxu0 0.0
          %441 = vmatpush.msra.mxu0 0.0
          %442 = vmatpush.msra.mxu0 0.0
          %443 = vmatpush.msra.mxu0 0.0
          %444 = vmatpush.msra.mxu0 0.0
          %445 = vmatpush.msra.mxu0 0.0
          %446 = vmatpush.msra.mxu0 0.0
          %447 = vmatpush.msra.mxu0 0.0
          %448 = vmatpush.msra.mxu0 %v202
          %449 = vmatmul.f32.gmra.mxu0 %v219
          %v450 = vpop.f32.mrf.mxu0
          %v451 = vadd.f32 0.0, %v450
          %452 = vmatmul.f32.gmra.mxu0 %v222
          %v453 = vpop.f32.mrf.mxu0
          %v454 = vadd.f32 0.0, %v453
          %455 = vmatmul.f32.gmra.mxu0 %v225
          %v456 = vpop.f32.mrf.mxu0
          %v457 = vadd.f32 0.0, %v456
          %458 = vmatmul.f32.gmra.mxu0 %v228
          %v459 = vpop.f32.mrf.mxu0
          %v460 = vadd.f32 0.0, %v459
          %461 = vdwg.mxu0
          %462 = vmatpush.msra.mxu0 0.0
          %463 = vmatpush.msra.mxu0 0.0
          %464 = vmatpush.msra.mxu0 0.0
          %465 = vmatpush.msra.mxu0 0.0
          %466 = vmatpush.msra.mxu0 0.0
          %467 = vmatpush.msra.mxu0 0.0
          %468 = vmatpush.msra.mxu0 0.0
          %469 = vmatpush.msra.mxu0 0.0
          %470 = vmatpush.msra.mxu0 0.0
          %471 = vmatpush.msra.mxu0 0.0
          %472 = vmatpush.msra.mxu0 0.0
          %473 = vmatpush.msra.mxu0 0.0
          %474 = vmatpush.msra.mxu0 0.0
          %475 = vmatpush.msra.mxu0 0.0
          %476 = vmatpush.msra.mxu0 0.0
          %477 = vmatpush.msra.mxu0 %v203
          %478 = vmatmul.f32.gmra.mxu0 %v219
          %v479 = vpop.f32.mrf.mxu0
          %v480 = vadd.f32 0.0, %v479
          %481 = vmatmul.f32.gmra.mxu0 %v222
          %v482 = vpop.f32.mrf.mxu0
          %v483 = vadd.f32 0.0, %v482
          %484 = vmatmul.f32.gmra.mxu0 %v225
          %v485 = vpop.f32.mrf.mxu0
          %v486 = vadd.f32 0.0, %v485
          %487 = vmatmul.f32.gmra.mxu0 %v228
          %v488 = vpop.f32.mrf.mxu0
          %v489 = vadd.f32 0.0, %v488
          %490 = vdwg.mxu0
          %491 = vmatpush.msra.mxu0 0.0
          %492 = vmatpush.msra.mxu0 0.0
          %493 = vmatpush.msra.mxu0 0.0
          %494 = vmatpush.msra.mxu0 0.0
          %495 = vmatpush.msra.mxu0 0.0
          %496 = vmatpush.msra.mxu0 0.0
          %497 = vmatpush.msra.mxu0 0.0
          %498 = vmatpush.msra.mxu0 0.0
          %499 = vmatpush.msra.mxu0 0.0
          %500 = vmatpush.msra.mxu0 0.0
          %501 = vmatpush.msra.mxu0 0.0
          %502 = vmatpush.msra.mxu0 0.0
          %503 = vmatpush.msra.mxu0 0.0
          %504 = vmatpush.msra.mxu0 0.0
          %505 = vmatpush.msra.mxu0 0.0
          %506 = vmatpush.msra.mxu0 %v204
          %507 = vmatmul.f32.gmra.mxu0 %v219
          %v508 = vpop.f32.mrf.mxu0
          %v509 = vadd.f32 0.0, %v508
          %510 = vmatmul.f32.gmra.mxu0 %v222
          %v511 = vpop.f32.mrf.mxu0
          %v512 = vadd.f32 0.0, %v511
          %513 = vmatmul.f32.gmra.mxu0 %v225
          %v514 = vpop.f32.mrf.mxu0
          %v515 = vadd.f32 0.0, %v514
          %516 = vmatmul.f32.gmra.mxu0 %v228
          %v517 = vpop.f32.mrf.mxu0
          %v518 = vadd.f32 0.0, %v517
          %519 = vdwg.mxu0
          %v520 = vmax.f32 %v248, 0.0
          %v521 = vmax.f32 %v251, 0.0
          %v522 = vmax.f32 %v254, 0.0
          %v523 = vmax.f32 %v257, 0.0
          %v524 = vmax.f32 %v277, 0.0
          %v525 = vmax.f32 %v280, 0.0
          %v526 = vmax.f32 %v283, 0.0
          %v527 = vmax.f32 %v286, 0.0
          %v528 = vmax.f32 %v306, 0.0
          %v529 = vmax.f32 %v309, 0.0
          %v530 = vmax.f32 %v312, 0.0
          %v531 = vmax.f32 %v315, 0.0
          %v532 = vmax.f32 %v335, 0.0
          %v533 = vmax.f32 %v338, 0.0
          %v534 = vmax.f32 %v341, 0.0
          %v535 = vmax.f32 %v344, 0.0
          %v536 = vmax.f32 %v364, 0.0
          %v537 = vmax.f32 %v367, 0.0
          %v538 = vmax.f32 %v370, 0.0
          %v539 = vmax.f32 %v373, 0.0
          %v540 = vmax.f32 %v393, 0.0
          %v541 = vmax.f32 %v396, 0.0
          %v542 = vmax.f32 %v399, 0.0
          %v543 = vmax.f32 %v402, 0.0
          %v544 = vmax.f32 %v422, 0.0
          %v545 = vmax.f32 %v425, 0.0
          %v546 = vmax.f32 %v428, 0.0
          %v547 = vmax.f32 %v431, 0.0
          %v548 = vmax.f32 %v451, 0.0
          %v549 = vmax.f32 %v454, 0.0
          %v550 = vmax.f32 %v457, 0.0
          %v551 = vmax.f32 %v460, 0.0
          %v552 = vmax.f32 %v480, 0.0
          %v553 = vmax.f32 %v483, 0.0
          %v554 = vmax.f32 %v486, 0.0
          %v555 = vmax.f32 %v489, 0.0
          %v556 = vsub.f32 0.0, %v552
          %v557 = vsub.f32 0.0, %v553
          %v558 = vsub.f32 0.0, %v554
          %v559 = vsub.f32 0.0, %v555
          %v560 = vsub.f32 2.0, %v509
          %v561 = vsub.f32 2.0, %v512
          %v562 = vsub.f32 2.0, %v515
          %v563 = vsub.f32 2.0, %v518
          %v564 = vmul.f32 %v560, %v560
          %v565 = vmul.f32 %v561, %v561
          %v566 = vmul.f32 %v562, %v562
          %v567 = vmul.f32 %v563, %v563
          %v568 = vmul.f32 %v556, %v564
          %v569 = vmul.f32 %v557, %v565
          %v570 = vmul.f32 %v558, %v566
          %v571 = vmul.f32 %v559, %v567
          %v572 = vmul.f32 %v568, 1.442695
          %v573 = vpow.pop %v572
          %v574 = vmul.f32 %v569, 1.442695
          %v575 = vpow.pop %v574
          %v576 = vmul.f32 %v570, 1.442695
          %v577 = vpow.pop %v576
          %v578 = vmul.f32 %v571, 1.442695
          %v579 = vpow.pop %v578
          %s580 = sld [smem:[#allocation3]]
          %v581 = vstv %s580
          %v582 = vmul.f32 %v520, %v581
          %v583 = vmul.f32 %v521, %v581
          %v584 = vmul.f32 %v522, %v581
          %v585 = vmul.f32 %v523, %v581
          %s586 = sld [smem:[#allocation3 + $0x1]]
          %v587 = vstv %s586
          %v588 = vmul.f32 %v524, %v587
          %v589 = vmul.f32 %v525, %v587
          %v590 = vmul.f32 %v526, %v587
          %v591 = vmul.f32 %v527, %v587
          %v592 = vadd.f32 %v582, %v588
          %v593 = vadd.f32 %v583, %v589
          %v594 = vadd.f32 %v584, %v590
          %v595 = vadd.f32 %v585, %v591
          %s596 = sld [smem:[#allocation3 + $0x2]]
          %v597 = vstv %s596
          %v598 = vmul.f32 %v528, %v597
          %v599 = vmul.f32 %v529, %v597
          %v600 = vmul.f32 %v530, %v597
          %v601 = vmul.f32 %v531, %v597
          %v602 = vadd.f32 %v592, %v598
          %v603 = vadd.f32 %v593, %v599
          %v604 = vadd.f32 %v594, %v600
          %v605 = vadd.f32 %v595, %v601
          %s606 = sld [smem:[#allocation3 + $0x3]]
          %v607 = vstv %s606
          %v608 = vmul.f32 %v532, %v607
          %v609 = vmul.f32 %v533, %v607
          %v610 = vmul.f32 %v534, %v607
          %v611 = vmul.f32 %v535, %v607
          %v612 = vadd.f32 %v602, %v608
          %v613 = vadd.f32 %v603, %v609
          %v614 = vadd.f32 %v604, %v610
          %v615 = vadd.f32 %v605, %v611
          %s616 = sld [smem:[#allocation3 + $0x4]]
          %v617 = vstv %s616
          %v618 = vmul.f32 %v536, %v617
          %v619 = vmul.f32 %v537, %v617
          %v620 = vmul.f32 %v538, %v617
          %v621 = vmul.f32 %v539, %v617
          %v622 = vadd.f32 %v612, %v618
          %v623 = vadd.f32 %v613, %v619
          %v624 = vadd.f32 %v614, %v620
          %v625 = vadd.f32 %v615, %v621
          %s626 = sld [smem:[#allocation3 + $0x5]]
          %v627 = vstv %s626
          %v628 = vmul.f32 %v540, %v627
          %v629 = vmul.f32 %v541, %v627
          %v630 = vmul.f32 %v542, %v627
          %v631 = vmul.f32 %v543, %v627
          %v632 = vadd.f32 %v622, %v628
          %v633 = vadd.f32 %v623, %v629
          %v634 = vadd.f32 %v624, %v630
          %v635 = vadd.f32 %v625, %v631
          %s636 = sld [smem:[#allocation3 + $0x6]]
          %v637 = vstv %s636
          %v638 = vmul.f32 %v544, %v637
          %v639 = vmul.f32 %v545, %v637
          %v640 = vmul.f32 %v546, %v637
          %v641 = vmul.f32 %v547, %v637
          %v642 = vadd.f32 %v632, %v638
          %v643 = vadd.f32 %v633, %v639
          %v644 = vadd.f32 %v634, %v640
          %v645 = vadd.f32 %v635, %v641
          %s646 = sld [smem:[#allocation3 + $0x7]]
          %v647 = vstv %s646
          %v648 = vmul.f32 %v548, %v647
          %v649 = vmul.f32 %v549, %v647
          %v650 = vmul.f32 %v550, %v647
          %v651 = vmul.f32 %v551, %v647
          %v652 = vadd.f32 %v642, %v648
          %v653 = vadd.f32 %v643, %v649
          %v654 = vadd.f32 %v644, %v650
          %v655 = vadd.f32 %v645, %v651
          %s656 = sld [smem:[#allocation4]]
          %v657 = vstv %s656
          %v658 = vadd.f32 %v652, %v657
          %v659 = vadd.f32 %v653, %v657
          %v660 = vadd.f32 %v654, %v657
          %v661 = vadd.f32 %v655, %v657
          %v662 = vmax.f32 %v658, 0.0
          %v663 = vmax.f32 %v659, 0.0
          %v664 = vmax.f32 %v660, 0.0
          %v665 = vmax.f32 %v661, 0.0
          %v666 = vmul.f32 %v573, %v662
          %v667 = vmul.f32 %v575, %v663
          %v668 = vmul.f32 %v577, %v664
          %v669 = vmul.f32 %v579, %v665
          %670 = vset.pattern.permute.xlu0 8
          %671 = vperm.xlu0 %670, %v213
          %v672 = vpop.permute.xlu0 %671
          %674 = vset.pattern.permute.xlu0 8
          %675 = vperm.xlu0 %674, %v214
          %v676 = vpop.permute.xlu0 %675
          %678 = vset.pattern.permute.xlu0 8
          %679 = vperm.xlu0 %678, %v215
          %v680 = vpop.permute.xlu0 %679
          %682 = vset.pattern.permute.xlu0 8
          %683 = vperm.xlu0 %682, %v216
          %v684 = vpop.permute.xlu0 %683
          %v686 = vmul.f32 %v666, %v672
          %v687 = vmul.f32 %v667, %v676
          %v688 = vmul.f32 %v668, %v680
          %v689 = vmul.f32 %v669, %v684
          %v690 = vld [vmem:[%s176] sm:$0x1]
          %v691 = vadd.f32 %v686, %v687
          %v692 = vadd.f32 %v691, %v688
          %v693 = vadd.f32 %v692, %v689
          %v694 = vrot.slane %v693, 4
          %v695 = vadd.f32 %v693, %v694
          %v696 = vrot.slane %v695, 2
          %v697 = vadd.f32 %v695, %v696
          %v698 = vrot.slane %v697, 1
          %v699 = vadd.f32 %v697, %v698
          %v700 = vadd.f32 %v690, %v699
          %701 = vst [vmem:[%s176] sm:$0x1] %v700
          %s702 = sld [smem:[#allocation3 + $0x80]]
          %v703 = vstv %s702
          %v704 = vmul.f32 %v520, %v703
          %v705 = vmul.f32 %v521, %v703
          %v706 = vmul.f32 %v522, %v703
          %v707 = vmul.f32 %v523, %v703
          %s708 = sld [smem:[#allocation3 + $0x81]]
          %v709 = vstv %s708
          %v710 = vmul.f32 %v524, %v709
          %v711 = vmul.f32 %v525, %v709
          %v712 = vmul.f32 %v526, %v709
          %v713 = vmul.f32 %v527, %v709
          %v714 = vadd.f32 %v704, %v710
          %v715 = vadd.f32 %v705, %v711
          %v716 = vadd.f32 %v706, %v712
          %v717 = vadd.f32 %v707, %v713
          %s718 = sld [smem:[#allocation3 + $0x82]]
          %v719 = vstv %s718
          %v720 = vmul.f32 %v528, %v719
          %v721 = vmul.f32 %v529, %v719
          %v722 = vmul.f32 %v530, %v719
          %v723 = vmul.f32 %v531, %v719
          %v724 = vadd.f32 %v714, %v720
          %v725 = vadd.f32 %v715, %v721
          %v726 = vadd.f32 %v716, %v722
          %v727 = vadd.f32 %v717, %v723
          %s728 = sld [smem:[#allocation3 + $0x83]]
          %v729 = vstv %s728
          %v730 = vmul.f32 %v532, %v729
          %v731 = vmul.f32 %v533, %v729
          %v732 = vmul.f32 %v534, %v729
          %v733 = vmul.f32 %v535, %v729
          %v734 = vadd.f32 %v724, %v730
          %v735 = vadd.f32 %v725, %v731
          %v736 = vadd.f32 %v726, %v732
          %v737 = vadd.f32 %v727, %v733
          %s738 = sld [smem:[#allocation3 + $0x84]]
          %v739 = vstv %s738
          %v740 = vmul.f32 %v536, %v739
          %v741 = vmul.f32 %v537, %v739
          %v742 = vmul.f32 %v538, %v739
          %v743 = vmul.f32 %v539, %v739
          %v744 = vadd.f32 %v734, %v740
          %v745 = vadd.f32 %v735, %v741
          %v746 = vadd.f32 %v736, %v742
          %v747 = vadd.f32 %v737, %v743
          %s748 = sld [smem:[#allocation3 + $0x85]]
          %v749 = vstv %s748
          %v750 = vmul.f32 %v540, %v749
          %v751 = vmul.f32 %v541, %v749
          %v752 = vmul.f32 %v542, %v749
          %v753 = vmul.f32 %v543, %v749
          %v754 = vadd.f32 %v744, %v750
          %v755 = vadd.f32 %v745, %v751
          %v756 = vadd.f32 %v746, %v752
          %v757 = vadd.f32 %v747, %v753
          %s758 = sld [smem:[#allocation3 + $0x86]]
          %v759 = vstv %s758
          %v760 = vmul.f32 %v544, %v759
          %v761 = vmul.f32 %v545, %v759
          %v762 = vmul.f32 %v546, %v759
          %v763 = vmul.f32 %v547, %v759
          %v764 = vadd.f32 %v754, %v760
          %v765 = vadd.f32 %v755, %v761
          %v766 = vadd.f32 %v756, %v762
          %v767 = vadd.f32 %v757, %v763
          %s768 = sld [smem:[#allocation3 + $0x87]]
          %v769 = vstv %s768
          %v770 = vmul.f32 %v548, %v769
          %v771 = vmul.f32 %v549, %v769
          %v772 = vmul.f32 %v550, %v769
          %v773 = vmul.f32 %v551, %v769
          %v774 = vadd.f32 %v764, %v770
          %v775 = vadd.f32 %v765, %v771
          %v776 = vadd.f32 %v766, %v772
          %v777 = vadd.f32 %v767, %v773
          %s778 = sld [smem:[#allocation4 + $0x1]]
          %v779 = vstv %s778
          %v780 = vadd.f32 %v774, %v779
          %v781 = vadd.f32 %v775, %v779
          %v782 = vadd.f32 %v776, %v779
          %v783 = vadd.f32 %v777, %v779
          %v784 = vmax.f32 %v780, 0.0
          %v785 = vmax.f32 %v781, 0.0
          %v786 = vmax.f32 %v782, 0.0
          %v787 = vmax.f32 %v783, 0.0
          %v788 = vmul.f32 %v573, %v784
          %v789 = vmul.f32 %v575, %v785
          %v790 = vmul.f32 %v577, %v786
          %v791 = vmul.f32 %v579, %v787
          %792 = vset.pattern.permute.xlu0 9
          %793 = vperm.xlu0 %792, %v213
          %v794 = vpop.permute.xlu0 %793
          %796 = vset.pattern.permute.xlu0 9
          %797 = vperm.xlu0 %796, %v214
          %v798 = vpop.permute.xlu0 %797
          %800 = vset.pattern.permute.xlu0 9
          %801 = vperm.xlu0 %800, %v215
          %v802 = vpop.permute.xlu0 %801
          %804 = vset.pattern.permute.xlu0 9
          %805 = vperm.xlu0 %804, %v216
          %v806 = vpop.permute.xlu0 %805
          %v808 = vmul.f32 %v788, %v794
          %v809 = vmul.f32 %v789, %v798
          %v810 = vmul.f32 %v790, %v802
          %v811 = vmul.f32 %v791, %v806
          %v812 = vld [vmem:[%s176 + $0x1] sm:$0x1]
          %v813 = vadd.f32 %v808, %v809
          %v814 = vadd.f32 %v813, %v810
          %v815 = vadd.f32 %v814, %v811
          %v816 = vrot.slane %v815, 4
          %v817 = vadd.f32 %v815, %v816
          %v818 = vrot.slane %v817, 2
          %v819 = vadd.f32 %v817, %v818
          %v820 = vrot.slane %v819, 1
          %v821 = vadd.f32 %v819, %v820
          %v822 = vadd.f32 %v812, %v821
          %823 = vst [vmem:[%s176 + $0x1] sm:$0x1] %v822
          %s824 = sld [smem:[#allocation3 + $0x100]]
          %v825 = vstv %s824
          %v826 = vmul.f32 %v520, %v825
          %v827 = vmul.f32 %v521, %v825
          %v828 = vmul.f32 %v522, %v825
          %v829 = vmul.f32 %v523, %v825
          %s830 = sld [smem:[#allocation3 + $0x101]]
          %v831 = vstv %s830
          %v832 = vmul.f32 %v524, %v831
          %v833 = vmul.f32 %v525, %v831
          %v834 = vmul.f32 %v526, %v831
          %v835 = vmul.f32 %v527, %v831
          %v836 = vadd.f32 %v826, %v832
          %v837 = vadd.f32 %v827, %v833
          %v838 = vadd.f32 %v828, %v834
          %v839 = vadd.f32 %v829, %v835
          %s840 = sld [smem:[#allocation3 + $0x102]]
          %v841 = vstv %s840
          %v842 = vmul.f32 %v528, %v841
          %v843 = vmul.f32 %v529, %v841
          %v844 = vmul.f32 %v530, %v841
          %v845 = vmul.f32 %v531, %v841
          %v846 = vadd.f32 %v836, %v842
          %v847 = vadd.f32 %v837, %v843
          %v848 = vadd.f32 %v838, %v844
          %v849 = vadd.f32 %v839, %v845
          %s850 = sld [smem:[#allocation3 + $0x103]]
          %v851 = vstv %s850
          %v852 = vmul.f32 %v532, %v851
          %v853 = vmul.f32 %v533, %v851
          %v854 = vmul.f32 %v534, %v851
          %v855 = vmul.f32 %v535, %v851
          %v856 = vadd.f32 %v846, %v852
          %v857 = vadd.f32 %v847, %v853
          %v858 = vadd.f32 %v848, %v854
          %v859 = vadd.f32 %v849, %v855
          %s860 = sld [smem:[#allocation3 + $0x104]]
          %v861 = vstv %s860
          %v862 = vmul.f32 %v536, %v861
          %v863 = vmul.f32 %v537, %v861
          %v864 = vmul.f32 %v538, %v861
          %v865 = vmul.f32 %v539, %v861
          %v866 = vadd.f32 %v856, %v862
          %v867 = vadd.f32 %v857, %v863
          %v868 = vadd.f32 %v858, %v864
          %v869 = vadd.f32 %v859, %v865
          %s870 = sld [smem:[#allocation3 + $0x105]]
          %v871 = vstv %s870
          %v872 = vmul.f32 %v540, %v871
          %v873 = vmul.f32 %v541, %v871
          %v874 = vmul.f32 %v542, %v871
          %v875 = vmul.f32 %v543, %v871
          %v876 = vadd.f32 %v866, %v872
          %v877 = vadd.f32 %v867, %v873
          %v878 = vadd.f32 %v868, %v874
          %v879 = vadd.f32 %v869, %v875
          %s880 = sld [smem:[#allocation3 + $0x106]]
          %v881 = vstv %s880
          %v882 = vmul.f32 %v544, %v881
          %v883 = vmul.f32 %v545, %v881
          %v884 = vmul.f32 %v546, %v881
          %v885 = vmul.f32 %v547, %v881
          %v886 = vadd.f32 %v876, %v882
          %v887 = vadd.f32 %v877, %v883
          %v888 = vadd.f32 %v878, %v884
          %v889 = vadd.f32 %v879, %v885
          %s890 = sld [smem:[#allocation3 + $0x107]]
          %v891 = vstv %s890
          %v892 = vmul.f32 %v548, %v891
          %v893 = vmul.f32 %v549, %v891
          %v894 = vmul.f32 %v550, %v891
          %v895 = vmul.f32 %v551, %v891
          %v896 = vadd.f32 %v886, %v892
          %v897 = vadd.f32 %v887, %v893
          %v898 = vadd.f32 %v888, %v894
          %v899 = vadd.f32 %v889, %v895
          %s900 = sld [smem:[#allocation4 + $0x2]]
          %v901 = vstv %s900
          %v902 = vadd.f32 %v896, %v901
          %v903 = vadd.f32 %v897, %v901
          %v904 = vadd.f32 %v898, %v901
          %v905 = vadd.f32 %v899, %v901
          %v906 = vmax.f32 %v902, 0.0
          %v907 = vmax.f32 %v903, 0.0
          %v908 = vmax.f32 %v904, 0.0
          %v909 = vmax.f32 %v905, 0.0
          %v910 = vmul.f32 %v573, %v906
          %v911 = vmul.f32 %v575, %v907
          %v912 = vmul.f32 %v577, %v908
          %v913 = vmul.f32 %v579, %v909
          %914 = vset.pattern.permute.xlu0 10
          %915 = vperm.xlu0 %914, %v213
          %v916 = vpop.permute.xlu0 %915
          %918 = vset.pattern.permute.xlu0 10
          %919 = vperm.xlu0 %918, %v214
          %v920 = vpop.permute.xlu0 %919
          %922 = vset.pattern.permute.xlu0 10
          %923 = vperm.xlu0 %922, %v215
          %v924 = vpop.permute.xlu0 %923
          %926 = vset.pattern.permute.xlu0 10
          %927 = vperm.xlu0 %926, %v216
          %v928 = vpop.permute.xlu0 %927
          %v930 = vmul.f32 %v910, %v916
          %v931 = vmul.f32 %v911, %v920
          %v932 = vmul.f32 %v912, %v924
          %v933 = vmul.f32 %v913, %v928
          %v934 = vld [vmem:[%s176 + $0x2] sm:$0x1]
          %v935 = vadd.f32 %v930, %v931
          %v936 = vadd.f32 %v935, %v932
          %v937 = vadd.f32 %v936, %v933
          %v938 = vrot.slane %v937, 4
          %v939 = vadd.f32 %v937, %v938
          %v940 = vrot.slane %v939, 2
          %v941 = vadd.f32 %v939, %v940
          %v942 = vrot.slane %v941, 1
          %v943 = vadd.f32 %v941, %v942
          %v944 = vadd.f32 %v934, %v943
          %945 = vst [vmem:[%s176 + $0x2] sm:$0x1] %v944
          %s946 = sld [smem:[#allocation3 + $0x180]]
          %v947 = vstv %s946
          %v948 = vmul.f32 %v520, %v947
          %v949 = vmul.f32 %v521, %v947
          %v950 = vmul.f32 %v522, %v947
          %v951 = vmul.f32 %v523, %v947
          %s952 = sld [smem:[#allocation3 + $0x181]]
          %v953 = vstv %s952
          %v954 = vmul.f32 %v524, %v953
          %v955 = vmul.f32 %v525, %v953
          %v956 = vmul.f32 %v526, %v953
          %v957 = vmul.f32 %v527, %v953
          %v958 = vadd.f32 %v948, %v954
          %v959 = vadd.f32 %v949, %v955
          %v960 = vadd.f32 %v950, %v956
          %v961 = vadd.f32 %v951, %v957
          %s962 = sld [smem:[#allocation3 + $0x182]]
          %v963 = vstv %s962
          %v964 = vmul.f32 %v528, %v963
          %v965 = vmul.f32 %v529, %v963
          %v966 = vmul.f32 %v530, %v963
          %v967 = vmul.f32 %v531, %v963
          %v968 = vadd.f32 %v958, %v964
          %v969 = vadd.f32 %v959, %v965
          %v970 = vadd.f32 %v960, %v966
          %v971 = vadd.f32 %v961, %v967
          %s972 = sld [smem:[#allocation3 + $0x183]]
          %v973 = vstv %s972
          %v974 = vmul.f32 %v532, %v973
          %v975 = vmul.f32 %v533, %v973
          %v976 = vmul.f32 %v534, %v973
          %v977 = vmul.f32 %v535, %v973
          %v978 = vadd.f32 %v968, %v974
          %v979 = vadd.f32 %v969, %v975
          %v980 = vadd.f32 %v970, %v976
          %v981 = vadd.f32 %v971, %v977
          %s982 = sld [smem:[#allocation3 + $0x184]]
          %v983 = vstv %s982
          %v984 = vmul.f32 %v536, %v983
          %v985 = vmul.f32 %v537, %v983
          %v986 = vmul.f32 %v538, %v983
          %v987 = vmul.f32 %v539, %v983
          %v988 = vadd.f32 %v978, %v984
          %v989 = vadd.f32 %v979, %v985
          %v990 = vadd.f32 %v980, %v986
          %v991 = vadd.f32 %v981, %v987
          %s992 = sld [smem:[#allocation3 + $0x185]]
          %v993 = vstv %s992
          %v994 = vmul.f32 %v540, %v993
          %v995 = vmul.f32 %v541, %v993
          %v996 = vmul.f32 %v542, %v993
          %v997 = vmul.f32 %v543, %v993
          %v998 = vadd.f32 %v988, %v994
          %v999 = vadd.f32 %v989, %v995
          %v1000 = vadd.f32 %v990, %v996
          %v1001 = vadd.f32 %v991, %v997
          %s1002 = sld [smem:[#allocation3 + $0x186]]
          %v1003 = vstv %s1002
          %v1004 = vmul.f32 %v544, %v1003
          %v1005 = vmul.f32 %v545, %v1003
          %v1006 = vmul.f32 %v546, %v1003
          %v1007 = vmul.f32 %v547, %v1003
          %v1008 = vadd.f32 %v998, %v1004
          %v1009 = vadd.f32 %v999, %v1005
          %v1010 = vadd.f32 %v1000, %v1006
          %v1011 = vadd.f32 %v1001, %v1007
          %s1012 = sld [smem:[#allocation3 + $0x187]]
          %v1013 = vstv %s1012
          %v1014 = vmul.f32 %v548, %v1013
          %v1015 = vmul.f32 %v549, %v1013
          %v1016 = vmul.f32 %v550, %v1013
          %v1017 = vmul.f32 %v551, %v1013
          %v1018 = vadd.f32 %v1008, %v1014
          %v1019 = vadd.f32 %v1009, %v1015
          %v1020 = vadd.f32 %v1010, %v1016
          %v1021 = vadd.f32 %v1011, %v1017
          %s1022 = sld [smem:[#allocation4 + $0x3]]
          %v1023 = vstv %s1022
          %v1024 = vadd.f32 %v1018, %v1023
          %v1025 = vadd.f32 %v1019, %v1023
          %v1026 = vadd.f32 %v1020, %v1023
          %v1027 = vadd.f32 %v1021, %v1023
          %v1028 = vmax.f32 %v1024, 0.0
          %v1029 = vmax.f32 %v1025, 0.0
          %v1030 = vmax.f32 %v1026, 0.0
          %v1031 = vmax.f32 %v1027, 0.0
          %v1032 = vmul.f32 %v573, %v1028
          %v1033 = vmul.f32 %v575, %v1029
          %v1034 = vmul.f32 %v577, %v1030
          %v1035 = vmul.f32 %v579, %v1031
          %1036 = vset.pattern.permute.xlu0 11
          %1037 = vperm.xlu0 %1036, %v213
          %v1038 = vpop.permute.xlu0 %1037
          %1040 = vset.pattern.permute.xlu0 11
          %1041 = vperm.xlu0 %1040, %v214
          %v1042 = vpop.permute.xlu0 %1041
          %1044 = vset.pattern.permute.xlu0 11
          %1045 = vperm.xlu0 %1044, %v215
          %v1046 = vpop.permute.xlu0 %1045
          %1048 = vset.pattern.permute.xlu0 11
          %1049 = vperm.xlu0 %1048, %v216
          %v1050 = vpop.permute.xlu0 %1049
          %v1052 = vmul.f32 %v1032, %v1038
          %v1053 = vmul.f32 %v1033, %v1042
          %v1054 = vmul.f32 %v1034, %v1046
          %v1055 = vmul.f32 %v1035, %v1050
          %v1056 = vld [vmem:[%s176 + $0x3] sm:$0x1]
          %v1057 = vadd.f32 %v1052, %v1053
          %v1058 = vadd.f32 %v1057, %v1054
          %v1059 = vadd.f32 %v1058, %v1055
          %v1060 = vrot.slane %v1059, 4
          %v1061 = vadd.f32 %v1059, %v1060
          %v1062 = vrot.slane %v1061, 2
          %v1063 = vadd.f32 %v1061, %v1062
          %v1064 = vrot.slane %v1063, 1
          %v1065 = vadd.f32 %v1063, %v1064
          %v1066 = vadd.f32 %v1056, %v1065
          %1067 = vst [vmem:[%s176 + $0x3] sm:$0x1] %v1066
          %s1068 = sld [smem:[#allocation3 + $0x200]]
          %v1069 = vstv %s1068
          %v1070 = vmul.f32 %v520, %v1069
          %v1071 = vmul.f32 %v521, %v1069
          %v1072 = vmul.f32 %v522, %v1069
          %v1073 = vmul.f32 %v523, %v1069
          %s1074 = sld [smem:[#allocation3 + $0x201]]
          %v1075 = vstv %s1074
          %v1076 = vmul.f32 %v524, %v1075
          %v1077 = vmul.f32 %v525, %v1075
          %v1078 = vmul.f32 %v526, %v1075
          %v1079 = vmul.f32 %v527, %v1075
          %v1080 = vadd.f32 %v1070, %v1076
          %v1081 = vadd.f32 %v1071, %v1077
          %v1082 = vadd.f32 %v1072, %v1078
          %v1083 = vadd.f32 %v1073, %v1079
          %s1084 = sld [smem:[#allocation3 + $0x202]]
          %v1085 = vstv %s1084
          %v1086 = vmul.f32 %v528, %v1085
          %v1087 = vmul.f32 %v529, %v1085
          %v1088 = vmul.f32 %v530, %v1085
          %v1089 = vmul.f32 %v531, %v1085
          %v1090 = vadd.f32 %v1080, %v1086
          %v1091 = vadd.f32 %v1081, %v1087
          %v1092 = vadd.f32 %v1082, %v1088
          %v1093 = vadd.f32 %v1083, %v1089
          %s1094 = sld [smem:[#allocation3 + $0x203]]
          %v1095 = vstv %s1094
          %v1096 = vmul.f32 %v532, %v1095
          %v1097 = vmul.f32 %v533, %v1095
          %v1098 = vmul.f32 %v534, %v1095
          %v1099 = vmul.f32 %v535, %v1095
          %v1100 = vadd.f32 %v1090, %v1096
          %v1101 = vadd.f32 %v1091, %v1097
          %v1102 = vadd.f32 %v1092, %v1098
          %v1103 = vadd.f32 %v1093, %v1099
          %s1104 = sld [smem:[#allocation3 + $0x204]]
          %v1105 = vstv %s1104
          %v1106 = vmul.f32 %v536, %v1105
          %v1107 = vmul.f32 %v537, %v1105
          %v1108 = vmul.f32 %v538, %v1105
          %v1109 = vmul.f32 %v539, %v1105
          %v1110 = vadd.f32 %v1100, %v1106
          %v1111 = vadd.f32 %v1101, %v1107
          %v1112 = vadd.f32 %v1102, %v1108
          %v1113 = vadd.f32 %v1103, %v1109
          %s1114 = sld [smem:[#allocation3 + $0x205]]
          %v1115 = vstv %s1114
          %v1116 = vmul.f32 %v540, %v1115
          %v1117 = vmul.f32 %v541, %v1115
          %v1118 = vmul.f32 %v542, %v1115
          %v1119 = vmul.f32 %v543, %v1115
          %v1120 = vadd.f32 %v1110, %v1116
          %v1121 = vadd.f32 %v1111, %v1117
          %v1122 = vadd.f32 %v1112, %v1118
          %v1123 = vadd.f32 %v1113, %v1119
          %s1124 = sld [smem:[#allocation3 + $0x206]]
          %v1125 = vstv %s1124
          %v1126 = vmul.f32 %v544, %v1125
          %v1127 = vmul.f32 %v545, %v1125
          %v1128 = vmul.f32 %v546, %v1125
          %v1129 = vmul.f32 %v547, %v1125
          %v1130 = vadd.f32 %v1120, %v1126
          %v1131 = vadd.f32 %v1121, %v1127
          %v1132 = vadd.f32 %v1122, %v1128
          %v1133 = vadd.f32 %v1123, %v1129
          %s1134 = sld [smem:[#allocation3 + $0x207]]
          %v1135 = vstv %s1134
          %v1136 = vmul.f32 %v548, %v1135
          %v1137 = vmul.f32 %v549, %v1135
          %v1138 = vmul.f32 %v550, %v1135
          %v1139 = vmul.f32 %v551, %v1135
          %v1140 = vadd.f32 %v1130, %v1136
          %v1141 = vadd.f32 %v1131, %v1137
          %v1142 = vadd.f32 %v1132, %v1138
          %v1143 = vadd.f32 %v1133, %v1139
          %s1144 = sld [smem:[#allocation4 + $0x4]]
          %v1145 = vstv %s1144
          %v1146 = vadd.f32 %v1140, %v1145
          %v1147 = vadd.f32 %v1141, %v1145
          %v1148 = vadd.f32 %v1142, %v1145
          %v1149 = vadd.f32 %v1143, %v1145
          %v1150 = vmax.f32 %v1146, 0.0
          %v1151 = vmax.f32 %v1147, 0.0
          %v1152 = vmax.f32 %v1148, 0.0
          %v1153 = vmax.f32 %v1149, 0.0
          %v1154 = vmul.f32 %v573, %v1150
          %v1155 = vmul.f32 %v575, %v1151
          %v1156 = vmul.f32 %v577, %v1152
          %v1157 = vmul.f32 %v579, %v1153
          %1158 = vset.pattern.permute.xlu0 12
          %1159 = vperm.xlu0 %1158, %v213
          %v1160 = vpop.permute.xlu0 %1159
          %1162 = vset.pattern.permute.xlu0 12
          %1163 = vperm.xlu0 %1162, %v214
          %v1164 = vpop.permute.xlu0 %1163
          %1166 = vset.pattern.permute.xlu0 12
          %1167 = vperm.xlu0 %1166, %v215
          %v1168 = vpop.permute.xlu0 %1167
          %1170 = vset.pattern.permute.xlu0 12
          %1171 = vperm.xlu0 %1170, %v216
          %v1172 = vpop.permute.xlu0 %1171
          %v1174 = vmul.f32 %v1154, %v1160
          %v1175 = vmul.f32 %v1155, %v1164
          %v1176 = vmul.f32 %v1156, %v1168
          %v1177 = vmul.f32 %v1157, %v1172
          %v1178 = vld [vmem:[%s176 + $0x4] sm:$0x1]
          %v1179 = vadd.f32 %v1174, %v1175
          %v1180 = vadd.f32 %v1179, %v1176
          %v1181 = vadd.f32 %v1180, %v1177
          %v1182 = vrot.slane %v1181, 4
          %v1183 = vadd.f32 %v1181, %v1182
          %v1184 = vrot.slane %v1183, 2
          %v1185 = vadd.f32 %v1183, %v1184
          %v1186 = vrot.slane %v1185, 1
          %v1187 = vadd.f32 %v1185, %v1186
          %v1188 = vadd.f32 %v1178, %v1187
          %1189 = vst [vmem:[%s176 + $0x4] sm:$0x1] %v1188
          %s1190 = sld [smem:[#allocation3 + $0x280]]
          %v1191 = vstv %s1190
          %v1192 = vmul.f32 %v520, %v1191
          %v1193 = vmul.f32 %v521, %v1191
          %v1194 = vmul.f32 %v522, %v1191
          %v1195 = vmul.f32 %v523, %v1191
          %s1196 = sld [smem:[#allocation3 + $0x281]]
          %v1197 = vstv %s1196
          %v1198 = vmul.f32 %v524, %v1197
          %v1199 = vmul.f32 %v525, %v1197
          %v1200 = vmul.f32 %v526, %v1197
          %v1201 = vmul.f32 %v527, %v1197
          %v1202 = vadd.f32 %v1192, %v1198
          %v1203 = vadd.f32 %v1193, %v1199
          %v1204 = vadd.f32 %v1194, %v1200
          %v1205 = vadd.f32 %v1195, %v1201
          %s1206 = sld [smem:[#allocation3 + $0x282]]
          %v1207 = vstv %s1206
          %v1208 = vmul.f32 %v528, %v1207
          %v1209 = vmul.f32 %v529, %v1207
          %v1210 = vmul.f32 %v530, %v1207
          %v1211 = vmul.f32 %v531, %v1207
          %v1212 = vadd.f32 %v1202, %v1208
          %v1213 = vadd.f32 %v1203, %v1209
          %v1214 = vadd.f32 %v1204, %v1210
          %v1215 = vadd.f32 %v1205, %v1211
          %s1216 = sld [smem:[#allocation3 + $0x283]]
          %v1217 = vstv %s1216
          %v1218 = vmul.f32 %v532, %v1217
          %v1219 = vmul.f32 %v533, %v1217
          %v1220 = vmul.f32 %v534, %v1217
          %v1221 = vmul.f32 %v535, %v1217
          %v1222 = vadd.f32 %v1212, %v1218
          %v1223 = vadd.f32 %v1213, %v1219
          %v1224 = vadd.f32 %v1214, %v1220
          %v1225 = vadd.f32 %v1215, %v1221
          %s1226 = sld [smem:[#allocation3 + $0x284]]
          %v1227 = vstv %s1226
          %v1228 = vmul.f32 %v536, %v1227
          %v1229 = vmul.f32 %v537, %v1227
          %v1230 = vmul.f32 %v538, %v1227
          %v1231 = vmul.f32 %v539, %v1227
          %v1232 = vadd.f32 %v1222, %v1228
          %v1233 = vadd.f32 %v1223, %v1229
          %v1234 = vadd.f32 %v1224, %v1230
          %v1235 = vadd.f32 %v1225, %v1231
          %s1236 = sld [smem:[#allocation3 + $0x285]]
          %v1237 = vstv %s1236
          %v1238 = vmul.f32 %v540, %v1237
          %v1239 = vmul.f32 %v541, %v1237
          %v1240 = vmul.f32 %v542, %v1237
          %v1241 = vmul.f32 %v543, %v1237
          %v1242 = vadd.f32 %v1232, %v1238
          %v1243 = vadd.f32 %v1233, %v1239
          %v1244 = vadd.f32 %v1234, %v1240
          %v1245 = vadd.f32 %v1235, %v1241
          %s1246 = sld [smem:[#allocation3 + $0x286]]
          %v1247 = vstv %s1246
          %v1248 = vmul.f32 %v544, %v1247
          %v1249 = vmul.f32 %v545, %v1247
          %v1250 = vmul.f32 %v546, %v1247
          %v1251 = vmul.f32 %v547, %v1247
          %v1252 = vadd.f32 %v1242, %v1248
          %v1253 = vadd.f32 %v1243, %v1249
          %v1254 = vadd.f32 %v1244, %v1250
          %v1255 = vadd.f32 %v1245, %v1251
          %s1256 = sld [smem:[#allocation3 + $0x287]]
          %v1257 = vstv %s1256
          %v1258 = vmul.f32 %v548, %v1257
          %v1259 = vmul.f32 %v549, %v1257
          %v1260 = vmul.f32 %v550, %v1257
          %v1261 = vmul.f32 %v551, %v1257
          %v1262 = vadd.f32 %v1252, %v1258
          %v1263 = vadd.f32 %v1253, %v1259
          %v1264 = vadd.f32 %v1254, %v1260
          %v1265 = vadd.f32 %v1255, %v1261
          %s1266 = sld [smem:[#allocation4 + $0x5]]
          %v1267 = vstv %s1266
          %v1268 = vadd.f32 %v1262, %v1267
          %v1269 = vadd.f32 %v1263, %v1267
          %v1270 = vadd.f32 %v1264, %v1267
          %v1271 = vadd.f32 %v1265, %v1267
          %v1272 = vmax.f32 %v1268, 0.0
          %v1273 = vmax.f32 %v1269, 0.0
          %v1274 = vmax.f32 %v1270, 0.0
          %v1275 = vmax.f32 %v1271, 0.0
          %v1276 = vmul.f32 %v573, %v1272
          %v1277 = vmul.f32 %v575, %v1273
          %v1278 = vmul.f32 %v577, %v1274
          %v1279 = vmul.f32 %v579, %v1275
          %1280 = vset.pattern.permute.xlu0 13
          %1281 = vperm.xlu0 %1280, %v213
          %v1282 = vpop.permute.xlu0 %1281
          %1284 = vset.pattern.permute.xlu0 13
          %1285 = vperm.xlu0 %1284, %v214
          %v1286 = vpop.permute.xlu0 %1285
          %1288 = vset.pattern.permute.xlu0 13
          %1289 = vperm.xlu0 %1288, %v215
          %v1290 = vpop.permute.xlu0 %1289
          %1292 = vset.pattern.permute.xlu0 13
          %1293 = vperm.xlu0 %1292, %v216
          %v1294 = vpop.permute.xlu0 %1293
          %v1296 = vmul.f32 %v1276, %v1282
          %v1297 = vmul.f32 %v1277, %v1286
          %v1298 = vmul.f32 %v1278, %v1290
          %v1299 = vmul.f32 %v1279, %v1294
          %v1300 = vld [vmem:[%s176 + $0x5] sm:$0x1]
          %v1301 = vadd.f32 %v1296, %v1297
          %v1302 = vadd.f32 %v1301, %v1298
          %v1303 = vadd.f32 %v1302, %v1299
          %v1304 = vrot.slane %v1303, 4
          %v1305 = vadd.f32 %v1303, %v1304
          %v1306 = vrot.slane %v1305, 2
          %v1307 = vadd.f32 %v1305, %v1306
          %v1308 = vrot.slane %v1307, 1
          %v1309 = vadd.f32 %v1307, %v1308
          %v1310 = vadd.f32 %v1300, %v1309
          %1311 = vst [vmem:[%s176 + $0x5] sm:$0x1] %v1310
          %s1312 = sld [smem:[#allocation3 + $0x300]]
          %v1313 = vstv %s1312
          %v1314 = vmul.f32 %v520, %v1313
          %v1315 = vmul.f32 %v521, %v1313
          %v1316 = vmul.f32 %v522, %v1313
          %v1317 = vmul.f32 %v523, %v1313
          %s1318 = sld [smem:[#allocation3 + $0x301]]
          %v1319 = vstv %s1318
          %v1320 = vmul.f32 %v524, %v1319
          %v1321 = vmul.f32 %v525, %v1319
          %v1322 = vmul.f32 %v526, %v1319
          %v1323 = vmul.f32 %v527, %v1319
          %v1324 = vadd.f32 %v1314, %v1320
          %v1325 = vadd.f32 %v1315, %v1321
          %v1326 = vadd.f32 %v1316, %v1322
          %v1327 = vadd.f32 %v1317, %v1323
          %s1328 = sld [smem:[#allocation3 + $0x302]]
          %v1329 = vstv %s1328
          %v1330 = vmul.f32 %v528, %v1329
          %v1331 = vmul.f32 %v529, %v1329
          %v1332 = vmul.f32 %v530, %v1329
          %v1333 = vmul.f32 %v531, %v1329
          %v1334 = vadd.f32 %v1324, %v1330
          %v1335 = vadd.f32 %v1325, %v1331
          %v1336 = vadd.f32 %v1326, %v1332
          %v1337 = vadd.f32 %v1327, %v1333
          %s1338 = sld [smem:[#allocation3 + $0x303]]
          %v1339 = vstv %s1338
          %v1340 = vmul.f32 %v532, %v1339
          %v1341 = vmul.f32 %v533, %v1339
          %v1342 = vmul.f32 %v534, %v1339
          %v1343 = vmul.f32 %v535, %v1339
          %v1344 = vadd.f32 %v1334, %v1340
          %v1345 = vadd.f32 %v1335, %v1341
          %v1346 = vadd.f32 %v1336, %v1342
          %v1347 = vadd.f32 %v1337, %v1343
          %s1348 = sld [smem:[#allocation3 + $0x304]]
          %v1349 = vstv %s1348
          %v1350 = vmul.f32 %v536, %v1349
          %v1351 = vmul.f32 %v537, %v1349
          %v1352 = vmul.f32 %v538, %v1349
          %v1353 = vmul.f32 %v539, %v1349
          %v1354 = vadd.f32 %v1344, %v1350
          %v1355 = vadd.f32 %v1345, %v1351
          %v1356 = vadd.f32 %v1346, %v1352
          %v1357 = vadd.f32 %v1347, %v1353
          %s1358 = sld [smem:[#allocation3 + $0x305]]
          %v1359 = vstv %s1358
          %v1360 = vmul.f32 %v540, %v1359
          %v1361 = vmul.f32 %v541, %v1359
          %v1362 = vmul.f32 %v542, %v1359
          %v1363 = vmul.f32 %v543, %v1359
          %v1364 = vadd.f32 %v1354, %v1360
          %v1365 = vadd.f32 %v1355, %v1361
          %v1366 = vadd.f32 %v1356, %v1362
          %v1367 = vadd.f32 %v1357, %v1363
          %s1368 = sld [smem:[#allocation3 + $0x306]]
          %v1369 = vstv %s1368
          %v1370 = vmul.f32 %v544, %v1369
          %v1371 = vmul.f32 %v545, %v1369
          %v1372 = vmul.f32 %v546, %v1369
          %v1373 = vmul.f32 %v547, %v1369
          %v1374 = vadd.f32 %v1364, %v1370
          %v1375 = vadd.f32 %v1365, %v1371
          %v1376 = vadd.f32 %v1366, %v1372
          %v1377 = vadd.f32 %v1367, %v1373
          %s1378 = sld [smem:[#allocation3 + $0x307]]
          %v1379 = vstv %s1378
          %v1380 = vmul.f32 %v548, %v1379
          %v1381 = vmul.f32 %v549, %v1379
          %v1382 = vmul.f32 %v550, %v1379
          %v1383 = vmul.f32 %v551, %v1379
          %v1384 = vadd.f32 %v1374, %v1380
          %v1385 = vadd.f32 %v1375, %v1381
          %v1386 = vadd.f32 %v1376, %v1382
          %v1387 = vadd.f32 %v1377, %v1383
          %s1388 = sld [smem:[#allocation4 + $0x6]]
          %v1389 = vstv %s1388
          %v1390 = vadd.f32 %v1384, %v1389
          %v1391 = vadd.f32 %v1385, %v1389
          %v1392 = vadd.f32 %v1386, %v1389
          %v1393 = vadd.f32 %v1387, %v1389
          %v1394 = vmax.f32 %v1390, 0.0
          %v1395 = vmax.f32 %v1391, 0.0
          %v1396 = vmax.f32 %v1392, 0.0
          %v1397 = vmax.f32 %v1393, 0.0
          %v1398 = vmul.f32 %v573, %v1394
          %v1399 = vmul.f32 %v575, %v1395
          %v1400 = vmul.f32 %v577, %v1396
          %v1401 = vmul.f32 %v579, %v1397
          %1402 = vset.pattern.permute.xlu0 14
          %1403 = vperm.xlu0 %1402, %v213
          %v1404 = vpop.permute.xlu0 %1403
          %1406 = vset.pattern.permute.xlu0 14
          %1407 = vperm.xlu0 %1406, %v214
          %v1408 = vpop.permute.xlu0 %1407
          %1410 = vset.pattern.permute.xlu0 14
          %1411 = vperm.xlu0 %1410, %v215
          %v1412 = vpop.permute.xlu0 %1411
          %1414 = vset.pattern.permute.xlu0 14
          %1415 = vperm.xlu0 %1414, %v216
          %v1416 = vpop.permute.xlu0 %1415
          %v1418 = vmul.f32 %v1398, %v1404
          %v1419 = vmul.f32 %v1399, %v1408
          %v1420 = vmul.f32 %v1400, %v1412
          %v1421 = vmul.f32 %v1401, %v1416
          %v1422 = vld [vmem:[%s176 + $0x6] sm:$0x1]
          %v1423 = vadd.f32 %v1418, %v1419
          %v1424 = vadd.f32 %v1423, %v1420
          %v1425 = vadd.f32 %v1424, %v1421
          %v1426 = vrot.slane %v1425, 4
          %v1427 = vadd.f32 %v1425, %v1426
          %v1428 = vrot.slane %v1427, 2
          %v1429 = vadd.f32 %v1427, %v1428
          %v1430 = vrot.slane %v1429, 1
          %v1431 = vadd.f32 %v1429, %v1430
          %v1432 = vadd.f32 %v1422, %v1431
          %1433 = vst [vmem:[%s176 + $0x6] sm:$0x1] %v1432
          %s1434 = sld [smem:[#allocation3 + $0x380]]
          %v1435 = vstv %s1434
          %v1436 = vmul.f32 %v520, %v1435
          %v1437 = vmul.f32 %v521, %v1435
          %v1438 = vmul.f32 %v522, %v1435
          %v1439 = vmul.f32 %v523, %v1435
          %s1440 = sld [smem:[#allocation3 + $0x381]]
          %v1441 = vstv %s1440
          %v1442 = vmul.f32 %v524, %v1441
          %v1443 = vmul.f32 %v525, %v1441
          %v1444 = vmul.f32 %v526, %v1441
          %v1445 = vmul.f32 %v527, %v1441
          %v1446 = vadd.f32 %v1436, %v1442
          %v1447 = vadd.f32 %v1437, %v1443
          %v1448 = vadd.f32 %v1438, %v1444
          %v1449 = vadd.f32 %v1439, %v1445
          %s1450 = sld [smem:[#allocation3 + $0x382]]
          %v1451 = vstv %s1450
          %v1452 = vmul.f32 %v528, %v1451
          %v1453 = vmul.f32 %v529, %v1451
          %v1454 = vmul.f32 %v530, %v1451
          %v1455 = vmul.f32 %v531, %v1451
          %v1456 = vadd.f32 %v1446, %v1452
          %v1457 = vadd.f32 %v1447, %v1453
          %v1458 = vadd.f32 %v1448, %v1454
          %v1459 = vadd.f32 %v1449, %v1455
          %s1460 = sld [smem:[#allocation3 + $0x383]]
          %v1461 = vstv %s1460
          %v1462 = vmul.f32 %v532, %v1461
          %v1463 = vmul.f32 %v533, %v1461
          %v1464 = vmul.f32 %v534, %v1461
          %v1465 = vmul.f32 %v535, %v1461
          %v1466 = vadd.f32 %v1456, %v1462
          %v1467 = vadd.f32 %v1457, %v1463
          %v1468 = vadd.f32 %v1458, %v1464
          %v1469 = vadd.f32 %v1459, %v1465
          %s1470 = sld [smem:[#allocation3 + $0x384]]
          %v1471 = vstv %s1470
          %v1472 = vmul.f32 %v536, %v1471
          %v1473 = vmul.f32 %v537, %v1471
          %v1474 = vmul.f32 %v538, %v1471
          %v1475 = vmul.f32 %v539, %v1471
          %v1476 = vadd.f32 %v1466, %v1472
          %v1477 = vadd.f32 %v1467, %v1473
          %v1478 = vadd.f32 %v1468, %v1474
          %v1479 = vadd.f32 %v1469, %v1475
          %s1480 = sld [smem:[#allocation3 + $0x385]]
          %v1481 = vstv %s1480
          %v1482 = vmul.f32 %v540, %v1481
          %v1483 = vmul.f32 %v541, %v1481
          %v1484 = vmul.f32 %v542, %v1481
          %v1485 = vmul.f32 %v543, %v1481
          %v1486 = vadd.f32 %v1476, %v1482
          %v1487 = vadd.f32 %v1477, %v1483
          %v1488 = vadd.f32 %v1478, %v1484
          %v1489 = vadd.f32 %v1479, %v1485
          %s1490 = sld [smem:[#allocation3 + $0x386]]
          %v1491 = vstv %s1490
          %v1492 = vmul.f32 %v544, %v1491
          %v1493 = vmul.f32 %v545, %v1491
          %v1494 = vmul.f32 %v546, %v1491
          %v1495 = vmul.f32 %v547, %v1491
          %v1496 = vadd.f32 %v1486, %v1492
          %v1497 = vadd.f32 %v1487, %v1493
          %v1498 = vadd.f32 %v1488, %v1494
          %v1499 = vadd.f32 %v1489, %v1495
          %s1500 = sld [smem:[#allocation3 + $0x387]]
          %v1501 = vstv %s1500
          %v1502 = vmul.f32 %v548, %v1501
          %v1503 = vmul.f32 %v549, %v1501
          %v1504 = vmul.f32 %v550, %v1501
          %v1505 = vmul.f32 %v551, %v1501
          %v1506 = vadd.f32 %v1496, %v1502
          %v1507 = vadd.f32 %v1497, %v1503
          %v1508 = vadd.f32 %v1498, %v1504
          %v1509 = vadd.f32 %v1499, %v1505
          %s1510 = sld [smem:[#allocation4 + $0x7]]
          %v1511 = vstv %s1510
          %v1512 = vadd.f32 %v1506, %v1511
          %v1513 = vadd.f32 %v1507, %v1511
          %v1514 = vadd.f32 %v1508, %v1511
          %v1515 = vadd.f32 %v1509, %v1511
          %v1516 = vmax.f32 %v1512, 0.0
          %v1517 = vmax.f32 %v1513, 0.0
          %v1518 = vmax.f32 %v1514, 0.0
          %v1519 = vmax.f32 %v1515, 0.0
          %v1520 = vmul.f32 %v573, %v1516
          %v1521 = vmul.f32 %v575, %v1517
          %v1522 = vmul.f32 %v577, %v1518
          %v1523 = vmul.f32 %v579, %v1519
          %1524 = vset.pattern.permute.xlu0 15
          %1525 = vperm.xlu0 %1524, %v213
          %v1526 = vpop.permute.xlu0 %1525
          %1528 = vset.pattern.permute.xlu0 15
          %1529 = vperm.xlu0 %1528, %v214
          %v1530 = vpop.permute.xlu0 %1529
          %1532 = vset.pattern.permute.xlu0 15
          %1533 = vperm.xlu0 %1532, %v215
          %v1534 = vpop.permute.xlu0 %1533
          %1536 = vset.pattern.permute.xlu0 15
          %1537 = vperm.xlu0 %1536, %v216
          %v1538 = vpop.permute.xlu0 %1537
          %v1540 = vmul.f32 %v1520, %v1526
          %v1541 = vmul.f32 %v1521, %v1530
          %v1542 = vmul.f32 %v1522, %v1534
          %v1543 = vmul.f32 %v1523, %v1538
          %v1544 = vld [vmem:[%s176 + $0x7] sm:$0x1]
          %v1545 = vadd.f32 %v1540, %v1541
          %v1546 = vadd.f32 %v1545, %v1542
          %v1547 = vadd.f32 %v1546, %v1543
          %v1548 = vrot.slane %v1547, 4
          %v1549 = vadd.f32 %v1547, %v1548
          %v1550 = vrot.slane %v1549, 2
          %v1551 = vadd.f32 %v1549, %v1550
          %v1552 = vrot.slane %v1551, 1
          %v1553 = vadd.f32 %v1551, %v1552
          %v1554 = vadd.f32 %v1544, %v1553
          %1555 = vst [vmem:[%s176 + $0x7] sm:$0x1] %v1554
          %s1556 = sld [smem:[#allocation3 + $0x400]]
          %v1557 = vstv %s1556
          %v1558 = vmul.f32 %v520, %v1557
          %v1559 = vmul.f32 %v521, %v1557
          %v1560 = vmul.f32 %v522, %v1557
          %v1561 = vmul.f32 %v523, %v1557
          %s1562 = sld [smem:[#allocation3 + $0x401]]
          %v1563 = vstv %s1562
          %v1564 = vmul.f32 %v524, %v1563
          %v1565 = vmul.f32 %v525, %v1563
          %v1566 = vmul.f32 %v526, %v1563
          %v1567 = vmul.f32 %v527, %v1563
          %v1568 = vadd.f32 %v1558, %v1564
          %v1569 = vadd.f32 %v1559, %v1565
          %v1570 = vadd.f32 %v1560, %v1566
          %v1571 = vadd.f32 %v1561, %v1567
          %s1572 = sld [smem:[#allocation3 + $0x402]]
          %v1573 = vstv %s1572
          %v1574 = vmul.f32 %v528, %v1573
          %v1575 = vmul.f32 %v529, %v1573
          %v1576 = vmul.f32 %v530, %v1573
          %v1577 = vmul.f32 %v531, %v1573
          %v1578 = vadd.f32 %v1568, %v1574
          %v1579 = vadd.f32 %v1569, %v1575
          %v1580 = vadd.f32 %v1570, %v1576
          %v1581 = vadd.f32 %v1571, %v1577
          %s1582 = sld [smem:[#allocation3 + $0x403]]
          %v1583 = vstv %s1582
          %v1584 = vmul.f32 %v532, %v1583
          %v1585 = vmul.f32 %v533, %v1583
          %v1586 = vmul.f32 %v534, %v1583
          %v1587 = vmul.f32 %v535, %v1583
          %v1588 = vadd.f32 %v1578, %v1584
          %v1589 = vadd.f32 %v1579, %v1585
          %v1590 = vadd.f32 %v1580, %v1586
          %v1591 = vadd.f32 %v1581, %v1587
          %s1592 = sld [smem:[#allocation3 + $0x404]]
          %v1593 = vstv %s1592
          %v1594 = vmul.f32 %v536, %v1593
          %v1595 = vmul.f32 %v537, %v1593
          %v1596 = vmul.f32 %v538, %v1593
          %v1597 = vmul.f32 %v539, %v1593
          %v1598 = vadd.f32 %v1588, %v1594
          %v1599 = vadd.f32 %v1589, %v1595
          %v1600 = vadd.f32 %v1590, %v1596
          %v1601 = vadd.f32 %v1591, %v1597
          %s1602 = sld [smem:[#allocation3 + $0x405]]
          %v1603 = vstv %s1602
          %v1604 = vmul.f32 %v540, %v1603
          %v1605 = vmul.f32 %v541, %v1603
          %v1606 = vmul.f32 %v542, %v1603
          %v1607 = vmul.f32 %v543, %v1603
          %v1608 = vadd.f32 %v1598, %v1604
          %v1609 = vadd.f32 %v1599, %v1605
          %v1610 = vadd.f32 %v1600, %v1606
          %v1611 = vadd.f32 %v1601, %v1607
          %s1612 = sld [smem:[#allocation3 + $0x406]]
          %v1613 = vstv %s1612
          %v1614 = vmul.f32 %v544, %v1613
          %v1615 = vmul.f32 %v545, %v1613
          %v1616 = vmul.f32 %v546, %v1613
          %v1617 = vmul.f32 %v547, %v1613
          %v1618 = vadd.f32 %v1608, %v1614
          %v1619 = vadd.f32 %v1609, %v1615
          %v1620 = vadd.f32 %v1610, %v1616
          %v1621 = vadd.f32 %v1611, %v1617
          %s1622 = sld [smem:[#allocation3 + $0x407]]
          %v1623 = vstv %s1622
          %v1624 = vmul.f32 %v548, %v1623
          %v1625 = vmul.f32 %v549, %v1623
          %v1626 = vmul.f32 %v550, %v1623
          %v1627 = vmul.f32 %v551, %v1623
          %v1628 = vadd.f32 %v1618, %v1624
          %v1629 = vadd.f32 %v1619, %v1625
          %v1630 = vadd.f32 %v1620, %v1626
          %v1631 = vadd.f32 %v1621, %v1627
          %s1632 = sld [smem:[#allocation4 + $0x8]]
          %v1633 = vstv %s1632
          %v1634 = vadd.f32 %v1628, %v1633
          %v1635 = vadd.f32 %v1629, %v1633
          %v1636 = vadd.f32 %v1630, %v1633
          %v1637 = vadd.f32 %v1631, %v1633
          %v1638 = vmax.f32 %v1634, 0.0
          %v1639 = vmax.f32 %v1635, 0.0
          %v1640 = vmax.f32 %v1636, 0.0
          %v1641 = vmax.f32 %v1637, 0.0
          %v1642 = vmul.f32 %v573, %v1638
          %v1643 = vmul.f32 %v575, %v1639
          %v1644 = vmul.f32 %v577, %v1640
          %v1645 = vmul.f32 %v579, %v1641
          %1646 = vset.pattern.permute.xlu0 16
          %1647 = vperm.xlu0 %1646, %v213
          %v1648 = vpop.permute.xlu0 %1647
          %1650 = vset.pattern.permute.xlu0 16
          %1651 = vperm.xlu0 %1650, %v214
          %v1652 = vpop.permute.xlu0 %1651
          %1654 = vset.pattern.permute.xlu0 16
          %1655 = vperm.xlu0 %1654, %v215
          %v1656 = vpop.permute.xlu0 %1655
          %1658 = vset.pattern.permute.xlu0 16
          %1659 = vperm.xlu0 %1658, %v216
          %v1660 = vpop.permute.xlu0 %1659
          %v1662 = vmul.f32 %v1642, %v1648
          %v1663 = vmul.f32 %v1643, %v1652
          %v1664 = vmul.f32 %v1644, %v1656
          %v1665 = vmul.f32 %v1645, %v1660
          %v1666 = vld [vmem:[%s176 + $0x8] sm:$0x1]
          %v1667 = vadd.f32 %v1662, %v1663
          %v1668 = vadd.f32 %v1667, %v1664
          %v1669 = vadd.f32 %v1668, %v1665
          %v1670 = vrot.slane %v1669, 4
          %v1671 = vadd.f32 %v1669, %v1670
          %v1672 = vrot.slane %v1671, 2
          %v1673 = vadd.f32 %v1671, %v1672
          %v1674 = vrot.slane %v1673, 1
          %v1675 = vadd.f32 %v1673, %v1674
          %v1676 = vadd.f32 %v1666, %v1675
          %1677 = vst [vmem:[%s176 + $0x8] sm:$0x1] %v1676
          %s1678 = sld [smem:[#allocation3 + $0x480]]
          %v1679 = vstv %s1678
          %v1680 = vmul.f32 %v520, %v1679
          %v1681 = vmul.f32 %v521, %v1679
          %v1682 = vmul.f32 %v522, %v1679
          %v1683 = vmul.f32 %v523, %v1679
          %s1684 = sld [smem:[#allocation3 + $0x481]]
          %v1685 = vstv %s1684
          %v1686 = vmul.f32 %v524, %v1685
          %v1687 = vmul.f32 %v525, %v1685
          %v1688 = vmul.f32 %v526, %v1685
          %v1689 = vmul.f32 %v527, %v1685
          %v1690 = vadd.f32 %v1680, %v1686
          %v1691 = vadd.f32 %v1681, %v1687
          %v1692 = vadd.f32 %v1682, %v1688
          %v1693 = vadd.f32 %v1683, %v1689
          %s1694 = sld [smem:[#allocation3 + $0x482]]
          %v1695 = vstv %s1694
          %v1696 = vmul.f32 %v528, %v1695
          %v1697 = vmul.f32 %v529, %v1695
          %v1698 = vmul.f32 %v530, %v1695
          %v1699 = vmul.f32 %v531, %v1695
          %v1700 = vadd.f32 %v1690, %v1696
          %v1701 = vadd.f32 %v1691, %v1697
          %v1702 = vadd.f32 %v1692, %v1698
          %v1703 = vadd.f32 %v1693, %v1699
          %s1704 = sld [smem:[#allocation3 + $0x483]]
          %v1705 = vstv %s1704
          %v1706 = vmul.f32 %v532, %v1705
          %v1707 = vmul.f32 %v533, %v1705
          %v1708 = vmul.f32 %v534, %v1705
          %v1709 = vmul.f32 %v535, %v1705
          %v1710 = vadd.f32 %v1700, %v1706
          %v1711 = vadd.f32 %v1701, %v1707
          %v1712 = vadd.f32 %v1702, %v1708
          %v1713 = vadd.f32 %v1703, %v1709
          %s1714 = sld [smem:[#allocation3 + $0x484]]
          %v1715 = vstv %s1714
          %v1716 = vmul.f32 %v536, %v1715
          %v1717 = vmul.f32 %v537, %v1715
          %v1718 = vmul.f32 %v538, %v1715
          %v1719 = vmul.f32 %v539, %v1715
          %v1720 = vadd.f32 %v1710, %v1716
          %v1721 = vadd.f32 %v1711, %v1717
          %v1722 = vadd.f32 %v1712, %v1718
          %v1723 = vadd.f32 %v1713, %v1719
          %s1724 = sld [smem:[#allocation3 + $0x485]]
          %v1725 = vstv %s1724
          %v1726 = vmul.f32 %v540, %v1725
          %v1727 = vmul.f32 %v541, %v1725
          %v1728 = vmul.f32 %v542, %v1725
          %v1729 = vmul.f32 %v543, %v1725
          %v1730 = vadd.f32 %v1720, %v1726
          %v1731 = vadd.f32 %v1721, %v1727
          %v1732 = vadd.f32 %v1722, %v1728
          %v1733 = vadd.f32 %v1723, %v1729
          %s1734 = sld [smem:[#allocation3 + $0x486]]
          %v1735 = vstv %s1734
          %v1736 = vmul.f32 %v544, %v1735
          %v1737 = vmul.f32 %v545, %v1735
          %v1738 = vmul.f32 %v546, %v1735
          %v1739 = vmul.f32 %v547, %v1735
          %v1740 = vadd.f32 %v1730, %v1736
          %v1741 = vadd.f32 %v1731, %v1737
          %v1742 = vadd.f32 %v1732, %v1738
          %v1743 = vadd.f32 %v1733, %v1739
          %s1744 = sld [smem:[#allocation3 + $0x487]]
          %v1745 = vstv %s1744
          %v1746 = vmul.f32 %v548, %v1745
          %v1747 = vmul.f32 %v549, %v1745
          %v1748 = vmul.f32 %v550, %v1745
          %v1749 = vmul.f32 %v551, %v1745
          %v1750 = vadd.f32 %v1740, %v1746
          %v1751 = vadd.f32 %v1741, %v1747
          %v1752 = vadd.f32 %v1742, %v1748
          %v1753 = vadd.f32 %v1743, %v1749
          %s1754 = sld [smem:[#allocation4 + $0x9]]
          %v1755 = vstv %s1754
          %v1756 = vadd.f32 %v1750, %v1755
          %v1757 = vadd.f32 %v1751, %v1755
          %v1758 = vadd.f32 %v1752, %v1755
          %v1759 = vadd.f32 %v1753, %v1755
          %v1760 = vmax.f32 %v1756, 0.0
          %v1761 = vmax.f32 %v1757, 0.0
          %v1762 = vmax.f32 %v1758, 0.0
          %v1763 = vmax.f32 %v1759, 0.0
          %v1764 = vmul.f32 %v573, %v1760
          %v1765 = vmul.f32 %v575, %v1761
          %v1766 = vmul.f32 %v577, %v1762
          %v1767 = vmul.f32 %v579, %v1763
          %1768 = vset.pattern.permute.xlu0 17
          %1769 = vperm.xlu0 %1768, %v213
          %v1770 = vpop.permute.xlu0 %1769
          %1772 = vset.pattern.permute.xlu0 17
          %1773 = vperm.xlu0 %1772, %v214
          %v1774 = vpop.permute.xlu0 %1773
          %1776 = vset.pattern.permute.xlu0 17
          %1777 = vperm.xlu0 %1776, %v215
          %v1778 = vpop.permute.xlu0 %1777
          %1780 = vset.pattern.permute.xlu0 17
          %1781 = vperm.xlu0 %1780, %v216
          %v1782 = vpop.permute.xlu0 %1781
          %v1784 = vmul.f32 %v1764, %v1770
          %v1785 = vmul.f32 %v1765, %v1774
          %v1786 = vmul.f32 %v1766, %v1778
          %v1787 = vmul.f32 %v1767, %v1782
          %v1788 = vld [vmem:[%s176 + $0x9] sm:$0x1]
          %v1789 = vadd.f32 %v1784, %v1785
          %v1790 = vadd.f32 %v1789, %v1786
          %v1791 = vadd.f32 %v1790, %v1787
          %v1792 = vrot.slane %v1791, 4
          %v1793 = vadd.f32 %v1791, %v1792
          %v1794 = vrot.slane %v1793, 2
          %v1795 = vadd.f32 %v1793, %v1794
          %v1796 = vrot.slane %v1795, 1
          %v1797 = vadd.f32 %v1795, %v1796
          %v1798 = vadd.f32 %v1788, %v1797
          %1799 = vst [vmem:[%s176 + $0x9] sm:$0x1] %v1798
          %s1800 = sld [smem:[#allocation3 + $0x500]]
          %v1801 = vstv %s1800
          %v1802 = vmul.f32 %v520, %v1801
          %v1803 = vmul.f32 %v521, %v1801
          %v1804 = vmul.f32 %v522, %v1801
          %v1805 = vmul.f32 %v523, %v1801
          %s1806 = sld [smem:[#allocation3 + $0x501]]
          %v1807 = vstv %s1806
          %v1808 = vmul.f32 %v524, %v1807
          %v1809 = vmul.f32 %v525, %v1807
          %v1810 = vmul.f32 %v526, %v1807
          %v1811 = vmul.f32 %v527, %v1807
          %v1812 = vadd.f32 %v1802, %v1808
          %v1813 = vadd.f32 %v1803, %v1809
          %v1814 = vadd.f32 %v1804, %v1810
          %v1815 = vadd.f32 %v1805, %v1811
          %s1816 = sld [smem:[#allocation3 + $0x502]]
          %v1817 = vstv %s1816
          %v1818 = vmul.f32 %v528, %v1817
          %v1819 = vmul.f32 %v529, %v1817
          %v1820 = vmul.f32 %v530, %v1817
          %v1821 = vmul.f32 %v531, %v1817
          %v1822 = vadd.f32 %v1812, %v1818
          %v1823 = vadd.f32 %v1813, %v1819
          %v1824 = vadd.f32 %v1814, %v1820
          %v1825 = vadd.f32 %v1815, %v1821
          %s1826 = sld [smem:[#allocation3 + $0x503]]
          %v1827 = vstv %s1826
          %v1828 = vmul.f32 %v532, %v1827
          %v1829 = vmul.f32 %v533, %v1827
          %v1830 = vmul.f32 %v534, %v1827
          %v1831 = vmul.f32 %v535, %v1827
          %v1832 = vadd.f32 %v1822, %v1828
          %v1833 = vadd.f32 %v1823, %v1829
          %v1834 = vadd.f32 %v1824, %v1830
          %v1835 = vadd.f32 %v1825, %v1831
          %s1836 = sld [smem:[#allocation3 + $0x504]]
          %v1837 = vstv %s1836
          %v1838 = vmul.f32 %v536, %v1837
          %v1839 = vmul.f32 %v537, %v1837
          %v1840 = vmul.f32 %v538, %v1837
          %v1841 = vmul.f32 %v539, %v1837
          %v1842 = vadd.f32 %v1832, %v1838
          %v1843 = vadd.f32 %v1833, %v1839
          %v1844 = vadd.f32 %v1834, %v1840
          %v1845 = vadd.f32 %v1835, %v1841
          %s1846 = sld [smem:[#allocation3 + $0x505]]
          %v1847 = vstv %s1846
          %v1848 = vmul.f32 %v540, %v1847
          %v1849 = vmul.f32 %v541, %v1847
          %v1850 = vmul.f32 %v542, %v1847
          %v1851 = vmul.f32 %v543, %v1847
          %v1852 = vadd.f32 %v1842, %v1848
          %v1853 = vadd.f32 %v1843, %v1849
          %v1854 = vadd.f32 %v1844, %v1850
          %v1855 = vadd.f32 %v1845, %v1851
          %s1856 = sld [smem:[#allocation3 + $0x506]]
          %v1857 = vstv %s1856
          %v1858 = vmul.f32 %v544, %v1857
          %v1859 = vmul.f32 %v545, %v1857
          %v1860 = vmul.f32 %v546, %v1857
          %v1861 = vmul.f32 %v547, %v1857
          %v1862 = vadd.f32 %v1852, %v1858
          %v1863 = vadd.f32 %v1853, %v1859
          %v1864 = vadd.f32 %v1854, %v1860
          %v1865 = vadd.f32 %v1855, %v1861
          %s1866 = sld [smem:[#allocation3 + $0x507]]
          %v1867 = vstv %s1866
          %v1868 = vmul.f32 %v548, %v1867
          %v1869 = vmul.f32 %v549, %v1867
          %v1870 = vmul.f32 %v550, %v1867
          %v1871 = vmul.f32 %v551, %v1867
          %v1872 = vadd.f32 %v1862, %v1868
          %v1873 = vadd.f32 %v1863, %v1869
          %v1874 = vadd.f32 %v1864, %v1870
          %v1875 = vadd.f32 %v1865, %v1871
          %s1876 = sld [smem:[#allocation4 + $0xa]]
          %v1877 = vstv %s1876
          %v1878 = vadd.f32 %v1872, %v1877
          %v1879 = vadd.f32 %v1873, %v1877
          %v1880 = vadd.f32 %v1874, %v1877
          %v1881 = vadd.f32 %v1875, %v1877
          %v1882 = vmax.f32 %v1878, 0.0
          %v1883 = vmax.f32 %v1879, 0.0
          %v1884 = vmax.f32 %v1880, 0.0
          %v1885 = vmax.f32 %v1881, 0.0
          %v1886 = vmul.f32 %v573, %v1882
          %v1887 = vmul.f32 %v575, %v1883
          %v1888 = vmul.f32 %v577, %v1884
          %v1889 = vmul.f32 %v579, %v1885
          %1890 = vset.pattern.permute.xlu0 18
          %1891 = vperm.xlu0 %1890, %v213
          %v1892 = vpop.permute.xlu0 %1891
          %1894 = vset.pattern.permute.xlu0 18
          %1895 = vperm.xlu0 %1894, %v214
          %v1896 = vpop.permute.xlu0 %1895
          %1898 = vset.pattern.permute.xlu0 18
          %1899 = vperm.xlu0 %1898, %v215
          %v1900 = vpop.permute.xlu0 %1899
          %1902 = vset.pattern.permute.xlu0 18
          %1903 = vperm.xlu0 %1902, %v216
          %v1904 = vpop.permute.xlu0 %1903
          %v1906 = vmul.f32 %v1886, %v1892
          %v1907 = vmul.f32 %v1887, %v1896
          %v1908 = vmul.f32 %v1888, %v1900
          %v1909 = vmul.f32 %v1889, %v1904
          %v1910 = vld [vmem:[%s176 + $0xa] sm:$0x1]
          %v1911 = vadd.f32 %v1906, %v1907
          %v1912 = vadd.f32 %v1911, %v1908
          %v1913 = vadd.f32 %v1912, %v1909
          %v1914 = vrot.slane %v1913, 4
          %v1915 = vadd.f32 %v1913, %v1914
          %v1916 = vrot.slane %v1915, 2
          %v1917 = vadd.f32 %v1915, %v1916
          %v1918 = vrot.slane %v1917, 1
          %v1919 = vadd.f32 %v1917, %v1918
          %v1920 = vadd.f32 %v1910, %v1919
          %1921 = vst [vmem:[%s176 + $0xa] sm:$0x1] %v1920
          %s1922 = sld [smem:[#allocation3 + $0x580]]
          %v1923 = vstv %s1922
          %v1924 = vmul.f32 %v520, %v1923
          %v1925 = vmul.f32 %v521, %v1923
          %v1926 = vmul.f32 %v522, %v1923
          %v1927 = vmul.f32 %v523, %v1923
          %s1928 = sld [smem:[#allocation3 + $0x581]]
          %v1929 = vstv %s1928
          %v1930 = vmul.f32 %v524, %v1929
          %v1931 = vmul.f32 %v525, %v1929
          %v1932 = vmul.f32 %v526, %v1929
          %v1933 = vmul.f32 %v527, %v1929
          %v1934 = vadd.f32 %v1924, %v1930
          %v1935 = vadd.f32 %v1925, %v1931
          %v1936 = vadd.f32 %v1926, %v1932
          %v1937 = vadd.f32 %v1927, %v1933
          %s1938 = sld [smem:[#allocation3 + $0x582]]
          %v1939 = vstv %s1938
          %v1940 = vmul.f32 %v528, %v1939
          %v1941 = vmul.f32 %v529, %v1939
          %v1942 = vmul.f32 %v530, %v1939
          %v1943 = vmul.f32 %v531, %v1939
          %v1944 = vadd.f32 %v1934, %v1940
          %v1945 = vadd.f32 %v1935, %v1941
          %v1946 = vadd.f32 %v1936, %v1942
          %v1947 = vadd.f32 %v1937, %v1943
          %s1948 = sld [smem:[#allocation3 + $0x583]]
          %v1949 = vstv %s1948
          %v1950 = vmul.f32 %v532, %v1949
          %v1951 = vmul.f32 %v533, %v1949
          %v1952 = vmul.f32 %v534, %v1949
          %v1953 = vmul.f32 %v535, %v1949
          %v1954 = vadd.f32 %v1944, %v1950
          %v1955 = vadd.f32 %v1945, %v1951
          %v1956 = vadd.f32 %v1946, %v1952
          %v1957 = vadd.f32 %v1947, %v1953
          %s1958 = sld [smem:[#allocation3 + $0x584]]
          %v1959 = vstv %s1958
          %v1960 = vmul.f32 %v536, %v1959
          %v1961 = vmul.f32 %v537, %v1959
          %v1962 = vmul.f32 %v538, %v1959
          %v1963 = vmul.f32 %v539, %v1959
          %v1964 = vadd.f32 %v1954, %v1960
          %v1965 = vadd.f32 %v1955, %v1961
          %v1966 = vadd.f32 %v1956, %v1962
          %v1967 = vadd.f32 %v1957, %v1963
          %s1968 = sld [smem:[#allocation3 + $0x585]]
          %v1969 = vstv %s1968
          %v1970 = vmul.f32 %v540, %v1969
          %v1971 = vmul.f32 %v541, %v1969
          %v1972 = vmul.f32 %v542, %v1969
          %v1973 = vmul.f32 %v543, %v1969
          %v1974 = vadd.f32 %v1964, %v1970
          %v1975 = vadd.f32 %v1965, %v1971
          %v1976 = vadd.f32 %v1966, %v1972
          %v1977 = vadd.f32 %v1967, %v1973
          %s1978 = sld [smem:[#allocation3 + $0x586]]
          %v1979 = vstv %s1978
          %v1980 = vmul.f32 %v544, %v1979
          %v1981 = vmul.f32 %v545, %v1979
          %v1982 = vmul.f32 %v546, %v1979
          %v1983 = vmul.f32 %v547, %v1979
          %v1984 = vadd.f32 %v1974, %v1980
          %v1985 = vadd.f32 %v1975, %v1981
          %v1986 = vadd.f32 %v1976, %v1982
          %v1987 = vadd.f32 %v1977, %v1983
          %s1988 = sld [smem:[#allocation3 + $0x587]]
          %v1989 = vstv %s1988
          %v1990 = vmul.f32 %v548, %v1989
          %v1991 = vmul.f32 %v549, %v1989
          %v1992 = vmul.f32 %v550, %v1989
          %v1993 = vmul.f32 %v551, %v1989
          %v1994 = vadd.f32 %v1984, %v1990
          %v1995 = vadd.f32 %v1985, %v1991
          %v1996 = vadd.f32 %v1986, %v1992
          %v1997 = vadd.f32 %v1987, %v1993
          %s1998 = sld [smem:[#allocation4 + $0xb]]
          %v1999 = vstv %s1998
          %v2000 = vadd.f32 %v1994, %v1999
          %v2001 = vadd.f32 %v1995, %v1999
          %v2002 = vadd.f32 %v1996, %v1999
          %v2003 = vadd.f32 %v1997, %v1999
          %v2004 = vmax.f32 %v2000, 0.0
          %v2005 = vmax.f32 %v2001, 0.0
          %v2006 = vmax.f32 %v2002, 0.0
          %v2007 = vmax.f32 %v2003, 0.0
          %v2008 = vmul.f32 %v573, %v2004
          %v2009 = vmul.f32 %v575, %v2005
          %v2010 = vmul.f32 %v577, %v2006
          %v2011 = vmul.f32 %v579, %v2007
          %2012 = vset.pattern.permute.xlu0 19
          %2013 = vperm.xlu0 %2012, %v213
          %v2014 = vpop.permute.xlu0 %2013
          %2016 = vset.pattern.permute.xlu0 19
          %2017 = vperm.xlu0 %2016, %v214
          %v2018 = vpop.permute.xlu0 %2017
          %2020 = vset.pattern.permute.xlu0 19
          %2021 = vperm.xlu0 %2020, %v215
          %v2022 = vpop.permute.xlu0 %2021
          %2024 = vset.pattern.permute.xlu0 19
          %2025 = vperm.xlu0 %2024, %v216
          %v2026 = vpop.permute.xlu0 %2025
          %v2028 = vmul.f32 %v2008, %v2014
          %v2029 = vmul.f32 %v2009, %v2018
          %v2030 = vmul.f32 %v2010, %v2022
          %v2031 = vmul.f32 %v2011, %v2026
          %v2032 = vld [vmem:[%s176 + $0xb] sm:$0x1]
          %v2033 = vadd.f32 %v2028, %v2029
          %v2034 = vadd.f32 %v2033, %v2030
          %v2035 = vadd.f32 %v2034, %v2031
          %v2036 = vrot.slane %v2035, 4
          %v2037 = vadd.f32 %v2035, %v2036
          %v2038 = vrot.slane %v2037, 2
          %v2039 = vadd.f32 %v2037, %v2038
          %v2040 = vrot.slane %v2039, 1
          %v2041 = vadd.f32 %v2039, %v2040
          %v2042 = vadd.f32 %v2032, %v2041
          %2043 = vst [vmem:[%s176 + $0xb] sm:$0x1] %v2042
          %s2044 = sld [smem:[#allocation3 + $0x600]]
          %v2045 = vstv %s2044
          %v2046 = vmul.f32 %v520, %v2045
          %v2047 = vmul.f32 %v521, %v2045
          %v2048 = vmul.f32 %v522, %v2045
          %v2049 = vmul.f32 %v523, %v2045
          %s2050 = sld [smem:[#allocation3 + $0x601]]
          %v2051 = vstv %s2050
          %v2052 = vmul.f32 %v524, %v2051
          %v2053 = vmul.f32 %v525, %v2051
          %v2054 = vmul.f32 %v526, %v2051
          %v2055 = vmul.f32 %v527, %v2051
          %v2056 = vadd.f32 %v2046, %v2052
          %v2057 = vadd.f32 %v2047, %v2053
          %v2058 = vadd.f32 %v2048, %v2054
          %v2059 = vadd.f32 %v2049, %v2055
          %s2060 = sld [smem:[#allocation3 + $0x602]]
          %v2061 = vstv %s2060
          %v2062 = vmul.f32 %v528, %v2061
          %v2063 = vmul.f32 %v529, %v2061
          %v2064 = vmul.f32 %v530, %v2061
          %v2065 = vmul.f32 %v531, %v2061
          %v2066 = vadd.f32 %v2056, %v2062
          %v2067 = vadd.f32 %v2057, %v2063
          %v2068 = vadd.f32 %v2058, %v2064
          %v2069 = vadd.f32 %v2059, %v2065
          %s2070 = sld [smem:[#allocation3 + $0x603]]
          %v2071 = vstv %s2070
          %v2072 = vmul.f32 %v532, %v2071
          %v2073 = vmul.f32 %v533, %v2071
          %v2074 = vmul.f32 %v534, %v2071
          %v2075 = vmul.f32 %v535, %v2071
          %v2076 = vadd.f32 %v2066, %v2072
          %v2077 = vadd.f32 %v2067, %v2073
          %v2078 = vadd.f32 %v2068, %v2074
          %v2079 = vadd.f32 %v2069, %v2075
          %s2080 = sld [smem:[#allocation3 + $0x604]]
          %v2081 = vstv %s2080
          %v2082 = vmul.f32 %v536, %v2081
          %v2083 = vmul.f32 %v537, %v2081
          %v2084 = vmul.f32 %v538, %v2081
          %v2085 = vmul.f32 %v539, %v2081
          %v2086 = vadd.f32 %v2076, %v2082
          %v2087 = vadd.f32 %v2077, %v2083
          %v2088 = vadd.f32 %v2078, %v2084
          %v2089 = vadd.f32 %v2079, %v2085
          %s2090 = sld [smem:[#allocation3 + $0x605]]
          %v2091 = vstv %s2090
          %v2092 = vmul.f32 %v540, %v2091
          %v2093 = vmul.f32 %v541, %v2091
          %v2094 = vmul.f32 %v542, %v2091
          %v2095 = vmul.f32 %v543, %v2091
          %v2096 = vadd.f32 %v2086, %v2092
          %v2097 = vadd.f32 %v2087, %v2093
          %v2098 = vadd.f32 %v2088, %v2094
          %v2099 = vadd.f32 %v2089, %v2095
          %s2100 = sld [smem:[#allocation3 + $0x606]]
          %v2101 = vstv %s2100
          %v2102 = vmul.f32 %v544, %v2101
          %v2103 = vmul.f32 %v545, %v2101
          %v2104 = vmul.f32 %v546, %v2101
          %v2105 = vmul.f32 %v547, %v2101
          %v2106 = vadd.f32 %v2096, %v2102
          %v2107 = vadd.f32 %v2097, %v2103
          %v2108 = vadd.f32 %v2098, %v2104
          %v2109 = vadd.f32 %v2099, %v2105
          %s2110 = sld [smem:[#allocation3 + $0x607]]
          %v2111 = vstv %s2110
          %v2112 = vmul.f32 %v548, %v2111
          %v2113 = vmul.f32 %v549, %v2111
          %v2114 = vmul.f32 %v550, %v2111
          %v2115 = vmul.f32 %v551, %v2111
          %v2116 = vadd.f32 %v2106, %v2112
          %v2117 = vadd.f32 %v2107, %v2113
          %v2118 = vadd.f32 %v2108, %v2114
          %v2119 = vadd.f32 %v2109, %v2115
          %s2120 = sld [smem:[#allocation4 + $0xc]]
          %v2121 = vstv %s2120
          %v2122 = vadd.f32 %v2116, %v2121
          %v2123 = vadd.f32 %v2117, %v2121
          %v2124 = vadd.f32 %v2118, %v2121
          %v2125 = vadd.f32 %v2119, %v2121
          %v2126 = vmax.f32 %v2122, 0.0
          %v2127 = vmax.f32 %v2123, 0.0
          %v2128 = vmax.f32 %v2124, 0.0
          %v2129 = vmax.f32 %v2125, 0.0
          %v2130 = vmul.f32 %v573, %v2126
          %v2131 = vmul.f32 %v575, %v2127
          %v2132 = vmul.f32 %v577, %v2128
          %v2133 = vmul.f32 %v579, %v2129
          %2134 = vset.pattern.permute.xlu0 20
          %2135 = vperm.xlu0 %2134, %v213
          %v2136 = vpop.permute.xlu0 %2135
          %2138 = vset.pattern.permute.xlu0 20
          %2139 = vperm.xlu0 %2138, %v214
          %v2140 = vpop.permute.xlu0 %2139
          %2142 = vset.pattern.permute.xlu0 20
          %2143 = vperm.xlu0 %2142, %v215
          %v2144 = vpop.permute.xlu0 %2143
          %2146 = vset.pattern.permute.xlu0 20
          %2147 = vperm.xlu0 %2146, %v216
          %v2148 = vpop.permute.xlu0 %2147
          %v2150 = vmul.f32 %v2130, %v2136
          %v2151 = vmul.f32 %v2131, %v2140
          %v2152 = vmul.f32 %v2132, %v2144
          %v2153 = vmul.f32 %v2133, %v2148
          %v2154 = vld [vmem:[%s176 + $0xc] sm:$0x1]
          %v2155 = vadd.f32 %v2150, %v2151
          %v2156 = vadd.f32 %v2155, %v2152
          %v2157 = vadd.f32 %v2156, %v2153
          %v2158 = vrot.slane %v2157, 4
          %v2159 = vadd.f32 %v2157, %v2158
          %v2160 = vrot.slane %v2159, 2
          %v2161 = vadd.f32 %v2159, %v2160
          %v2162 = vrot.slane %v2161, 1
          %v2163 = vadd.f32 %v2161, %v2162
          %v2164 = vadd.f32 %v2154, %v2163
          %2165 = vst [vmem:[%s176 + $0xc] sm:$0x1] %v2164
          %s2166 = sld [smem:[#allocation3 + $0x680]]
          %v2167 = vstv %s2166
          %v2168 = vmul.f32 %v520, %v2167
          %v2169 = vmul.f32 %v521, %v2167
          %v2170 = vmul.f32 %v522, %v2167
          %v2171 = vmul.f32 %v523, %v2167
          %s2172 = sld [smem:[#allocation3 + $0x681]]
          %v2173 = vstv %s2172
          %v2174 = vmul.f32 %v524, %v2173
          %v2175 = vmul.f32 %v525, %v2173
          %v2176 = vmul.f32 %v526, %v2173
          %v2177 = vmul.f32 %v527, %v2173
          %v2178 = vadd.f32 %v2168, %v2174
          %v2179 = vadd.f32 %v2169, %v2175
          %v2180 = vadd.f32 %v2170, %v2176
          %v2181 = vadd.f32 %v2171, %v2177
          %s2182 = sld [smem:[#allocation3 + $0x682]]
          %v2183 = vstv %s2182
          %v2184 = vmul.f32 %v528, %v2183
          %v2185 = vmul.f32 %v529, %v2183
          %v2186 = vmul.f32 %v530, %v2183
          %v2187 = vmul.f32 %v531, %v2183
          %v2188 = vadd.f32 %v2178, %v2184
          %v2189 = vadd.f32 %v2179, %v2185
          %v2190 = vadd.f32 %v2180, %v2186
          %v2191 = vadd.f32 %v2181, %v2187
          %s2192 = sld [smem:[#allocation3 + $0x683]]
          %v2193 = vstv %s2192
          %v2194 = vmul.f32 %v532, %v2193
          %v2195 = vmul.f32 %v533, %v2193
          %v2196 = vmul.f32 %v534, %v2193
          %v2197 = vmul.f32 %v535, %v2193
          %v2198 = vadd.f32 %v2188, %v2194
          %v2199 = vadd.f32 %v2189, %v2195
          %v2200 = vadd.f32 %v2190, %v2196
          %v2201 = vadd.f32 %v2191, %v2197
          %s2202 = sld [smem:[#allocation3 + $0x684]]
          %v2203 = vstv %s2202
          %v2204 = vmul.f32 %v536, %v2203
          %v2205 = vmul.f32 %v537, %v2203
          %v2206 = vmul.f32 %v538, %v2203
          %v2207 = vmul.f32 %v539, %v2203
          %v2208 = vadd.f32 %v2198, %v2204
          %v2209 = vadd.f32 %v2199, %v2205
          %v2210 = vadd.f32 %v2200, %v2206
          %v2211 = vadd.f32 %v2201, %v2207
          %s2212 = sld [smem:[#allocation3 + $0x685]]
          %v2213 = vstv %s2212
          %v2214 = vmul.f32 %v540, %v2213
          %v2215 = vmul.f32 %v541, %v2213
          %v2216 = vmul.f32 %v542, %v2213
          %v2217 = vmul.f32 %v543, %v2213
          %v2218 = vadd.f32 %v2208, %v2214
          %v2219 = vadd.f32 %v2209, %v2215
          %v2220 = vadd.f32 %v2210, %v2216
          %v2221 = vadd.f32 %v2211, %v2217
          %s2222 = sld [smem:[#allocation3 + $0x686]]
          %v2223 = vstv %s2222
          %v2224 = vmul.f32 %v544, %v2223
          %v2225 = vmul.f32 %v545, %v2223
          %v2226 = vmul.f32 %v546, %v2223
          %v2227 = vmul.f32 %v547, %v2223
          %v2228 = vadd.f32 %v2218, %v2224
          %v2229 = vadd.f32 %v2219, %v2225
          %v2230 = vadd.f32 %v2220, %v2226
          %v2231 = vadd.f32 %v2221, %v2227
          %s2232 = sld [smem:[#allocation3 + $0x687]]
          %v2233 = vstv %s2232
          %v2234 = vmul.f32 %v548, %v2233
          %v2235 = vmul.f32 %v549, %v2233
          %v2236 = vmul.f32 %v550, %v2233
          %v2237 = vmul.f32 %v551, %v2233
          %v2238 = vadd.f32 %v2228, %v2234
          %v2239 = vadd.f32 %v2229, %v2235
          %v2240 = vadd.f32 %v2230, %v2236
          %v2241 = vadd.f32 %v2231, %v2237
          %s2242 = sld [smem:[#allocation4 + $0xd]]
          %v2243 = vstv %s2242
          %v2244 = vadd.f32 %v2238, %v2243
          %v2245 = vadd.f32 %v2239, %v2243
          %v2246 = vadd.f32 %v2240, %v2243
          %v2247 = vadd.f32 %v2241, %v2243
          %v2248 = vmax.f32 %v2244, 0.0
          %v2249 = vmax.f32 %v2245, 0.0
          %v2250 = vmax.f32 %v2246, 0.0
          %v2251 = vmax.f32 %v2247, 0.0
          %v2252 = vmul.f32 %v573, %v2248
          %v2253 = vmul.f32 %v575, %v2249
          %v2254 = vmul.f32 %v577, %v2250
          %v2255 = vmul.f32 %v579, %v2251
          %2256 = vset.pattern.permute.xlu0 21
          %2257 = vperm.xlu0 %2256, %v213
          %v2258 = vpop.permute.xlu0 %2257
          %2260 = vset.pattern.permute.xlu0 21
          %2261 = vperm.xlu0 %2260, %v214
          %v2262 = vpop.permute.xlu0 %2261
          %2264 = vset.pattern.permute.xlu0 21
          %2265 = vperm.xlu0 %2264, %v215
          %v2266 = vpop.permute.xlu0 %2265
          %2268 = vset.pattern.permute.xlu0 21
          %2269 = vperm.xlu0 %2268, %v216
          %v2270 = vpop.permute.xlu0 %2269
          %v2272 = vmul.f32 %v2252, %v2258
          %v2273 = vmul.f32 %v2253, %v2262
          %v2274 = vmul.f32 %v2254, %v2266
          %v2275 = vmul.f32 %v2255, %v2270
          %v2276 = vld [vmem:[%s176 + $0xd] sm:$0x1]
          %v2277 = vadd.f32 %v2272, %v2273
          %v2278 = vadd.f32 %v2277, %v2274
          %v2279 = vadd.f32 %v2278, %v2275
          %v2280 = vrot.slane %v2279, 4
          %v2281 = vadd.f32 %v2279, %v2280
          %v2282 = vrot.slane %v2281, 2
          %v2283 = vadd.f32 %v2281, %v2282
          %v2284 = vrot.slane %v2283, 1
          %v2285 = vadd.f32 %v2283, %v2284
          %v2286 = vadd.f32 %v2276, %v2285
          %2287 = vst [vmem:[%s176 + $0xd] sm:$0x1] %v2286
          %s2288 = sld [smem:[#allocation3 + $0x700]]
          %v2289 = vstv %s2288
          %v2290 = vmul.f32 %v520, %v2289
          %v2291 = vmul.f32 %v521, %v2289
          %v2292 = vmul.f32 %v522, %v2289
          %v2293 = vmul.f32 %v523, %v2289
          %s2294 = sld [smem:[#allocation3 + $0x701]]
          %v2295 = vstv %s2294
          %v2296 = vmul.f32 %v524, %v2295
          %v2297 = vmul.f32 %v525, %v2295
          %v2298 = vmul.f32 %v526, %v2295
          %v2299 = vmul.f32 %v527, %v2295
          %v2300 = vadd.f32 %v2290, %v2296
          %v2301 = vadd.f32 %v2291, %v2297
          %v2302 = vadd.f32 %v2292, %v2298
          %v2303 = vadd.f32 %v2293, %v2299
          %s2304 = sld [smem:[#allocation3 + $0x702]]
          %v2305 = vstv %s2304
          %v2306 = vmul.f32 %v528, %v2305
          %v2307 = vmul.f32 %v529, %v2305
          %v2308 = vmul.f32 %v530, %v2305
          %v2309 = vmul.f32 %v531, %v2305
          %v2310 = vadd.f32 %v2300, %v2306
          %v2311 = vadd.f32 %v2301, %v2307
          %v2312 = vadd.f32 %v2302, %v2308
          %v2313 = vadd.f32 %v2303, %v2309
          %s2314 = sld [smem:[#allocation3 + $0x703]]
          %v2315 = vstv %s2314
          %v2316 = vmul.f32 %v532, %v2315
          %v2317 = vmul.f32 %v533, %v2315
          %v2318 = vmul.f32 %v534, %v2315
          %v2319 = vmul.f32 %v535, %v2315
          %v2320 = vadd.f32 %v2310, %v2316
          %v2321 = vadd.f32 %v2311, %v2317
          %v2322 = vadd.f32 %v2312, %v2318
          %v2323 = vadd.f32 %v2313, %v2319
          %s2324 = sld [smem:[#allocation3 + $0x704]]
          %v2325 = vstv %s2324
          %v2326 = vmul.f32 %v536, %v2325
          %v2327 = vmul.f32 %v537, %v2325
          %v2328 = vmul.f32 %v538, %v2325
          %v2329 = vmul.f32 %v539, %v2325
          %v2330 = vadd.f32 %v2320, %v2326
          %v2331 = vadd.f32 %v2321, %v2327
          %v2332 = vadd.f32 %v2322, %v2328
          %v2333 = vadd.f32 %v2323, %v2329
          %s2334 = sld [smem:[#allocation3 + $0x705]]
          %v2335 = vstv %s2334
          %v2336 = vmul.f32 %v540, %v2335
          %v2337 = vmul.f32 %v541, %v2335
          %v2338 = vmul.f32 %v542, %v2335
          %v2339 = vmul.f32 %v543, %v2335
          %v2340 = vadd.f32 %v2330, %v2336
          %v2341 = vadd.f32 %v2331, %v2337
          %v2342 = vadd.f32 %v2332, %v2338
          %v2343 = vadd.f32 %v2333, %v2339
          %s2344 = sld [smem:[#allocation3 + $0x706]]
          %v2345 = vstv %s2344
          %v2346 = vmul.f32 %v544, %v2345
          %v2347 = vmul.f32 %v545, %v2345
          %v2348 = vmul.f32 %v546, %v2345
          %v2349 = vmul.f32 %v547, %v2345
          %v2350 = vadd.f32 %v2340, %v2346
          %v2351 = vadd.f32 %v2341, %v2347
          %v2352 = vadd.f32 %v2342, %v2348
          %v2353 = vadd.f32 %v2343, %v2349
          %s2354 = sld [smem:[#allocation3 + $0x707]]
          %v2355 = vstv %s2354
          %v2356 = vmul.f32 %v548, %v2355
          %v2357 = vmul.f32 %v549, %v2355
          %v2358 = vmul.f32 %v550, %v2355
          %v2359 = vmul.f32 %v551, %v2355
          %v2360 = vadd.f32 %v2350, %v2356
          %v2361 = vadd.f32 %v2351, %v2357
          %v2362 = vadd.f32 %v2352, %v2358
          %v2363 = vadd.f32 %v2353, %v2359
          %s2364 = sld [smem:[#allocation4 + $0xe]]
          %v2365 = vstv %s2364
          %v2366 = vadd.f32 %v2360, %v2365
          %v2367 = vadd.f32 %v2361, %v2365
          %v2368 = vadd.f32 %v2362, %v2365
          %v2369 = vadd.f32 %v2363, %v2365
          %v2370 = vmax.f32 %v2366, 0.0
          %v2371 = vmax.f32 %v2367, 0.0
          %v2372 = vmax.f32 %v2368, 0.0
          %v2373 = vmax.f32 %v2369, 0.0
          %v2374 = vmul.f32 %v573, %v2370
          %v2375 = vmul.f32 %v575, %v2371
          %v2376 = vmul.f32 %v577, %v2372
          %v2377 = vmul.f32 %v579, %v2373
          %2378 = vset.pattern.permute.xlu0 22
          %2379 = vperm.xlu0 %2378, %v213
          %v2380 = vpop.permute.xlu0 %2379
          %2382 = vset.pattern.permute.xlu0 22
          %2383 = vperm.xlu0 %2382, %v214
          %v2384 = vpop.permute.xlu0 %2383
          %2386 = vset.pattern.permute.xlu0 22
          %2387 = vperm.xlu0 %2386, %v215
          %v2388 = vpop.permute.xlu0 %2387
          %2390 = vset.pattern.permute.xlu0 22
          %2391 = vperm.xlu0 %2390, %v216
          %v2392 = vpop.permute.xlu0 %2391
          %v2394 = vmul.f32 %v2374, %v2380
          %v2395 = vmul.f32 %v2375, %v2384
          %v2396 = vmul.f32 %v2376, %v2388
          %v2397 = vmul.f32 %v2377, %v2392
          %v2398 = vld [vmem:[%s176 + $0xe] sm:$0x1]
          %v2399 = vadd.f32 %v2394, %v2395
          %v2400 = vadd.f32 %v2399, %v2396
          %v2401 = vadd.f32 %v2400, %v2397
          %v2402 = vrot.slane %v2401, 4
          %v2403 = vadd.f32 %v2401, %v2402
          %v2404 = vrot.slane %v2403, 2
          %v2405 = vadd.f32 %v2403, %v2404
          %v2406 = vrot.slane %v2405, 1
          %v2407 = vadd.f32 %v2405, %v2406
          %v2408 = vadd.f32 %v2398, %v2407
          %2409 = vst [vmem:[%s176 + $0xe] sm:$0x1] %v2408
          %s2410 = sld [smem:[#allocation3 + $0x780]]
          %v2411 = vstv %s2410
          %v2412 = vmul.f32 %v520, %v2411
          %v2413 = vmul.f32 %v521, %v2411
          %v2414 = vmul.f32 %v522, %v2411
          %v2415 = vmul.f32 %v523, %v2411
          %s2416 = sld [smem:[#allocation3 + $0x781]]
          %v2417 = vstv %s2416
          %v2418 = vmul.f32 %v524, %v2417
          %v2419 = vmul.f32 %v525, %v2417
          %v2420 = vmul.f32 %v526, %v2417
          %v2421 = vmul.f32 %v527, %v2417
          %v2422 = vadd.f32 %v2412, %v2418
          %v2423 = vadd.f32 %v2413, %v2419
          %v2424 = vadd.f32 %v2414, %v2420
          %v2425 = vadd.f32 %v2415, %v2421
          %s2426 = sld [smem:[#allocation3 + $0x782]]
          %v2427 = vstv %s2426
          %v2428 = vmul.f32 %v528, %v2427
          %v2429 = vmul.f32 %v529, %v2427
          %v2430 = vmul.f32 %v530, %v2427
          %v2431 = vmul.f32 %v531, %v2427
          %v2432 = vadd.f32 %v2422, %v2428
          %v2433 = vadd.f32 %v2423, %v2429
          %v2434 = vadd.f32 %v2424, %v2430
          %v2435 = vadd.f32 %v2425, %v2431
          %s2436 = sld [smem:[#allocation3 + $0x783]]
          %v2437 = vstv %s2436
          %v2438 = vmul.f32 %v532, %v2437
          %v2439 = vmul.f32 %v533, %v2437
          %v2440 = vmul.f32 %v534, %v2437
          %v2441 = vmul.f32 %v535, %v2437
          %v2442 = vadd.f32 %v2432, %v2438
          %v2443 = vadd.f32 %v2433, %v2439
          %v2444 = vadd.f32 %v2434, %v2440
          %v2445 = vadd.f32 %v2435, %v2441
          %s2446 = sld [smem:[#allocation3 + $0x784]]
          %v2447 = vstv %s2446
          %v2448 = vmul.f32 %v536, %v2447
          %v2449 = vmul.f32 %v537, %v2447
          %v2450 = vmul.f32 %v538, %v2447
          %v2451 = vmul.f32 %v539, %v2447
          %v2452 = vadd.f32 %v2442, %v2448
          %v2453 = vadd.f32 %v2443, %v2449
          %v2454 = vadd.f32 %v2444, %v2450
          %v2455 = vadd.f32 %v2445, %v2451
          %s2456 = sld [smem:[#allocation3 + $0x785]]
          %v2457 = vstv %s2456
          %v2458 = vmul.f32 %v540, %v2457
          %v2459 = vmul.f32 %v541, %v2457
          %v2460 = vmul.f32 %v542, %v2457
          %v2461 = vmul.f32 %v543, %v2457
          %v2462 = vadd.f32 %v2452, %v2458
          %v2463 = vadd.f32 %v2453, %v2459
          %v2464 = vadd.f32 %v2454, %v2460
          %v2465 = vadd.f32 %v2455, %v2461
          %s2466 = sld [smem:[#allocation3 + $0x786]]
          %v2467 = vstv %s2466
          %v2468 = vmul.f32 %v544, %v2467
          %v2469 = vmul.f32 %v545, %v2467
          %v2470 = vmul.f32 %v546, %v2467
          %v2471 = vmul.f32 %v547, %v2467
          %v2472 = vadd.f32 %v2462, %v2468
          %v2473 = vadd.f32 %v2463, %v2469
          %v2474 = vadd.f32 %v2464, %v2470
          %v2475 = vadd.f32 %v2465, %v2471
          %s2476 = sld [smem:[#allocation3 + $0x787]]
          %v2477 = vstv %s2476
          %v2478 = vmul.f32 %v548, %v2477
          %v2479 = vmul.f32 %v549, %v2477
          %v2480 = vmul.f32 %v550, %v2477
          %v2481 = vmul.f32 %v551, %v2477
          %v2482 = vadd.f32 %v2472, %v2478
          %v2483 = vadd.f32 %v2473, %v2479
          %v2484 = vadd.f32 %v2474, %v2480
          %v2485 = vadd.f32 %v2475, %v2481
          %s2486 = sld [smem:[#allocation4 + $0xf]]
          %v2487 = vstv %s2486
          %v2488 = vadd.f32 %v2482, %v2487
          %v2489 = vadd.f32 %v2483, %v2487
          %v2490 = vadd.f32 %v2484, %v2487
          %v2491 = vadd.f32 %v2485, %v2487
          %v2492 = vmax.f32 %v2488, 0.0
          %v2493 = vmax.f32 %v2489, 0.0
          %v2494 = vmax.f32 %v2490, 0.0
          %v2495 = vmax.f32 %v2491, 0.0
          %v2496 = vmul.f32 %v573, %v2492
          %v2497 = vmul.f32 %v575, %v2493
          %v2498 = vmul.f32 %v577, %v2494
          %v2499 = vmul.f32 %v579, %v2495
          %2500 = vset.pattern.permute.xlu0 23
          %2501 = vperm.xlu0 %2500, %v213
          %v2502 = vpop.permute.xlu0 %2501
          %2504 = vset.pattern.permute.xlu0 23
          %2505 = vperm.xlu0 %2504, %v214
          %v2506 = vpop.permute.xlu0 %2505
          %2508 = vset.pattern.permute.xlu0 23
          %2509 = vperm.xlu0 %2508, %v215
          %v2510 = vpop.permute.xlu0 %2509
          %2512 = vset.pattern.permute.xlu0 23
          %2513 = vperm.xlu0 %2512, %v216
          %v2514 = vpop.permute.xlu0 %2513
          %v2516 = vmul.f32 %v2496, %v2502
          %v2517 = vmul.f32 %v2497, %v2506
          %v2518 = vmul.f32 %v2498, %v2510
          %v2519 = vmul.f32 %v2499, %v2514
          %v2520 = vld [vmem:[%s176 + $0xf] sm:$0x1]
          %v2521 = vadd.f32 %v2516, %v2517
          %v2522 = vadd.f32 %v2521, %v2518
          %v2523 = vadd.f32 %v2522, %v2519
          %v2524 = vrot.slane %v2523, 4
          %v2525 = vadd.f32 %v2523, %v2524
          %v2526 = vrot.slane %v2525, 2
          %v2527 = vadd.f32 %v2525, %v2526
          %v2528 = vrot.slane %v2527, 1
          %v2529 = vadd.f32 %v2527, %v2528
          %v2530 = vadd.f32 %v2520, %v2529
          %2531 = vst [vmem:[%s176 + $0xf] sm:$0x1] %v2530
        $region37: #{_lambda_.2} parent=27 // loop_footer
          %s210 = sadd.s32 1, %s206
        $region38: #{_lambda_.2} parent=27 // loop_footer_branch
          %205 = sbr.rel target = $region34
        $region39: #{_lambda_.2} parent=27 // loop_exit
          _
        %s2532 = sand.u32 %s100, 1
        %s2533 = sand.u32 %s100, 1
        %s2534 = smul.addr %s2533, 16
        %s2535 = scalar_lea.vmem [#allocation5], %s2534
        // Predicated region
        $region40: #{_lambda_.2} parent=27 // pred_check
          %p2536 = pneg %p110
        $region41: #{_lambda_.2} parent=27 // pred_check_branch
          %2538 = sbr.rel (%p2536) target = $region43
        $region42: #{_lambda_.2} parent=27 // pred_region
          %s2539 = smul.addr %s32, 8
          %s2540 = scalar_lea.vmem %s4, %s2539
          // Predicated region
          $region44: #{_lambda_.2} parent=42 // pred_check
            _
          $region45: #{_lambda_.2} parent=42 // pred_check_branch
            %2542 = sbr.rel (0) target = $region47
          $region46: #{_lambda_.2} parent=42 // pred_region
            // Predicated region
            $region48: #{_lambda_.2} parent=46 // pred_check
              _
            $region49: #{_lambda_.2} parent=46 // pred_check_branch
              %2544 = sbr.rel (0) target = $region51
            $region50: #{_lambda_.2} parent=46 // pred_region
              // Predicated region
              $region63: #{_lambda_.2} parent=50 // pred_check
                _
              $region64: #{_lambda_.2} parent=50 // pred_check_branch
                %2562 = sbr.rel (0) target = $region66
              $region65: #{_lambda_.2} parent=50 // pred_region
                loop: start=0, step=1, limit=1
                $region67: #{_lambda_.2} parent=65 // loop_pre_header
                  _
                $region68: #{_lambda_.2} parent=65 // loop_header
                  %s2564 = sphi 0, %s2568
                  %p2565 = scmp.ge.s32.totalorder %s2564, 1
                  %s2569 = sphi %s2535, %s2535
                  %s2570 = sphi %s2540, %s2540
                $region69: #{_lambda_.2} parent=65 // loop_header_branch
                  %2567 = sbr.rel (%p2565) target = $region73
                $region70: #{_lambda_.2} parent=65 // loop_body
                  %v2571 = vld [vmem:[%s2569] sm:$0xff]
                  %2572 = vst [vmem:[%s2570] sm:$0xff] %v2571
                  %v2573 = vld [vmem:[%s2569 + $0x8] sm:$0xff]
                  %2574 = vst [vmem:[%s2570 + $0x10] sm:$0xff] %v2573
                $region71: #{_lambda_.2} parent=65 // loop_footer
                  %s2568 = sadd.s32 1, %s2564
                $region72: #{_lambda_.2} parent=65 // loop_footer_branch
                  %2563 = sbr.rel target = $region68
                $region73: #{_lambda_.2} parent=65 // loop_exit
                  _
              $region66: #{_lambda_.2} parent=50 // pred_fallthru
                _
              // Predicated region
              $region74: #{_lambda_.2} parent=50 // pred_check
                _
              $region75: #{_lambda_.2} parent=50 // pred_check_branch
                %2576 = sbr.rel target = $region77
              $region76: #{_lambda_.2} parent=50 // pred_region
                _
              $region77: #{_lambda_.2} parent=50 // pred_fallthru
                _
            $region51: #{_lambda_.2} parent=46 // pred_fallthru
              _
            // Predicated region
            $region52: #{_lambda_.2} parent=46 // pred_check
              _
            $region53: #{_lambda_.2} parent=46 // pred_check_branch
              %2546 = sbr.rel target = $region55
            $region54: #{_lambda_.2} parent=46 // pred_region
              %s2548 = ssub.s32 256, 1
              loop: start=0, step=1, limit=1
              $region56: #{_lambda_.2} parent=54 // loop_pre_header
                _
              $region57: #{_lambda_.2} parent=54 // loop_header
                %s2550 = sphi 0, %s2554
                %p2551 = scmp.ge.s32.totalorder %s2550, 1
                %s2555 = sphi %s2535, %s2535
                %s2556 = sphi %s2540, %s2540
              $region58: #{_lambda_.2} parent=54 // loop_header_branch
                %2553 = sbr.rel (%p2551) target = $region62
              $region59: #{_lambda_.2} parent=54 // loop_body
                %v2557 = vld [vmem:[%s2555] sm:%s2548]
                %2558 = vst [vmem:[%s2556] sm:%s2548] %v2557
                %v2559 = vld [vmem:[%s2555 + $0x8] sm:%s2548]
                %2560 = vst [vmem:[%s2556 + $0x10] sm:%s2548] %v2559
              $region60: #{_lambda_.2} parent=54 // loop_footer
                %s2554 = sadd.s32 1, %s2550
              $region61: #{_lambda_.2} parent=54 // loop_footer_branch
                %2549 = sbr.rel target = $region57
              $region62: #{_lambda_.2} parent=54 // loop_exit
                _
            $region55: #{_lambda_.2} parent=46 // pred_fallthru
              _
          $region47: #{_lambda_.2} parent=42 // pred_fallthru
            _
          %2577 = vnop
        $region43: #{_lambda_.2} parent=27 // pred_fallthru
          _
      $region28: #{_lambda_.2} parent=5 // pred_fallthru
        _
      %p2578 = scmp.le.s32.totalorder 2, %s23
      // Predicated region
      $region78: #{_lambda_.2} parent=5 // pred_check
        %p2579 = pneg %p2578
      $region79: #{_lambda_.2} parent=5 // pred_check_branch
        %2581 = sbr.rel (%p2579) target = $region81
      $region80: #{_lambda_.2} parent=5 // pred_region
        %s2582 = ssub.s32 %s23, 2
        // Predicated region
        $region82: #{_lambda_.2} parent=80 // pred_check
          %p2583 = pneg %p116
        $region83: #{_lambda_.2} parent=80 // pred_check_branch
          %2585 = sbr.rel (%p2583) target = $region85
        $region84: #{_lambda_.2} parent=80 // pred_region
          %s2586 = sand.u32 %s101, 1
          %s2587 = sand.u32 %s101, 1
          %s2588 = smul.addr %s2587, 16
          %s2589 = scalar_lea.vmem [#allocation5], %s2588
        $region85: #{_lambda_.2} parent=80 // pred_fallthru
          _
      $region81: #{_lambda_.2} parent=5 // pred_fallthru
        _
    $region6: #{_lambda_.2} parent=1 // loop_footer
      %s27 = sadd.s32 1, %s23
    $region7: #{_lambda_.2} parent=1 // loop_footer_branch
      %22 = sbr.rel target = $region3
    $region8: #{_lambda_.2} parent=1 // loop_exit
      _

</llo_original>
